<compile_context>
chip_gen: v5e
topology: v5e:2x2
jax: 0.10.0
libtpu: 0.0.40
codegen_flags: <defaults>
</compile_context>

<pallas_src>
import functools
import math

import jax
import jax.numpy as jnp
from jax.experimental import pallas as pl
from jax.experimental.pallas import tpu as pltpu

D_MODEL = 128          # required: regression head input is 128 * 2
NHEAD = 4
NHID = 64              # dim_feedforward
NLAYERS = 2
SEQ = 8
BATCH = 2
LN_EPS = 1e-5


# ----------------------------- kernel ------------------------------------

def _layernorm(x, w, b, eps=LN_EPS):
    mu = jnp.mean(x, axis=-1, keepdims=True)
    var = jnp.mean((x - mu) ** 2, axis=-1, keepdims=True)
    return (x - mu) * jax.lax.rsqrt(var + eps) * w + b


def fused_transformer_kernel(
    x_ref,
    wq_ref, wk_ref, wv_ref, bq_ref, bk_ref, bv_ref,
    wo_ref, bo_ref, ln1w_ref, ln1b_ref,
    w1_ref, b1_ref, w2_ref, b2_ref, ln2w_ref, ln2b_ref,
    hw1_ref, hb1_ref, hw2_ref, hb2_ref, hw3_ref, hb3_ref, hw4_ref, hb4_ref,
    o_ref, *, nlayers, nhead, batch, seq):
    """Entire encoder stack + pooling + regression head, fully VMEM-resident."""
    BS, D = x_ref.shape                      # (B*S, D), batch-major rows
    hd = D // nhead
    scale = 1.0 / math.sqrt(hd)

    xf = x_ref[...].astype(jnp.float32)      # activations stay f32

    for l in range(nlayers):                 # static layer loop (weights stacked)
        xb = xf.astype(jnp.bfloat16)         # bf16 matmul inputs, f32 accumulate

        # --- multi-head self attention (per-head pre-split weights, no lane slicing) ---
        head_outs = []
        for h in range(nhead):               # static head loop
            qh = (jnp.dot(xb, wq_ref[l, h], preferred_element_type=jnp.float32)
                  + bq_ref[l, h]) * scale                               # (BS, hd)
            kh = jnp.dot(xb, wk_ref[l, h], preferred_element_type=jnp.float32) + bk_ref[l, h]
            vh = jnp.dot(xb, wv_ref[l, h], preferred_element_type=jnp.float32) + bv_ref[l, h]

            qh = qh.reshape(batch, seq, hd)
            kh = kh.reshape(batch, seq, hd)
            vh = vh.reshape(batch, seq, hd)

            s = jnp.einsum('bqd,bkd->bqk', qh, kh,
                           preferred_element_type=jnp.float32)          # (B, S, S)
            s = s - jnp.max(s, axis=-1, keepdims=True)
            p = jnp.exp(s)
            p = p * pl.reciprocal(jnp.sum(p, axis=-1, keepdims=True), approx=True)
            ctx = jnp.einsum('bqk,bkd->bqd', p, vh,
                             preferred_element_type=jnp.float32)        # (B, S, hd)
            ctx = ctx.reshape(BS, hd).astype(jnp.bfloat16)
            # per-head slice of the out-projection (rows h*hd:(h+1)*hd), pre-split
            head_outs.append(jnp.dot(ctx, wo_ref[l, h],
                                     preferred_element_type=jnp.float32))  # (BS, D)

        attn = head_outs[0]
        for ho in head_outs[1:]:
            attn = attn + ho
        attn = attn + bo_ref[l]
        xf = _layernorm(xf + attn, ln1w_ref[l], ln1b_ref[l])

        # --- feed-forward ---
        xb = xf.astype(jnp.bfloat16)
        ff = jnp.maximum(jnp.dot(xb, w1_ref[l],
                                 preferred_element_type=jnp.float32) + b1_ref[l], 0.0)
        ff = jnp.dot(ff.astype(jnp.bfloat16), w2_ref[l],
                     preferred_element_type=jnp.float32) + b2_ref[l]
        xf = _layernorm(xf + ff, ln2w_ref[l], ln2b_ref[l])

    # --- mean/max pooling over the sequence axis ---
    x3 = xf.reshape(batch, seq, D)
    mean = jnp.mean(x3, axis=1)                                         # (B, D)
    mx = jnp.max(x3, axis=1)                                            # (B, D)
    pooled = jnp.concatenate([mean, mx], axis=-1)                       # (B, 2D)

    # --- regression head: 256 -> 128 -> 64 -> 32 -> 1 (ReLU, eval-mode dropout = id) ---
    pb = pooled.astype(jnp.bfloat16)
    h1 = jnp.maximum(jnp.dot(pb, hw1_ref[...],
                             preferred_element_type=jnp.float32) + hb1_ref[...], 0.0)
    h2 = jnp.maximum(jnp.dot(h1.astype(jnp.bfloat16), hw2_ref[...],
                             preferred_element_type=jnp.float32) + hb2_ref[...], 0.0)
    h3 = jnp.maximum(jnp.dot(h2.astype(jnp.bfloat16), hw3_ref[...],
                             preferred_element_type=jnp.float32) + hb3_ref[...], 0.0)
    out = jnp.dot(h3, hw4_ref[...],
                  preferred_element_type=jnp.float32) + hb4_ref[...]    # (B, 1), f32 final layer
    o_ref[...] = out.astype(o_ref.dtype)


# ----------------------------- wrapper --------------------------------------

def transformer_forward(src, params):
    """src: (S, B, D) -> (1, B, 1), matching PyTorch Transformer.forward."""
    enc, head = params
    S, B, D = src.shape
    # Layout plumbing done outside the kernel: (S,B,D) -> batch-major (B*S, D).
    x_flat = jnp.transpose(src, (1, 0, 2)).reshape(B * S, D)

    args = (x_flat, *enc, *head)
    kernel = functools.partial(fused_transformer_kernel,
                               nlayers=NLAYERS, nhead=NHEAD, batch=B, seq=S)
    out = pl.pallas_call(
        kernel,
        out_shape=jax.ShapeDtypeStruct((B, 1), jnp.float32),
        in_specs=[pl.BlockSpec(memory_space=pltpu.MemorySpace.VMEM) for _ in args],
        out_specs=pl.BlockSpec(memory_space=pltpu.MemorySpace.VMEM),
        cost_estimate=pl.CostEstimate(flops=6_000_000,
                                      transcendentals=1_200,
                                      bytes_accessed=500_000),
    )(*args)
    return out.reshape(1, B, 1)


# ----------------------------- params --------------------------------------

def init_params(key):
    """Matmul weights stored bf16 (HBM-DMA halved); LN params / biases kept f32."""
    keys = iter(jax.random.split(key, 4 * NLAYERS + 4))
    hd = D_MODEL // NHEAD

    def lin(k, fan_in, fan_out):
        # kaiming-normal-ish (std = sqrt(2/fan_in)), bias zero; stored (in, out)
        w = jax.random.normal(k, (fan_in, fan_out), jnp.float32) * math.sqrt(2.0 / fan_in)
        b = jnp.zeros((1, fan_out), jnp.float32)
        return w, b

    def split_heads_cols(w):   # (D, D) -> (H, D, hd): column blocks per head
        return jnp.transpose(w.reshape(D_MODEL, NHEAD, hd), (1, 0, 2))

    def split_heads_bias(b):   # (1, D) -> (H, 1, hd)
        return jnp.transpose(b.reshape(1, NHEAD, hd), (1, 0, 2))

    wq_l, wk_l, wv_l, bq_l, bk_l, bv_l = [], [], [], [], [], []
    wo_l, bo_l, ln1w_l, ln1b_l = [], [], [], []
    w1_l, b1_l, w2_l, b2_l, ln2w_l, ln2b_l = [], [], [], [], [], []

    for _ in range(NLAYERS):
        wqkv, bqkv = lin(next(keys), D_MODEL, 3 * D_MODEL)   # MHA in_proj (q|k|v)
        wo, bo = lin(next(keys), D_MODEL, D_MODEL)           # MHA out_proj
        w1, b1 = lin(next(keys), D_MODEL, NHID)              # FFN linear1
        w2, b2 = lin(next(keys), NHID, D_MODEL)              # FFN linear2

        wq_l.append(split_heads_cols(wqkv[:, :D_MODEL]))
        wk_l.append(split_heads_cols(wqkv[:, D_MODEL:2 * D_MODEL]))
        wv_l.append(split_heads_cols(wqkv[:, 2 * D_MODEL:]))
        bq_l.append(split_heads_bias(bqkv[:, :D_MODEL]))
        bk_l.append(split_heads_bias(bqkv[:, D_MODEL:2 * D_MODEL]))
        bv_l.append(split_heads_bias(bqkv[:, 2 * D_MODEL:]))
        wo_l.append(wo.reshape(NHEAD, hd, D_MODEL))          # row blocks per head
        bo_l.append(bo)
        ln1w_l.append(jnp.ones((1, D_MODEL), jnp.float32))
        ln1b_l.append(jnp.zeros((1, D_MODEL), jnp.float32))
        w1_l.append(w1); b1_l.append(b1)
        w2_l.append(w2); b2_l.append(b2)
        ln2w_l.append(jnp.ones((1, D_MODEL), jnp.float32))
        ln2b_l.append(jnp.zeros((1, D_MODEL), jnp.float32))

    bf16_stack = lambda xs: jnp.stack(xs, axis=0).astype(jnp.bfloat16)
    f32_stack = lambda xs: jnp.stack(xs, axis=0)

    enc = (bf16_stack(wq_l), bf16_stack(wk_l), bf16_stack(wv_l),
           f32_stack(bq_l), f32_stack(bk_l), f32_stack(bv_l),
           bf16_stack(wo_l), f32_stack(bo_l), f32_stack(ln1w_l), f32_stack(ln1b_l),
           bf16_stack(w1_l), f32_stack(b1_l), bf16_stack(w2_l), f32_stack(b2_l),
           f32_stack(ln2w_l), f32_stack(ln2b_l))

    d_emb = 2 * D_MODEL                                      # 256
    hw1, hb1 = lin(next(keys), d_emb, d_emb // 2)            # 256 -> 128
    hw2, hb2 = lin(next(keys), d_emb // 2, d_emb // 4)       # 128 -> 64
    hw3, hb3 = lin(next(keys), d_emb // 4, d_emb // 8)       # 64  -> 32
    hw4, hb4 = lin(next(keys), d_emb // 8, 1)                # 32  -> 1 (kept f32, 128 B)
    head = (hw1.astype(jnp.bfloat16), hb1,
            hw2.astype(jnp.bfloat16), hb2,
            hw3.astype(jnp.bfloat16), hb3,
            hw4, hb4)

    return enc, head


# ----------------------------- main -----------------------------------------

if __name__ == "__main__":
    key = jax.random.PRNGKey(0)
    pkey, xkey = jax.random.split(key)
    params = init_params(pkey)

    # src: [seq_len, batch, d_model] — PyTorch convention
    src = jax.random.normal(xkey, (SEQ, BATCH, D_MODEL), jnp.float32)

    out = transformer_forward(src, params)
    out = jax.block_until_ready(out)
    assert out.shape == (1, BATCH, 1), out.shape
    assert bool(jnp.all(jnp.isfinite(out)))
    print("KERNEL_OK")
</pallas_src>

<mosaic_0001>
module attributes {stable_mosaic.version = 11 : i64} {
  func.func @fused_transformer_kernel(%arg0: memref<16x128xf32, #tpu.memory_space<vmem>>, %arg1: memref<2x4x128x32xbf16, #tpu.memory_space<vmem>>, %arg2: memref<2x4x128x32xbf16, #tpu.memory_space<vmem>>, %arg3: memref<2x4x128x32xbf16, #tpu.memory_space<vmem>>, %arg4: memref<2x4x1x32xf32, #tpu.memory_space<vmem>>, %arg5: memref<2x4x1x32xf32, #tpu.memory_space<vmem>>, %arg6: memref<2x4x1x32xf32, #tpu.memory_space<vmem>>, %arg7: memref<2x4x32x128xbf16, #tpu.memory_space<vmem>>, %arg8: memref<2x1x128xf32, #tpu.memory_space<vmem>>, %arg9: memref<2x1x128xf32, #tpu.memory_space<vmem>>, %arg10: memref<2x1x128xf32, #tpu.memory_space<vmem>>, %arg11: memref<2x128x64xbf16, #tpu.memory_space<vmem>>, %arg12: memref<2x1x64xf32, #tpu.memory_space<vmem>>, %arg13: memref<2x64x128xbf16, #tpu.memory_space<vmem>>, %arg14: memref<2x1x128xf32, #tpu.memory_space<vmem>>, %arg15: memref<2x1x128xf32, #tpu.memory_space<vmem>>, %arg16: memref<2x1x128xf32, #tpu.memory_space<vmem>>, %arg17: memref<256x128xbf16, #tpu.memory_space<vmem>>, %arg18: memref<1x128xf32, #tpu.memory_space<vmem>>, %arg19: memref<128x64xbf16, #tpu.memory_space<vmem>>, %arg20: memref<1x64xf32, #tpu.memory_space<vmem>>, %arg21: memref<64x32xbf16, #tpu.memory_space<vmem>>, %arg22: memref<1x32xf32, #tpu.memory_space<vmem>>, %arg23: memref<32x1xf32, #tpu.memory_space<vmem>>, %arg24: memref<1x1xf32, #tpu.memory_space<vmem>>, %arg25: memref<2x1xf32, #tpu.memory_space<vmem>>) attributes {dimension_semantics = [], scalar_prefetch = 0 : i64, scratch_operands = 0 : i64, tpu.core_type = #tpu.core_type<tc>} {
    %c0 = arith.constant 0 : index
    %c0_0 = arith.constant 0 : index
    %0 = vector.load %arg0[%c0, %c0_0] : memref<16x128xf32, #tpu.memory_space<vmem>>, vector<16x128xf32>
    %1 = arith.truncf %0 : vector<16x128xf32> to vector<16x128xbf16>
    %c0_1 = arith.constant 0 : index
    %c0_2 = arith.constant 0 : index
    %c0_3 = arith.constant 0 : index
    %c0_4 = arith.constant 0 : index
    %2 = vector.load %arg1[%c0_1, %c0_2, %c0_3, %c0_4] : memref<2x4x128x32xbf16, #tpu.memory_space<vmem>>, vector<1x1x128x32xbf16>
    %3 = vector.shape_cast %2 : vector<1x1x128x32xbf16> to vector<128x32xbf16>
    %cst = arith.constant dense<0.000000e+00> : vector<16x32xf32>
    %4 = tpu.matmul %1, %3, %cst {dimension_numbers = #tpu.dot_dimension_numbers<[1], [0], [0], [1], [0, 0, 1, 1], [], []>} : vector<16x128xbf16>, vector<128x32xbf16>, vector<16x32xf32> -> vector<16x32xf32>
    %c0_5 = arith.constant 0 : index
    %c0_6 = arith.constant 0 : index
    %c0_7 = arith.constant 0 : index
    %c0_8 = arith.constant 0 : index
    %5 = vector.load %arg4[%c0_5, %c0_6, %c0_7, %c0_8] : memref<2x4x1x32xf32, #tpu.memory_space<vmem>>, vector<1x1x1x32xf32>
    %6 = vector.shape_cast %5 : vector<1x1x1x32xf32> to vector<1x32xf32>
    %7 = vector.broadcast %6 : vector<1x32xf32> to vector<16x32xf32>
    %8 = arith.addf %4, %7 : vector<16x32xf32>
    %cst_9 = arith.constant 0.176776692 : f32
    %9 = vector.broadcast %cst_9 : f32 to vector<16x32xf32>
    %10 = arith.mulf %8, %9 : vector<16x32xf32>
    %c0_10 = arith.constant 0 : index
    %c0_11 = arith.constant 0 : index
    %c0_12 = arith.constant 0 : index
    %c0_13 = arith.constant 0 : index
    %11 = vector.load %arg2[%c0_10, %c0_11, %c0_12, %c0_13] : memref<2x4x128x32xbf16, #tpu.memory_space<vmem>>, vector<1x1x128x32xbf16>
    %12 = vector.shape_cast %11 : vector<1x1x128x32xbf16> to vector<128x32xbf16>
    %cst_14 = arith.constant dense<0.000000e+00> : vector<16x32xf32>
    %13 = tpu.matmul %1, %12, %cst_14 {dimension_numbers = #tpu.dot_dimension_numbers<[1], [0], [0], [1], [0, 0, 1, 1], [], []>} : vector<16x128xbf16>, vector<128x32xbf16>, vector<16x32xf32> -> vector<16x32xf32>
    %c0_15 = arith.constant 0 : index
    %c0_16 = arith.constant 0 : index
    %c0_17 = arith.constant 0 : index
    %c0_18 = arith.constant 0 : index
    %14 = vector.load %arg5[%c0_15, %c0_16, %c0_17, %c0_18] : memref<2x4x1x32xf32, #tpu.memory_space<vmem>>, vector<1x1x1x32xf32>
    %15 = vector.shape_cast %14 : vector<1x1x1x32xf32> to vector<1x32xf32>
    %16 = vector.broadcast %15 : vector<1x32xf32> to vector<16x32xf32>
    %17 = arith.addf %13, %16 : vector<16x32xf32>
    %c0_19 = arith.constant 0 : index
    %c0_20 = arith.constant 0 : index
    %c0_21 = arith.constant 0 : index
    %c0_22 = arith.constant 0 : index
    %18 = vector.load %arg3[%c0_19, %c0_20, %c0_21, %c0_22] : memref<2x4x128x32xbf16, #tpu.memory_space<vmem>>, vector<1x1x128x32xbf16>
    %19 = vector.shape_cast %18 : vector<1x1x128x32xbf16> to vector<128x32xbf16>
    %cst_23 = arith.constant dense<0.000000e+00> : vector<16x32xf32>
    %20 = tpu.matmul %1, %19, %cst_23 {dimension_numbers = #tpu.dot_dimension_numbers<[1], [0], [0], [1], [0, 0, 1, 1], [], []>} : vector<16x128xbf16>, vector<128x32xbf16>, vector<16x32xf32> -> vector<16x32xf32>
    %c0_24 = arith.constant 0 : index
    %c0_25 = arith.constant 0 : index
    %c0_26 = arith.constant 0 : index
    %c0_27 = arith.constant 0 : index
    %21 = vector.load %arg6[%c0_24, %c0_25, %c0_26, %c0_27] : memref<2x4x1x32xf32, #tpu.memory_space<vmem>>, vector<1x1x1x32xf32>
    %22 = vector.shape_cast %21 : vector<1x1x1x32xf32> to vector<1x32xf32>
    %23 = vector.broadcast %22 : vector<1x32xf32> to vector<16x32xf32>
    %24 = arith.addf %20, %23 : vector<16x32xf32>
    %25 = vector.shape_cast %10 : vector<16x32xf32> to vector<2x8x32xf32>
    %26 = vector.shape_cast %17 : vector<16x32xf32> to vector<2x8x32xf32>
    %27 = vector.shape_cast %24 : vector<16x32xf32> to vector<2x8x32xf32>
    "tpu.trace_start"() <{level = 10 : i32, message = "bqd,bkd->bqk"}> : () -> ()
    %cst_28 = arith.constant dense<0.000000e+00> : vector<2x8x8xf32>
    %28 = tpu.matmul %25, %26, %cst_28 {dimension_numbers = #tpu.dot_dimension_numbers<[2], [2], [1], [1], [0, 0, 0, 1, 1, 1], [0], [0]>} : vector<2x8x32xf32>, vector<2x8x32xf32>, vector<2x8x8xf32> -> vector<2x8x8xf32>
    "tpu.trace_stop"() : () -> ()
    %cst_29 = arith.constant dense<0xFF800000> : vector<2x8xf32>
    %29 = vector.multi_reduction <maximumf>, %28, %cst_29 [2] : vector<2x8x8xf32> to vector<2x8xf32>
    %30 = vector.shape_cast %29 : vector<2x8xf32> to vector<2x8x1xf32>
    %31 = vector.broadcast %30 : vector<2x8x1xf32> to vector<2x8x8xf32>
    %32 = arith.subf %28, %31 : vector<2x8x8xf32>
    %33 = math.exp %32 : vector<2x8x8xf32>
    %cst_30 = arith.constant dense<0.000000e+00> : vector<2x8xf32>
    %34 = vector.multi_reduction <add>, %33, %cst_30 [2] : vector<2x8x8xf32> to vector<2x8xf32>
    %35 = vector.shape_cast %34 : vector<2x8xf32> to vector<2x8x1xf32>
    %36 = tpu.reciprocal %35 {approx = true} : vector<2x8x1xf32> -> vector<2x8x1xf32>
    %37 = vector.broadcast %36 : vector<2x8x1xf32> to vector<2x8x8xf32>
    %38 = arith.mulf %33, %37 : vector<2x8x8xf32>
    "tpu.trace_start"() <{level = 10 : i32, message = "bqk,bkd->bqd"}> : () -> ()
    %cst_31 = arith.constant dense<0.000000e+00> : vector<2x8x32xf32>
    %39 = tpu.matmul %38, %27, %cst_31 {dimension_numbers = #tpu.dot_dimension_numbers<[2], [1], [1], [2], [0, 0, 0, 1, 1, 2], [0], [0]>} : vector<2x8x8xf32>, vector<2x8x32xf32>, vector<2x8x32xf32> -> vector<2x8x32xf32>
    "tpu.trace_stop"() : () -> ()
    %40 = vector.shape_cast %39 : vector<2x8x32xf32> to vector<16x32xf32>
    %41 = arith.truncf %40 : vector<16x32xf32> to vector<16x32xbf16>
    %c0_32 = arith.constant 0 : index
    %c0_33 = arith.constant 0 : index
    %c0_34 = arith.constant 0 : index
    %c0_35 = arith.constant 0 : index
    %42 = vector.load %arg7[%c0_32, %c0_33, %c0_34, %c0_35] : memref<2x4x32x128xbf16, #tpu.memory_space<vmem>>, vector<1x1x32x128xbf16>
    %43 = vector.shape_cast %42 : vector<1x1x32x128xbf16> to vector<32x128xbf16>
    %cst_36 = arith.constant dense<0.000000e+00> : vector<16x128xf32>
    %44 = tpu.matmul %41, %43, %cst_36 {dimension_numbers = #tpu.dot_dimension_numbers<[1], [0], [0], [1], [0, 0, 1, 1], [], []>} : vector<16x32xbf16>, vector<32x128xbf16>, vector<16x128xf32> -> vector<16x128xf32>
    %c0_37 = arith.constant 0 : index
    %c1 = arith.constant 1 : index
    %c0_38 = arith.constant 0 : index
    %c0_39 = arith.constant 0 : index
    %45 = vector.load %arg1[%c0_37, %c1, %c0_38, %c0_39] : memref<2x4x128x32xbf16, #tpu.memory_space<vmem>>, vector<1x1x128x32xbf16>
    %46 = vector.shape_cast %45 : vector<1x1x128x32xbf16> to vector<128x32xbf16>
    %cst_40 = arith.constant dense<0.000000e+00> : vector<16x32xf32>
    %47 = tpu.matmul %1, %46, %cst_40 {dimension_numbers = #tpu.dot_dimension_numbers<[1], [0], [0], [1], [0, 0, 1, 1], [], []>} : vector<16x128xbf16>, vector<128x32xbf16>, vector<16x32xf32> -> vector<16x32xf32>
    %c0_41 = arith.constant 0 : index
    %c1_42 = arith.constant 1 : index
    %c0_43 = arith.constant 0 : index
    %c0_44 = arith.constant 0 : index
    %48 = vector.load %arg4[%c0_41, %c1_42, %c0_43, %c0_44] : memref<2x4x1x32xf32, #tpu.memory_space<vmem>>, vector<1x1x1x32xf32>
    %49 = vector.shape_cast %48 : vector<1x1x1x32xf32> to vector<1x32xf32>
    %50 = vector.broadcast %49 : vector<1x32xf32> to vector<16x32xf32>
    %51 = arith.addf %47, %50 : vector<16x32xf32>
    %cst_45 = arith.constant 0.176776692 : f32
    %52 = vector.broadcast %cst_45 : f32 to vector<16x32xf32>
    %53 = arith.mulf %51, %52 : vector<16x32xf32>
    %c0_46 = arith.constant 0 : index
    %c1_47 = arith.constant 1 : index
    %c0_48 = arith.constant 0 : index
    %c0_49 = arith.constant 0 : index
    %54 = vector.load %arg2[%c0_46, %c1_47, %c0_48, %c0_49] : memref<2x4x128x32xbf16, #tpu.memory_space<vmem>>, vector<1x1x128x32xbf16>
    %55 = vector.shape_cast %54 : vector<1x1x128x32xbf16> to vector<128x32xbf16>
    %cst_50 = arith.constant dense<0.000000e+00> : vector<16x32xf32>
    %56 = tpu.matmul %1, %55, %cst_50 {dimension_numbers = #tpu.dot_dimension_numbers<[1], [0], [0], [1], [0, 0, 1, 1], [], []>} : vector<16x128xbf16>, vector<128x32xbf16>, vector<16x32xf32> -> vector<16x32xf32>
    %c0_51 = arith.constant 0 : index
    %c1_52 = arith.constant 1 : index
    %c0_53 = arith.constant 0 : index
    %c0_54 = arith.constant 0 : index
    %57 = vector.load %arg5[%c0_51, %c1_52, %c0_53, %c0_54] : memref<2x4x1x32xf32, #tpu.memory_space<vmem>>, vector<1x1x1x32xf32>
    %58 = vector.shape_cast %57 : vector<1x1x1x32xf32> to vector<1x32xf32>
    %59 = vector.broadcast %58 : vector<1x32xf32> to vector<16x32xf32>
    %60 = arith.addf %56, %59 : vector<16x32xf32>
    %c0_55 = arith.constant 0 : index
    %c1_56 = arith.constant 1 : index
    %c0_57 = arith.constant 0 : index
    %c0_58 = arith.constant 0 : index
    %61 = vector.load %arg3[%c0_55, %c1_56, %c0_57, %c0_58] : memref<2x4x128x32xbf16, #tpu.memory_space<vmem>>, vector<1x1x128x32xbf16>
    %62 = vector.shape_cast %61 : vector<1x1x128x32xbf16> to vector<128x32xbf16>
    %cst_59 = arith.constant dense<0.000000e+00> : vector<16x32xf32>
    %63 = tpu.matmul %1, %62, %cst_59 {dimension_numbers = #tpu.dot_dimension_numbers<[1], [0], [0], [1], [0, 0, 1, 1], [], []>} : vector<16x128xbf16>, vector<128x32xbf16>, vector<16x32xf32> -> vector<16x32xf32>
    %c0_60 = arith.constant 0 : index
    %c1_61 = arith.constant 1 : index
    %c0_62 = arith.constant 0 : index
    %c0_63 = arith.constant 0 : index
    %64 = vector.load %arg6[%c0_60, %c1_61, %c0_62, %c0_63] : memref<2x4x1x32xf32, #tpu.memory_space<vmem>>, vector<1x1x1x32xf32>
    %65 = vector.shape_cast %64 : vector<1x1x1x32xf32> to vector<1x32xf32>
    %66 = vector.broadcast %65 : vector<1x32xf32> to vector<16x32xf32>
    %67 = arith.addf %63, %66 : vector<16x32xf32>
    %68 = vector.shape_cast %53 : vector<16x32xf32> to vector<2x8x32xf32>
    %69 = vector.shape_cast %60 : vector<16x32xf32> to vector<2x8x32xf32>
    %70 = vector.shape_cast %67 : vector<16x32xf32> to vector<2x8x32xf32>
    "tpu.trace_start"() <{level = 10 : i32, message = "bqd,bkd->bqk"}> : () -> ()
    %cst_64 = arith.constant dense<0.000000e+00> : vector<2x8x8xf32>
    %71 = tpu.matmul %68, %69, %cst_64 {dimension_numbers = #tpu.dot_dimension_numbers<[2], [2], [1], [1], [0, 0, 0, 1, 1, 1], [0], [0]>} : vector<2x8x32xf32>, vector<2x8x32xf32>, vector<2x8x8xf32> -> vector<2x8x8xf32>
    "tpu.trace_stop"() : () -> ()
    %cst_65 = arith.constant dense<0xFF800000> : vector<2x8xf32>
    %72 = vector.multi_reduction <maximumf>, %71, %cst_65 [2] : vector<2x8x8xf32> to vector<2x8xf32>
    %73 = vector.shape_cast %72 : vector<2x8xf32> to vector<2x8x1xf32>
    %74 = vector.broadcast %73 : vector<2x8x1xf32> to vector<2x8x8xf32>
    %75 = arith.subf %71, %74 : vector<2x8x8xf32>
    %76 = math.exp %75 : vector<2x8x8xf32>
    %cst_66 = arith.constant dense<0.000000e+00> : vector<2x8xf32>
    %77 = vector.multi_reduction <add>, %76, %cst_66 [2] : vector<2x8x8xf32> to vector<2x8xf32>
    %78 = vector.shape_cast %77 : vector<2x8xf32> to vector<2x8x1xf32>
    %79 = tpu.reciprocal %78 {approx = true} : vector<2x8x1xf32> -> vector<2x8x1xf32>
    %80 = vector.broadcast %79 : vector<2x8x1xf32> to vector<2x8x8xf32>
    %81 = arith.mulf %76, %80 : vector<2x8x8xf32>
    "tpu.trace_start"() <{level = 10 : i32, message = "bqk,bkd->bqd"}> : () -> ()
    %cst_67 = arith.constant dense<0.000000e+00> : vector<2x8x32xf32>
    %82 = tpu.matmul %81, %70, %cst_67 {dimension_numbers = #tpu.dot_dimension_numbers<[2], [1], [1], [2], [0, 0, 0, 1, 1, 2], [0], [0]>} : vector<2x8x8xf32>, vector<2x8x32xf32>, vector<2x8x32xf32> -> vector<2x8x32xf32>
    "tpu.trace_stop"() : () -> ()
    %83 = vector.shape_cast %82 : vector<2x8x32xf32> to vector<16x32xf32>
    %84 = arith.truncf %83 : vector<16x32xf32> to vector<16x32xbf16>
    %c0_68 = arith.constant 0 : index
    %c1_69 = arith.constant 1 : index
    %c0_70 = arith.constant 0 : index
    %c0_71 = arith.constant 0 : index
    %85 = vector.load %arg7[%c0_68, %c1_69, %c0_70, %c0_71] : memref<2x4x32x128xbf16, #tpu.memory_space<vmem>>, vector<1x1x32x128xbf16>
    %86 = vector.shape_cast %85 : vector<1x1x32x128xbf16> to vector<32x128xbf16>
    %cst_72 = arith.constant dense<0.000000e+00> : vector<16x128xf32>
    %87 = tpu.matmul %84, %86, %cst_72 {dimension_numbers = #tpu.dot_dimension_numbers<[1], [0], [0], [1], [0, 0, 1, 1], [], []>} : vector<16x32xbf16>, vector<32x128xbf16>, vector<16x128xf32> -> vector<16x128xf32>
    %c0_73 = arith.constant 0 : index
    %c2 = arith.constant 2 : index
    %c0_74 = arith.constant 0 : index
    %c0_75 = arith.constant 0 : index
    %88 = vector.load %arg1[%c0_73, %c2, %c0_74, %c0_75] : memref<2x4x128x32xbf16, #tpu.memory_space<vmem>>, vector<1x1x128x32xbf16>
    %89 = vector.shape_cast %88 : vector<1x1x128x32xbf16> to vector<128x32xbf16>
    %cst_76 = arith.constant dense<0.000000e+00> : vector<16x32xf32>
    %90 = tpu.matmul %1, %89, %cst_76 {dimension_numbers = #tpu.dot_dimension_numbers<[1], [0], [0], [1], [0, 0, 1, 1], [], []>} : vector<16x128xbf16>, vector<128x32xbf16>, vector<16x32xf32> -> vector<16x32xf32>
    %c0_77 = arith.constant 0 : index
    %c2_78 = arith.constant 2 : index
    %c0_79 = arith.constant 0 : index
    %c0_80 = arith.constant 0 : index
    %91 = vector.load %arg4[%c0_77, %c2_78, %c0_79, %c0_80] : memref<2x4x1x32xf32, #tpu.memory_space<vmem>>, vector<1x1x1x32xf32>
    %92 = vector.shape_cast %91 : vector<1x1x1x32xf32> to vector<1x32xf32>
    %93 = vector.broadcast %92 : vector<1x32xf32> to vector<16x32xf32>
    %94 = arith.addf %90, %93 : vector<16x32xf32>
    %cst_81 = arith.constant 0.176776692 : f32
    %95 = vector.broadcast %cst_81 : f32 to vector<16x32xf32>
    %96 = arith.mulf %94, %95 : vector<16x32xf32>
    %c0_82 = arith.constant 0 : index
    %c2_83 = arith.constant 2 : index
    %c0_84 = arith.constant 0 : index
    %c0_85 = arith.constant 0 : index
    %97 = vector.load %arg2[%c0_82, %c2_83, %c0_84, %c0_85] : memref<2x4x128x32xbf16, #tpu.memory_space<vmem>>, vector<1x1x128x32xbf16>
    %98 = vector.shape_cast %97 : vector<1x1x128x32xbf16> to vector<128x32xbf16>
    %cst_86 = arith.constant dense<0.000000e+00> : vector<16x32xf32>
    %99 = tpu.matmul %1, %98, %cst_86 {dimension_numbers = #tpu.dot_dimension_numbers<[1], [0], [0], [1], [0, 0, 1, 1], [], []>} : vector<16x128xbf16>, vector<128x32xbf16>, vector<16x32xf32> -> vector<16x32xf32>
    %c0_87 = arith.constant 0 : index
    %c2_88 = arith.constant 2 : index
    %c0_89 = arith.constant 0 : index
    %c0_90 = arith.constant 0 : index
    %100 = vector.load %arg5[%c0_87, %c2_88, %c0_89, %c0_90] : memref<2x4x1x32xf32, #tpu.memory_space<vmem>>, vector<1x1x1x32xf32>
    %101 = vector.shape_cast %100 : vector<1x1x1x32xf32> to vector<1x32xf32>
    %102 = vector.broadcast %101 : vector<1x32xf32> to vector<16x32xf32>
    %103 = arith.addf %99, %102 : vector<16x32xf32>
    %c0_91 = arith.constant 0 : index
    %c2_92 = arith.constant 2 : index
    %c0_93 = arith.constant 0 : index
    %c0_94 = arith.constant 0 : index
    %104 = vector.load %arg3[%c0_91, %c2_92, %c0_93, %c0_94] : memref<2x4x128x32xbf16, #tpu.memory_space<vmem>>, vector<1x1x128x32xbf16>
    %105 = vector.shape_cast %104 : vector<1x1x128x32xbf16> to vector<128x32xbf16>
    %cst_95 = arith.constant dense<0.000000e+00> : vector<16x32xf32>
    %106 = tpu.matmul %1, %105, %cst_95 {dimension_numbers = #tpu.dot_dimension_numbers<[1], [0], [0], [1], [0, 0, 1, 1], [], []>} : vector<16x128xbf16>, vector<128x32xbf16>, vector<16x32xf32> -> vector<16x32xf32>
    %c0_96 = arith.constant 0 : index
    %c2_97 = arith.constant 2 : index
    %c0_98 = arith.constant 0 : index
    %c0_99 = arith.constant 0 : index
    %107 = vector.load %arg6[%c0_96, %c2_97, %c0_98, %c0_99] : memref<2x4x1x32xf32, #tpu.memory_space<vmem>>, vector<1x1x1x32xf32>
    %108 = vector.shape_cast %107 : vector<1x1x1x32xf32> to vector<1x32xf32>
    %109 = vector.broadcast %108 : vector<1x32xf32> to vector<16x32xf32>
    %110 = arith.addf %106, %109 : vector<16x32xf32>
    %111 = vector.shape_cast %96 : vector<16x32xf32> to vector<2x8x32xf32>
    %112 = vector.shape_cast %103 : vector<16x32xf32> to vector<2x8x32xf32>
    %113 = vector.shape_cast %110 : vector<16x32xf32> to vector<2x8x32xf32>
    "tpu.trace_start"() <{level = 10 : i32, message = "bqd,bkd->bqk"}> : () -> ()
    %cst_100 = arith.constant dense<0.000000e+00> : vector<2x8x8xf32>
    %114 = tpu.matmul %111, %112, %cst_100 {dimension_numbers = #tpu.dot_dimension_numbers<[2], [2], [1], [1], [0, 0, 0, 1, 1, 1], [0], [0]>} : vector<2x8x32xf32>, vector<2x8x32xf32>, vector<2x8x8xf32> -> vector<2x8x8xf32>
    "tpu.trace_stop"() : () -> ()
    %cst_101 = arith.constant dense<0xFF800000> : vector<2x8xf32>
    %115 = vector.multi_reduction <maximumf>, %114, %cst_101 [2] : vector<2x8x8xf32> to vector<2x8xf32>
    %116 = vector.shape_cast %115 : vector<2x8xf32> to vector<2x8x1xf32>
    %117 = vector.broadcast %116 : vector<2x8x1xf32> to vector<2x8x8xf32>
    %118 = arith.subf %114, %117 : vector<2x8x8xf32>
    %119 = math.exp %118 : vector<2x8x8xf32>
    %cst_102 = arith.constant dense<0.000000e+00> : vector<2x8xf32>
    %120 = vector.multi_reduction <add>, %119, %cst_102 [2] : vector<2x8x8xf32> to vector<2x8xf32>
    %121 = vector.shape_cast %120 : vector<2x8xf32> to vector<2x8x1xf32>
    %122 = tpu.reciprocal %121 {approx = true} : vector<2x8x1xf32> -> vector<2x8x1xf32>
    %123 = vector.broadcast %122 : vector<2x8x1xf32> to vector<2x8x8xf32>
    %124 = arith.mulf %119, %123 : vector<2x8x8xf32>
    "tpu.trace_start"() <{level = 10 : i32, message = "bqk,bkd->bqd"}> : () -> ()
    %cst_103 = arith.constant dense<0.000000e+00> : vector<2x8x32xf32>
    %125 = tpu.matmul %124, %113, %cst_103 {dimension_numbers = #tpu.dot_dimension_numbers<[2], [1], [1], [2], [0, 0, 0, 1, 1, 2], [0], [0]>} : vector<2x8x8xf32>, vector<2x8x32xf32>, vector<2x8x32xf32> -> vector<2x8x32xf32>
    "tpu.trace_stop"() : () -> ()
    %126 = vector.shape_cast %125 : vector<2x8x32xf32> to vector<16x32xf32>
    %127 = arith.truncf %126 : vector<16x32xf32> to vector<16x32xbf16>
    %c0_104 = arith.constant 0 : index
    %c2_105 = arith.constant 2 : index
    %c0_106 = arith.constant 0 : index
    %c0_107 = arith.constant 0 : index
    %128 = vector.load %arg7[%c0_104, %c2_105, %c0_106, %c0_107] : memref<2x4x32x128xbf16, #tpu.memory_space<vmem>>, vector<1x1x32x128xbf16>
    %129 = vector.shape_cast %128 : vector<1x1x32x128xbf16> to vector<32x128xbf16>
    %cst_108 = arith.constant dense<0.000000e+00> : vector<16x128xf32>
    %130 = tpu.matmul %127, %129, %cst_108 {dimension_numbers = #tpu.dot_dimension_numbers<[1], [0], [0], [1], [0, 0, 1, 1], [], []>} : vector<16x32xbf16>, vector<32x128xbf16>, vector<16x128xf32> -> vector<16x128xf32>
    %c0_109 = arith.constant 0 : index
    %c3 = arith.constant 3 : index
    %c0_110 = arith.constant 0 : index
    %c0_111 = arith.constant 0 : index
    %131 = vector.load %arg1[%c0_109, %c3, %c0_110, %c0_111] : memref<2x4x128x32xbf16, #tpu.memory_space<vmem>>, vector<1x1x128x32xbf16>
    %132 = vector.shape_cast %131 : vector<1x1x128x32xbf16> to vector<128x32xbf16>
    %cst_112 = arith.constant dense<0.000000e+00> : vector<16x32xf32>
    %133 = tpu.matmul %1, %132, %cst_112 {dimension_numbers = #tpu.dot_dimension_numbers<[1], [0], [0], [1], [0, 0, 1, 1], [], []>} : vector<16x128xbf16>, vector<128x32xbf16>, vector<16x32xf32> -> vector<16x32xf32>
    %c0_113 = arith.constant 0 : index
    %c3_114 = arith.constant 3 : index
    %c0_115 = arith.constant 0 : index
    %c0_116 = arith.constant 0 : index
    %134 = vector.load %arg4[%c0_113, %c3_114, %c0_115, %c0_116] : memref<2x4x1x32xf32, #tpu.memory_space<vmem>>, vector<1x1x1x32xf32>
    %135 = vector.shape_cast %134 : vector<1x1x1x32xf32> to vector<1x32xf32>
    %136 = vector.broadcast %135 : vector<1x32xf32> to vector<16x32xf32>
    %137 = arith.addf %133, %136 : vector<16x32xf32>
    %cst_117 = arith.constant 0.176776692 : f32
    %138 = vector.broadcast %cst_117 : f32 to vector<16x32xf32>
    %139 = arith.mulf %137, %138 : vector<16x32xf32>
    %c0_118 = arith.constant 0 : index
    %c3_119 = arith.constant 3 : index
    %c0_120 = arith.constant 0 : index
    %c0_121 = arith.constant 0 : index
    %140 = vector.load %arg2[%c0_118, %c3_119, %c0_120, %c0_121] : memref<2x4x128x32xbf16, #tpu.memory_space<vmem>>, vector<1x1x128x32xbf16>
    %141 = vector.shape_cast %140 : vector<1x1x128x32xbf16> to vector<128x32xbf16>
    %cst_122 = arith.constant dense<0.000000e+00> : vector<16x32xf32>
    %142 = tpu.matmul %1, %141, %cst_122 {dimension_numbers = #tpu.dot_dimension_numbers<[1], [0], [0], [1], [0, 0, 1, 1], [], []>} : vector<16x128xbf16>, vector<128x32xbf16>, vector<16x32xf32> -> vector<16x32xf32>
    %c0_123 = arith.constant 0 : index
    %c3_124 = arith.constant 3 : index
    %c0_125 = arith.constant 0 : index
    %c0_126 = arith.constant 0 : index
    %143 = vector.load %arg5[%c0_123, %c3_124, %c0_125, %c0_126] : memref<2x4x1x32xf32, #tpu.memory_space<vmem>>, vector<1x1x1x32xf32>
    %144 = vector.shape_cast %143 : vector<1x1x1x32xf32> to vector<1x32xf32>
    %145 = vector.broadcast %144 : vector<1x32xf32> to vector<16x32xf32>
    %146 = arith.addf %142, %145 : vector<16x32xf32>
    %c0_127 = arith.constant 0 : index
    %c3_128 = arith.constant 3 : index
    %c0_129 = arith.constant 0 : index
    %c0_130 = arith.constant 0 : index
    %147 = vector.load %arg3[%c0_127, %c3_128, %c0_129, %c0_130] : memref<2x4x128x32xbf16, #tpu.memory_space<vmem>>, vector<1x1x128x32xbf16>
    %148 = vector.shape_cast %147 : vector<1x1x128x32xbf16> to vector<128x32xbf16>
    %cst_131 = arith.constant dense<0.000000e+00> : vector<16x32xf32>
    %149 = tpu.matmul %1, %148, %cst_131 {dimension_numbers = #tpu.dot_dimension_numbers<[1], [0], [0], [1], [0, 0, 1, 1], [], []>} : vector<16x128xbf16>, vector<128x32xbf16>, vector<16x32xf32> -> vector<16x32xf32>
    %c0_132 = arith.constant 0 : index
    %c3_133 = arith.constant 3 : index
    %c0_134 = arith.constant 0 : index
    %c0_135 = arith.constant 0 : index
    %150 = vector.load %arg6[%c0_132, %c3_133, %c0_134, %c0_135] : memref<2x4x1x32xf32, #tpu.memory_space<vmem>>, vector<1x1x1x32xf32>
    %151 = vector.shape_cast %150 : vector<1x1x1x32xf32> to vector<1x32xf32>
    %152 = vector.broadcast %151 : vector<1x32xf32> to vector<16x32xf32>
    %153 = arith.addf %149, %152 : vector<16x32xf32>
    %154 = vector.shape_cast %139 : vector<16x32xf32> to vector<2x8x32xf32>
    %155 = vector.shape_cast %146 : vector<16x32xf32> to vector<2x8x32xf32>
    %156 = vector.shape_cast %153 : vector<16x32xf32> to vector<2x8x32xf32>
    "tpu.trace_start"() <{level = 10 : i32, message = "bqd,bkd->bqk"}> : () -> ()
    %cst_136 = arith.constant dense<0.000000e+00> : vector<2x8x8xf32>
    %157 = tpu.matmul %154, %155, %cst_136 {dimension_numbers = #tpu.dot_dimension_numbers<[2], [2], [1], [1], [0, 0, 0, 1, 1, 1], [0], [0]>} : vector<2x8x32xf32>, vector<2x8x32xf32>, vector<2x8x8xf32> -> vector<2x8x8xf32>
    "tpu.trace_stop"() : () -> ()
    %cst_137 = arith.constant dense<0xFF800000> : vector<2x8xf32>
    %158 = vector.multi_reduction <maximumf>, %157, %cst_137 [2] : vector<2x8x8xf32> to vector<2x8xf32>
    %159 = vector.shape_cast %158 : vector<2x8xf32> to vector<2x8x1xf32>
    %160 = vector.broadcast %159 : vector<2x8x1xf32> to vector<2x8x8xf32>
    %161 = arith.subf %157, %160 : vector<2x8x8xf32>
    %162 = math.exp %161 : vector<2x8x8xf32>
    %cst_138 = arith.constant dense<0.000000e+00> : vector<2x8xf32>
    %163 = vector.multi_reduction <add>, %162, %cst_138 [2] : vector<2x8x8xf32> to vector<2x8xf32>
    %164 = vector.shape_cast %163 : vector<2x8xf32> to vector<2x8x1xf32>
    %165 = tpu.reciprocal %164 {approx = true} : vector<2x8x1xf32> -> vector<2x8x1xf32>
    %166 = vector.broadcast %165 : vector<2x8x1xf32> to vector<2x8x8xf32>
    %167 = arith.mulf %162, %166 : vector<2x8x8xf32>
    "tpu.trace_start"() <{level = 10 : i32, message = "bqk,bkd->bqd"}> : () -> ()
    %cst_139 = arith.constant dense<0.000000e+00> : vector<2x8x32xf32>
    %168 = tpu.matmul %167, %156, %cst_139 {dimension_numbers = #tpu.dot_dimension_numbers<[2], [1], [1], [2], [0, 0, 0, 1, 1, 2], [0], [0]>} : vector<2x8x8xf32>, vector<2x8x32xf32>, vector<2x8x32xf32> -> vector<2x8x32xf32>
    "tpu.trace_stop"() : () -> ()
    %169 = vector.shape_cast %168 : vector<2x8x32xf32> to vector<16x32xf32>
    %170 = arith.truncf %169 : vector<16x32xf32> to vector<16x32xbf16>
    %c0_140 = arith.constant 0 : index
    %c3_141 = arith.constant 3 : index
    %c0_142 = arith.constant 0 : index
    %c0_143 = arith.constant 0 : index
    %171 = vector.load %arg7[%c0_140, %c3_141, %c0_142, %c0_143] : memref<2x4x32x128xbf16, #tpu.memory_space<vmem>>, vector<1x1x32x128xbf16>
    %172 = vector.shape_cast %171 : vector<1x1x32x128xbf16> to vector<32x128xbf16>
    %cst_144 = arith.constant dense<0.000000e+00> : vector<16x128xf32>
    %173 = tpu.matmul %170, %172, %cst_144 {dimension_numbers = #tpu.dot_dimension_numbers<[1], [0], [0], [1], [0, 0, 1, 1], [], []>} : vector<16x32xbf16>, vector<32x128xbf16>, vector<16x128xf32> -> vector<16x128xf32>
    %174 = arith.addf %44, %87 : vector<16x128xf32>
    %175 = arith.addf %174, %130 : vector<16x128xf32>
    %176 = arith.addf %175, %173 : vector<16x128xf32>
    %c0_145 = arith.constant 0 : index
    %c0_146 = arith.constant 0 : index
    %c0_147 = arith.constant 0 : index
    %177 = vector.load %arg8[%c0_145, %c0_146, %c0_147] : memref<2x1x128xf32, #tpu.memory_space<vmem>>, vector<1x1x128xf32>
    %178 = vector.shape_cast %177 : vector<1x1x128xf32> to vector<1x128xf32>
    %179 = vector.broadcast %178 : vector<1x128xf32> to vector<16x128xf32>
    %180 = arith.addf %176, %179 : vector<16x128xf32>
    %181 = arith.addf %0, %180 : vector<16x128xf32>
    %c0_148 = arith.constant 0 : index
    %c0_149 = arith.constant 0 : index
    %c0_150 = arith.constant 0 : index
    %182 = vector.load %arg9[%c0_148, %c0_149, %c0_150] : memref<2x1x128xf32, #tpu.memory_space<vmem>>, vector<1x1x128xf32>
    %183 = vector.shape_cast %182 : vector<1x1x128xf32> to vector<1x128xf32>
    %c0_151 = arith.constant 0 : index
    %c0_152 = arith.constant 0 : index
    %c0_153 = arith.constant 0 : index
    %184 = vector.load %arg10[%c0_151, %c0_152, %c0_153] : memref<2x1x128xf32, #tpu.memory_space<vmem>>, vector<1x1x128xf32>
    %185 = vector.shape_cast %184 : vector<1x1x128xf32> to vector<1x128xf32>
    %cst_154 = arith.constant dense<0.000000e+00> : vector<16xf32>
    %186 = vector.multi_reduction <add>, %181, %cst_154 [1] : vector<16x128xf32> to vector<16xf32>
    %187 = vector.shape_cast %186 : vector<16xf32> to vector<16x1xf32>
    %cst_155 = arith.constant 1.280000e+02 : f32
    %188 = vector.broadcast %cst_155 : f32 to vector<16x1xf32>
    %189 = arith.divf %187, %188 : vector<16x1xf32>
    %190 = vector.broadcast %189 : vector<16x1xf32> to vector<16x128xf32>
    %191 = arith.subf %181, %190 : vector<16x128xf32>
    %192 = arith.mulf %191, %191 : vector<16x128xf32>
    %cst_156 = arith.constant dense<0.000000e+00> : vector<16xf32>
    %193 = vector.multi_reduction <add>, %192, %cst_156 [1] : vector<16x128xf32> to vector<16xf32>
    %194 = vector.shape_cast %193 : vector<16xf32> to vector<16x1xf32>
    %cst_157 = arith.constant 1.280000e+02 : f32
    %195 = vector.broadcast %cst_157 : f32 to vector<16x1xf32>
    %196 = arith.divf %194, %195 : vector<16x1xf32>
    %197 = vector.broadcast %189 : vector<16x1xf32> to vector<16x128xf32>
    %198 = arith.subf %181, %197 : vector<16x128xf32>
    %cst_158 = arith.constant 9.99999974E-6 : f32
    %199 = vector.broadcast %cst_158 : f32 to vector<16x1xf32>
    %200 = arith.addf %196, %199 : vector<16x1xf32>
    %201 = math.rsqrt %200 : vector<16x1xf32>
    %202 = vector.broadcast %201 : vector<16x1xf32> to vector<16x128xf32>
    %203 = arith.mulf %198, %202 : vector<16x128xf32>
    %204 = vector.broadcast %183 : vector<1x128xf32> to vector<16x128xf32>
    %205 = arith.mulf %203, %204 : vector<16x128xf32>
    %206 = vector.broadcast %185 : vector<1x128xf32> to vector<16x128xf32>
    %207 = arith.addf %205, %206 : vector<16x128xf32>
    %208 = arith.truncf %207 : vector<16x128xf32> to vector<16x128xbf16>
    %c0_159 = arith.constant 0 : index
    %c0_160 = arith.constant 0 : index
    %c0_161 = arith.constant 0 : index
    %209 = vector.load %arg11[%c0_159, %c0_160, %c0_161] : memref<2x128x64xbf16, #tpu.memory_space<vmem>>, vector<1x128x64xbf16>
    %210 = vector.shape_cast %209 : vector<1x128x64xbf16> to vector<128x64xbf16>
    %cst_162 = arith.constant dense<0.000000e+00> : vector<16x64xf32>
    %211 = tpu.matmul %208, %210, %cst_162 {dimension_numbers = #tpu.dot_dimension_numbers<[1], [0], [0], [1], [0, 0, 1, 1], [], []>} : vector<16x128xbf16>, vector<128x64xbf16>, vector<16x64xf32> -> vector<16x64xf32>
    %c0_163 = arith.constant 0 : index
    %c0_164 = arith.constant 0 : index
    %c0_165 = arith.constant 0 : index
    %212 = vector.load %arg12[%c0_163, %c0_164, %c0_165] : memref<2x1x64xf32, #tpu.memory_space<vmem>>, vector<1x1x64xf32>
    %213 = vector.shape_cast %212 : vector<1x1x64xf32> to vector<1x64xf32>
    %214 = vector.broadcast %213 : vector<1x64xf32> to vector<16x64xf32>
    %215 = arith.addf %211, %214 : vector<16x64xf32>
    %cst_166 = arith.constant 0.000000e+00 : f32
    %216 = vector.broadcast %cst_166 : f32 to vector<16x64xf32>
    %217 = arith.maximumf %215, %216 : vector<16x64xf32>
    %218 = arith.truncf %217 : vector<16x64xf32> to vector<16x64xbf16>
    %c0_167 = arith.constant 0 : index
    %c0_168 = arith.constant 0 : index
    %c0_169 = arith.constant 0 : index
    %219 = vector.load %arg13[%c0_167, %c0_168, %c0_169] : memref<2x64x128xbf16, #tpu.memory_space<vmem>>, vector<1x64x128xbf16>
    %220 = vector.shape_cast %219 : vector<1x64x128xbf16> to vector<64x128xbf16>
    %cst_170 = arith.constant dense<0.000000e+00> : vector<16x128xf32>
    %221 = tpu.matmul %218, %220, %cst_170 {dimension_numbers = #tpu.dot_dimension_numbers<[1], [0], [0], [1], [0, 0, 1, 1], [], []>} : vector<16x64xbf16>, vector<64x128xbf16>, vector<16x128xf32> -> vector<16x128xf32>
    %c0_171 = arith.constant 0 : index
    %c0_172 = arith.constant 0 : index
    %c0_173 = arith.constant 0 : index
    %222 = vector.load %arg14[%c0_171, %c0_172, %c0_173] : memref<2x1x128xf32, #tpu.memory_space<vmem>>, vector<1x1x128xf32>
    %223 = vector.shape_cast %222 : vector<1x1x128xf32> to vector<1x128xf32>
    %224 = vector.broadcast %223 : vector<1x128xf32> to vector<16x128xf32>
    %225 = arith.addf %221, %224 : vector<16x128xf32>
    %226 = arith.addf %207, %225 : vector<16x128xf32>
    %c0_174 = arith.constant 0 : index
    %c0_175 = arith.constant 0 : index
    %c0_176 = arith.constant 0 : index
    %227 = vector.load %arg15[%c0_174, %c0_175, %c0_176] : memref<2x1x128xf32, #tpu.memory_space<vmem>>, vector<1x1x128xf32>
    %228 = vector.shape_cast %227 : vector<1x1x128xf32> to vector<1x128xf32>
    %c0_177 = arith.constant 0 : index
    %c0_178 = arith.constant 0 : index
    %c0_179 = arith.constant 0 : index
    %229 = vector.load %arg16[%c0_177, %c0_178, %c0_179] : memref<2x1x128xf32, #tpu.memory_space<vmem>>, vector<1x1x128xf32>
    %230 = vector.shape_cast %229 : vector<1x1x128xf32> to vector<1x128xf32>
    %cst_180 = arith.constant dense<0.000000e+00> : vector<16xf32>
    %231 = vector.multi_reduction <add>, %226, %cst_180 [1] : vector<16x128xf32> to vector<16xf32>
    %232 = vector.shape_cast %231 : vector<16xf32> to vector<16x1xf32>
    %cst_181 = arith.constant 1.280000e+02 : f32
    %233 = vector.broadcast %cst_181 : f32 to vector<16x1xf32>
    %234 = arith.divf %232, %233 : vector<16x1xf32>
    %235 = vector.broadcast %234 : vector<16x1xf32> to vector<16x128xf32>
    %236 = arith.subf %226, %235 : vector<16x128xf32>
    %237 = arith.mulf %236, %236 : vector<16x128xf32>
    %cst_182 = arith.constant dense<0.000000e+00> : vector<16xf32>
    %238 = vector.multi_reduction <add>, %237, %cst_182 [1] : vector<16x128xf32> to vector<16xf32>
    %239 = vector.shape_cast %238 : vector<16xf32> to vector<16x1xf32>
    %cst_183 = arith.constant 1.280000e+02 : f32
    %240 = vector.broadcast %cst_183 : f32 to vector<16x1xf32>
    %241 = arith.divf %239, %240 : vector<16x1xf32>
    %242 = vector.broadcast %234 : vector<16x1xf32> to vector<16x128xf32>
    %243 = arith.subf %226, %242 : vector<16x128xf32>
    %cst_184 = arith.constant 9.99999974E-6 : f32
    %244 = vector.broadcast %cst_184 : f32 to vector<16x1xf32>
    %245 = arith.addf %241, %244 : vector<16x1xf32>
    %246 = math.rsqrt %245 : vector<16x1xf32>
    %247 = vector.broadcast %246 : vector<16x1xf32> to vector<16x128xf32>
    %248 = arith.mulf %243, %247 : vector<16x128xf32>
    %249 = vector.broadcast %228 : vector<1x128xf32> to vector<16x128xf32>
    %250 = arith.mulf %248, %249 : vector<16x128xf32>
    %251 = vector.broadcast %230 : vector<1x128xf32> to vector<16x128xf32>
    %252 = arith.addf %250, %251 : vector<16x128xf32>
    %253 = arith.truncf %252 : vector<16x128xf32> to vector<16x128xbf16>
    %c1_185 = arith.constant 1 : index
    %c0_186 = arith.constant 0 : index
    %c0_187 = arith.constant 0 : index
    %c0_188 = arith.constant 0 : index
    %254 = vector.load %arg1[%c1_185, %c0_186, %c0_187, %c0_188] : memref<2x4x128x32xbf16, #tpu.memory_space<vmem>>, vector<1x1x128x32xbf16>
    %255 = vector.shape_cast %254 : vector<1x1x128x32xbf16> to vector<128x32xbf16>
    %cst_189 = arith.constant dense<0.000000e+00> : vector<16x32xf32>
    %256 = tpu.matmul %253, %255, %cst_189 {dimension_numbers = #tpu.dot_dimension_numbers<[1], [0], [0], [1], [0, 0, 1, 1], [], []>} : vector<16x128xbf16>, vector<128x32xbf16>, vector<16x32xf32> -> vector<16x32xf32>
    %c1_190 = arith.constant 1 : index
    %c0_191 = arith.constant 0 : index
    %c0_192 = arith.constant 0 : index
    %c0_193 = arith.constant 0 : index
    %257 = vector.load %arg4[%c1_190, %c0_191, %c0_192, %c0_193] : memref<2x4x1x32xf32, #tpu.memory_space<vmem>>, vector<1x1x1x32xf32>
    %258 = vector.shape_cast %257 : vector<1x1x1x32xf32> to vector<1x32xf32>
    %259 = vector.broadcast %258 : vector<1x32xf32> to vector<16x32xf32>
    %260 = arith.addf %256, %259 : vector<16x32xf32>
    %cst_194 = arith.constant 0.176776692 : f32
    %261 = vector.broadcast %cst_194 : f32 to vector<16x32xf32>
    %262 = arith.mulf %260, %261 : vector<16x32xf32>
    %c1_195 = arith.constant 1 : index
    %c0_196 = arith.constant 0 : index
    %c0_197 = arith.constant 0 : index
    %c0_198 = arith.constant 0 : index
    %263 = vector.load %arg2[%c1_195, %c0_196, %c0_197, %c0_198] : memref<2x4x128x32xbf16, #tpu.memory_space<vmem>>, vector<1x1x128x32xbf16>
    %264 = vector.shape_cast %263 : vector<1x1x128x32xbf16> to vector<128x32xbf16>
    %cst_199 = arith.constant dense<0.000000e+00> : vector<16x32xf32>
    %265 = tpu.matmul %253, %264, %cst_199 {dimension_numbers = #tpu.dot_dimension_numbers<[1], [0], [0], [1], [0, 0, 1, 1], [], []>} : vector<16x128xbf16>, vector<128x32xbf16>, vector<16x32xf32> -> vector<16x32xf32>
    %c1_200 = arith.constant 1 : index
    %c0_201 = arith.constant 0 : index
    %c0_202 = arith.constant 0 : index
    %c0_203 = arith.constant 0 : index
    %266 = vector.load %arg5[%c1_200, %c0_201, %c0_202, %c0_203] : memref<2x4x1x32xf32, #tpu.memory_space<vmem>>, vector<1x1x1x32xf32>
    %267 = vector.shape_cast %266 : vector<1x1x1x32xf32> to vector<1x32xf32>
    %268 = vector.broadcast %267 : vector<1x32xf32> to vector<16x32xf32>
    %269 = arith.addf %265, %268 : vector<16x32xf32>
    %c1_204 = arith.constant 1 : index
    %c0_205 = arith.constant 0 : index
    %c0_206 = arith.constant 0 : index
    %c0_207 = arith.constant 0 : index
    %270 = vector.load %arg3[%c1_204, %c0_205, %c0_206, %c0_207] : memref<2x4x128x32xbf16, #tpu.memory_space<vmem>>, vector<1x1x128x32xbf16>
    %271 = vector.shape_cast %270 : vector<1x1x128x32xbf16> to vector<128x32xbf16>
    %cst_208 = arith.constant dense<0.000000e+00> : vector<16x32xf32>
    %272 = tpu.matmul %253, %271, %cst_208 {dimension_numbers = #tpu.dot_dimension_numbers<[1], [0], [0], [1], [0, 0, 1, 1], [], []>} : vector<16x128xbf16>, vector<128x32xbf16>, vector<16x32xf32> -> vector<16x32xf32>
    %c1_209 = arith.constant 1 : index
    %c0_210 = arith.constant 0 : index
    %c0_211 = arith.constant 0 : index
    %c0_212 = arith.constant 0 : index
    %273 = vector.load %arg6[%c1_209, %c0_210, %c0_211, %c0_212] : memref<2x4x1x32xf32, #tpu.memory_space<vmem>>, vector<1x1x1x32xf32>
    %274 = vector.shape_cast %273 : vector<1x1x1x32xf32> to vector<1x32xf32>
    %275 = vector.broadcast %274 : vector<1x32xf32> to vector<16x32xf32>
    %276 = arith.addf %272, %275 : vector<16x32xf32>
    %277 = vector.shape_cast %262 : vector<16x32xf32> to vector<2x8x32xf32>
    %278 = vector.shape_cast %269 : vector<16x32xf32> to vector<2x8x32xf32>
    %279 = vector.shape_cast %276 : vector<16x32xf32> to vector<2x8x32xf32>
    "tpu.trace_start"() <{level = 10 : i32, message = "bqd,bkd->bqk"}> : () -> ()
    %cst_213 = arith.constant dense<0.000000e+00> : vector<2x8x8xf32>
    %280 = tpu.matmul %277, %278, %cst_213 {dimension_numbers = #tpu.dot_dimension_numbers<[2], [2], [1], [1], [0, 0, 0, 1, 1, 1], [0], [0]>} : vector<2x8x32xf32>, vector<2x8x32xf32>, vector<2x8x8xf32> -> vector<2x8x8xf32>
    "tpu.trace_stop"() : () -> ()
    %cst_214 = arith.constant dense<0xFF800000> : vector<2x8xf32>
    %281 = vector.multi_reduction <maximumf>, %280, %cst_214 [2] : vector<2x8x8xf32> to vector<2x8xf32>
    %282 = vector.shape_cast %281 : vector<2x8xf32> to vector<2x8x1xf32>
    %283 = vector.broadcast %282 : vector<2x8x1xf32> to vector<2x8x8xf32>
    %284 = arith.subf %280, %283 : vector<2x8x8xf32>
    %285 = math.exp %284 : vector<2x8x8xf32>
    %cst_215 = arith.constant dense<0.000000e+00> : vector<2x8xf32>
    %286 = vector.multi_reduction <add>, %285, %cst_215 [2] : vector<2x8x8xf32> to vector<2x8xf32>
    %287 = vector.shape_cast %286 : vector<2x8xf32> to vector<2x8x1xf32>
    %288 = tpu.reciprocal %287 {approx = true} : vector<2x8x1xf32> -> vector<2x8x1xf32>
    %289 = vector.broadcast %288 : vector<2x8x1xf32> to vector<2x8x8xf32>
    %290 = arith.mulf %285, %289 : vector<2x8x8xf32>
    "tpu.trace_start"() <{level = 10 : i32, message = "bqk,bkd->bqd"}> : () -> ()
    %cst_216 = arith.constant dense<0.000000e+00> : vector<2x8x32xf32>
    %291 = tpu.matmul %290, %279, %cst_216 {dimension_numbers = #tpu.dot_dimension_numbers<[2], [1], [1], [2], [0, 0, 0, 1, 1, 2], [0], [0]>} : vector<2x8x8xf32>, vector<2x8x32xf32>, vector<2x8x32xf32> -> vector<2x8x32xf32>
    "tpu.trace_stop"() : () -> ()
    %292 = vector.shape_cast %291 : vector<2x8x32xf32> to vector<16x32xf32>
    %293 = arith.truncf %292 : vector<16x32xf32> to vector<16x32xbf16>
    %c1_217 = arith.constant 1 : index
    %c0_218 = arith.constant 0 : index
    %c0_219 = arith.constant 0 : index
    %c0_220 = arith.constant 0 : index
    %294 = vector.load %arg7[%c1_217, %c0_218, %c0_219, %c0_220] : memref<2x4x32x128xbf16, #tpu.memory_space<vmem>>, vector<1x1x32x128xbf16>
    %295 = vector.shape_cast %294 : vector<1x1x32x128xbf16> to vector<32x128xbf16>
    %cst_221 = arith.constant dense<0.000000e+00> : vector<16x128xf32>
    %296 = tpu.matmul %293, %295, %cst_221 {dimension_numbers = #tpu.dot_dimension_numbers<[1], [0], [0], [1], [0, 0, 1, 1], [], []>} : vector<16x32xbf16>, vector<32x128xbf16>, vector<16x128xf32> -> vector<16x128xf32>
    %c1_222 = arith.constant 1 : index
    %c1_223 = arith.constant 1 : index
    %c0_224 = arith.constant 0 : index
    %c0_225 = arith.constant 0 : index
    %297 = vector.load %arg1[%c1_222, %c1_223, %c0_224, %c0_225] : memref<2x4x128x32xbf16, #tpu.memory_space<vmem>>, vector<1x1x128x32xbf16>
    %298 = vector.shape_cast %297 : vector<1x1x128x32xbf16> to vector<128x32xbf16>
    %cst_226 = arith.constant dense<0.000000e+00> : vector<16x32xf32>
    %299 = tpu.matmul %253, %298, %cst_226 {dimension_numbers = #tpu.dot_dimension_numbers<[1], [0], [0], [1], [0, 0, 1, 1], [], []>} : vector<16x128xbf16>, vector<128x32xbf16>, vector<16x32xf32> -> vector<16x32xf32>
    %c1_227 = arith.constant 1 : index
    %c1_228 = arith.constant 1 : index
    %c0_229 = arith.constant 0 : index
    %c0_230 = arith.constant 0 : index
    %300 = vector.load %arg4[%c1_227, %c1_228, %c0_229, %c0_230] : memref<2x4x1x32xf32, #tpu.memory_space<vmem>>, vector<1x1x1x32xf32>
    %301 = vector.shape_cast %300 : vector<1x1x1x32xf32> to vector<1x32xf32>
    %302 = vector.broadcast %301 : vector<1x32xf32> to vector<16x32xf32>
    %303 = arith.addf %299, %302 : vector<16x32xf32>
    %cst_231 = arith.constant 0.176776692 : f32
    %304 = vector.broadcast %cst_231 : f32 to vector<16x32xf32>
    %305 = arith.mulf %303, %304 : vector<16x32xf32>
    %c1_232 = arith.constant 1 : index
    %c1_233 = arith.constant 1 : index
    %c0_234 = arith.constant 0 : index
    %c0_235 = arith.constant 0 : index
    %306 = vector.load %arg2[%c1_232, %c1_233, %c0_234, %c0_235] : memref<2x4x128x32xbf16, #tpu.memory_space<vmem>>, vector<1x1x128x32xbf16>
    %307 = vector.shape_cast %306 : vector<1x1x128x32xbf16> to vector<128x32xbf16>
    %cst_236 = arith.constant dense<0.000000e+00> : vector<16x32xf32>
    %308 = tpu.matmul %253, %307, %cst_236 {dimension_numbers = #tpu.dot_dimension_numbers<[1], [0], [0], [1], [0, 0, 1, 1], [], []>} : vector<16x128xbf16>, vector<128x32xbf16>, vector<16x32xf32> -> vector<16x32xf32>
    %c1_237 = arith.constant 1 : index
    %c1_238 = arith.constant 1 : index
    %c0_239 = arith.constant 0 : index
    %c0_240 = arith.constant 0 : index
    %309 = vector.load %arg5[%c1_237, %c1_238, %c0_239, %c0_240] : memref<2x4x1x32xf32, #tpu.memory_space<vmem>>, vector<1x1x1x32xf32>
    %310 = vector.shape_cast %309 : vector<1x1x1x32xf32> to vector<1x32xf32>
    %311 = vector.broadcast %310 : vector<1x32xf32> to vector<16x32xf32>
    %312 = arith.addf %308, %311 : vector<16x32xf32>
    %c1_241 = arith.constant 1 : index
    %c1_242 = arith.constant 1 : index
    %c0_243 = arith.constant 0 : index
    %c0_244 = arith.constant 0 : index
    %313 = vector.load %arg3[%c1_241, %c1_242, %c0_243, %c0_244] : memref<2x4x128x32xbf16, #tpu.memory_space<vmem>>, vector<1x1x128x32xbf16>
    %314 = vector.shape_cast %313 : vector<1x1x128x32xbf16> to vector<128x32xbf16>
    %cst_245 = arith.constant dense<0.000000e+00> : vector<16x32xf32>
    %315 = tpu.matmul %253, %314, %cst_245 {dimension_numbers = #tpu.dot_dimension_numbers<[1], [0], [0], [1], [0, 0, 1, 1], [], []>} : vector<16x128xbf16>, vector<128x32xbf16>, vector<16x32xf32> -> vector<16x32xf32>
    %c1_246 = arith.constant 1 : index
    %c1_247 = arith.constant 1 : index
    %c0_248 = arith.constant 0 : index
    %c0_249 = arith.constant 0 : index
    %316 = vector.load %arg6[%c1_246, %c1_247, %c0_248, %c0_249] : memref<2x4x1x32xf32, #tpu.memory_space<vmem>>, vector<1x1x1x32xf32>
    %317 = vector.shape_cast %316 : vector<1x1x1x32xf32> to vector<1x32xf32>
    %318 = vector.broadcast %317 : vector<1x32xf32> to vector<16x32xf32>
    %319 = arith.addf %315, %318 : vector<16x32xf32>
    %320 = vector.shape_cast %305 : vector<16x32xf32> to vector<2x8x32xf32>
    %321 = vector.shape_cast %312 : vector<16x32xf32> to vector<2x8x32xf32>
    %322 = vector.shape_cast %319 : vector<16x32xf32> to vector<2x8x32xf32>
    "tpu.trace_start"() <{level = 10 : i32, message = "bqd,bkd->bqk"}> : () -> ()
    %cst_250 = arith.constant dense<0.000000e+00> : vector<2x8x8xf32>
    %323 = tpu.matmul %320, %321, %cst_250 {dimension_numbers = #tpu.dot_dimension_numbers<[2], [2], [1], [1], [0, 0, 0, 1, 1, 1], [0], [0]>} : vector<2x8x32xf32>, vector<2x8x32xf32>, vector<2x8x8xf32> -> vector<2x8x8xf32>
    "tpu.trace_stop"() : () -> ()
    %cst_251 = arith.constant dense<0xFF800000> : vector<2x8xf32>
    %324 = vector.multi_reduction <maximumf>, %323, %cst_251 [2] : vector<2x8x8xf32> to vector<2x8xf32>
    %325 = vector.shape_cast %324 : vector<2x8xf32> to vector<2x8x1xf32>
    %326 = vector.broadcast %325 : vector<2x8x1xf32> to vector<2x8x8xf32>
    %327 = arith.subf %323, %326 : vector<2x8x8xf32>
    %328 = math.exp %327 : vector<2x8x8xf32>
    %cst_252 = arith.constant dense<0.000000e+00> : vector<2x8xf32>
    %329 = vector.multi_reduction <add>, %328, %cst_252 [2] : vector<2x8x8xf32> to vector<2x8xf32>
    %330 = vector.shape_cast %329 : vector<2x8xf32> to vector<2x8x1xf32>
    %331 = tpu.reciprocal %330 {approx = true} : vector<2x8x1xf32> -> vector<2x8x1xf32>
    %332 = vector.broadcast %331 : vector<2x8x1xf32> to vector<2x8x8xf32>
    %333 = arith.mulf %328, %332 : vector<2x8x8xf32>
    "tpu.trace_start"() <{level = 10 : i32, message = "bqk,bkd->bqd"}> : () -> ()
    %cst_253 = arith.constant dense<0.000000e+00> : vector<2x8x32xf32>
    %334 = tpu.matmul %333, %322, %cst_253 {dimension_numbers = #tpu.dot_dimension_numbers<[2], [1], [1], [2], [0, 0, 0, 1, 1, 2], [0], [0]>} : vector<2x8x8xf32>, vector<2x8x32xf32>, vector<2x8x32xf32> -> vector<2x8x32xf32>
    "tpu.trace_stop"() : () -> ()
    %335 = vector.shape_cast %334 : vector<2x8x32xf32> to vector<16x32xf32>
    %336 = arith.truncf %335 : vector<16x32xf32> to vector<16x32xbf16>
    %c1_254 = arith.constant 1 : index
    %c1_255 = arith.constant 1 : index
    %c0_256 = arith.constant 0 : index
    %c0_257 = arith.constant 0 : index
    %337 = vector.load %arg7[%c1_254, %c1_255, %c0_256, %c0_257] : memref<2x4x32x128xbf16, #tpu.memory_space<vmem>>, vector<1x1x32x128xbf16>
    %338 = vector.shape_cast %337 : vector<1x1x32x128xbf16> to vector<32x128xbf16>
    %cst_258 = arith.constant dense<0.000000e+00> : vector<16x128xf32>
    %339 = tpu.matmul %336, %338, %cst_258 {dimension_numbers = #tpu.dot_dimension_numbers<[1], [0], [0], [1], [0, 0, 1, 1], [], []>} : vector<16x32xbf16>, vector<32x128xbf16>, vector<16x128xf32> -> vector<16x128xf32>
    %c1_259 = arith.constant 1 : index
    %c2_260 = arith.constant 2 : index
    %c0_261 = arith.constant 0 : index
    %c0_262 = arith.constant 0 : index
    %340 = vector.load %arg1[%c1_259, %c2_260, %c0_261, %c0_262] : memref<2x4x128x32xbf16, #tpu.memory_space<vmem>>, vector<1x1x128x32xbf16>
    %341 = vector.shape_cast %340 : vector<1x1x128x32xbf16> to vector<128x32xbf16>
    %cst_263 = arith.constant dense<0.000000e+00> : vector<16x32xf32>
    %342 = tpu.matmul %253, %341, %cst_263 {dimension_numbers = #tpu.dot_dimension_numbers<[1], [0], [0], [1], [0, 0, 1, 1], [], []>} : vector<16x128xbf16>, vector<128x32xbf16>, vector<16x32xf32> -> vector<16x32xf32>
    %c1_264 = arith.constant 1 : index
    %c2_265 = arith.constant 2 : index
    %c0_266 = arith.constant 0 : index
    %c0_267 = arith.constant 0 : index
    %343 = vector.load %arg4[%c1_264, %c2_265, %c0_266, %c0_267] : memref<2x4x1x32xf32, #tpu.memory_space<vmem>>, vector<1x1x1x32xf32>
    %344 = vector.shape_cast %343 : vector<1x1x1x32xf32> to vector<1x32xf32>
    %345 = vector.broadcast %344 : vector<1x32xf32> to vector<16x32xf32>
    %346 = arith.addf %342, %345 : vector<16x32xf32>
    %cst_268 = arith.constant 0.176776692 : f32
    %347 = vector.broadcast %cst_268 : f32 to vector<16x32xf32>
    %348 = arith.mulf %346, %347 : vector<16x32xf32>
    %c1_269 = arith.constant 1 : index
    %c2_270 = arith.constant 2 : index
    %c0_271 = arith.constant 0 : index
    %c0_272 = arith.constant 0 : index
    %349 = vector.load %arg2[%c1_269, %c2_270, %c0_271, %c0_272] : memref<2x4x128x32xbf16, #tpu.memory_space<vmem>>, vector<1x1x128x32xbf16>
    %350 = vector.shape_cast %349 : vector<1x1x128x32xbf16> to vector<128x32xbf16>
    %cst_273 = arith.constant dense<0.000000e+00> : vector<16x32xf32>
    %351 = tpu.matmul %253, %350, %cst_273 {dimension_numbers = #tpu.dot_dimension_numbers<[1], [0], [0], [1], [0, 0, 1, 1], [], []>} : vector<16x128xbf16>, vector<128x32xbf16>, vector<16x32xf32> -> vector<16x32xf32>
    %c1_274 = arith.constant 1 : index
    %c2_275 = arith.constant 2 : index
    %c0_276 = arith.constant 0 : index
    %c0_277 = arith.constant 0 : index
    %352 = vector.load %arg5[%c1_274, %c2_275, %c0_276, %c0_277] : memref<2x4x1x32xf32, #tpu.memory_space<vmem>>, vector<1x1x1x32xf32>
    %353 = vector.shape_cast %352 : vector<1x1x1x32xf32> to vector<1x32xf32>
    %354 = vector.broadcast %353 : vector<1x32xf32> to vector<16x32xf32>
    %355 = arith.addf %351, %354 : vector<16x32xf32>
    %c1_278 = arith.constant 1 : index
    %c2_279 = arith.constant 2 : index
    %c0_280 = arith.constant 0 : index
    %c0_281 = arith.constant 0 : index
    %356 = vector.load %arg3[%c1_278, %c2_279, %c0_280, %c0_281] : memref<2x4x128x32xbf16, #tpu.memory_space<vmem>>, vector<1x1x128x32xbf16>
    %357 = vector.shape_cast %356 : vector<1x1x128x32xbf16> to vector<128x32xbf16>
    %cst_282 = arith.constant dense<0.000000e+00> : vector<16x32xf32>
    %358 = tpu.matmul %253, %357, %cst_282 {dimension_numbers = #tpu.dot_dimension_numbers<[1], [0], [0], [1], [0, 0, 1, 1], [], []>} : vector<16x128xbf16>, vector<128x32xbf16>, vector<16x32xf32> -> vector<16x32xf32>
    %c1_283 = arith.constant 1 : index
    %c2_284 = arith.constant 2 : index
    %c0_285 = arith.constant 0 : index
    %c0_286 = arith.constant 0 : index
    %359 = vector.load %arg6[%c1_283, %c2_284, %c0_285, %c0_286] : memref<2x4x1x32xf32, #tpu.memory_space<vmem>>, vector<1x1x1x32xf32>
    %360 = vector.shape_cast %359 : vector<1x1x1x32xf32> to vector<1x32xf32>
    %361 = vector.broadcast %360 : vector<1x32xf32> to vector<16x32xf32>
    %362 = arith.addf %358, %361 : vector<16x32xf32>
    %363 = vector.shape_cast %348 : vector<16x32xf32> to vector<2x8x32xf32>
    %364 = vector.shape_cast %355 : vector<16x32xf32> to vector<2x8x32xf32>
    %365 = vector.shape_cast %362 : vector<16x32xf32> to vector<2x8x32xf32>
    "tpu.trace_start"() <{level = 10 : i32, message = "bqd,bkd->bqk"}> : () -> ()
    %cst_287 = arith.constant dense<0.000000e+00> : vector<2x8x8xf32>
    %366 = tpu.matmul %363, %364, %cst_287 {dimension_numbers = #tpu.dot_dimension_numbers<[2], [2], [1], [1], [0, 0, 0, 1, 1, 1], [0], [0]>} : vector<2x8x32xf32>, vector<2x8x32xf32>, vector<2x8x8xf32> -> vector<2x8x8xf32>
    "tpu.trace_stop"() : () -> ()
    %cst_288 = arith.constant dense<0xFF800000> : vector<2x8xf32>
    %367 = vector.multi_reduction <maximumf>, %366, %cst_288 [2] : vector<2x8x8xf32> to vector<2x8xf32>
    %368 = vector.shape_cast %367 : vector<2x8xf32> to vector<2x8x1xf32>
    %369 = vector.broadcast %368 : vector<2x8x1xf32> to vector<2x8x8xf32>
    %370 = arith.subf %366, %369 : vector<2x8x8xf32>
    %371 = math.exp %370 : vector<2x8x8xf32>
    %cst_289 = arith.constant dense<0.000000e+00> : vector<2x8xf32>
    %372 = vector.multi_reduction <add>, %371, %cst_289 [2] : vector<2x8x8xf32> to vector<2x8xf32>
    %373 = vector.shape_cast %372 : vector<2x8xf32> to vector<2x8x1xf32>
    %374 = tpu.reciprocal %373 {approx = true} : vector<2x8x1xf32> -> vector<2x8x1xf32>
    %375 = vector.broadcast %374 : vector<2x8x1xf32> to vector<2x8x8xf32>
    %376 = arith.mulf %371, %375 : vector<2x8x8xf32>
    "tpu.trace_start"() <{level = 10 : i32, message = "bqk,bkd->bqd"}> : () -> ()
    %cst_290 = arith.constant dense<0.000000e+00> : vector<2x8x32xf32>
    %377 = tpu.matmul %376, %365, %cst_290 {dimension_numbers = #tpu.dot_dimension_numbers<[2], [1], [1], [2], [0, 0, 0, 1, 1, 2], [0], [0]>} : vector<2x8x8xf32>, vector<2x8x32xf32>, vector<2x8x32xf32> -> vector<2x8x32xf32>
    "tpu.trace_stop"() : () -> ()
    %378 = vector.shape_cast %377 : vector<2x8x32xf32> to vector<16x32xf32>
    %379 = arith.truncf %378 : vector<16x32xf32> to vector<16x32xbf16>
    %c1_291 = arith.constant 1 : index
    %c2_292 = arith.constant 2 : index
    %c0_293 = arith.constant 0 : index
    %c0_294 = arith.constant 0 : index
    %380 = vector.load %arg7[%c1_291, %c2_292, %c0_293, %c0_294] : memref<2x4x32x128xbf16, #tpu.memory_space<vmem>>, vector<1x1x32x128xbf16>
    %381 = vector.shape_cast %380 : vector<1x1x32x128xbf16> to vector<32x128xbf16>
    %cst_295 = arith.constant dense<0.000000e+00> : vector<16x128xf32>
    %382 = tpu.matmul %379, %381, %cst_295 {dimension_numbers = #tpu.dot_dimension_numbers<[1], [0], [0], [1], [0, 0, 1, 1], [], []>} : vector<16x32xbf16>, vector<32x128xbf16>, vector<16x128xf32> -> vector<16x128xf32>
    %c1_296 = arith.constant 1 : index
    %c3_297 = arith.constant 3 : index
    %c0_298 = arith.constant 0 : index
    %c0_299 = arith.constant 0 : index
    %383 = vector.load %arg1[%c1_296, %c3_297, %c0_298, %c0_299] : memref<2x4x128x32xbf16, #tpu.memory_space<vmem>>, vector<1x1x128x32xbf16>
    %384 = vector.shape_cast %383 : vector<1x1x128x32xbf16> to vector<128x32xbf16>
    %cst_300 = arith.constant dense<0.000000e+00> : vector<16x32xf32>
    %385 = tpu.matmul %253, %384, %cst_300 {dimension_numbers = #tpu.dot_dimension_numbers<[1], [0], [0], [1], [0, 0, 1, 1], [], []>} : vector<16x128xbf16>, vector<128x32xbf16>, vector<16x32xf32> -> vector<16x32xf32>
    %c1_301 = arith.constant 1 : index
    %c3_302 = arith.constant 3 : index
    %c0_303 = arith.constant 0 : index
    %c0_304 = arith.constant 0 : index
    %386 = vector.load %arg4[%c1_301, %c3_302, %c0_303, %c0_304] : memref<2x4x1x32xf32, #tpu.memory_space<vmem>>, vector<1x1x1x32xf32>
    %387 = vector.shape_cast %386 : vector<1x1x1x32xf32> to vector<1x32xf32>
    %388 = vector.broadcast %387 : vector<1x32xf32> to vector<16x32xf32>
    %389 = arith.addf %385, %388 : vector<16x32xf32>
    %cst_305 = arith.constant 0.176776692 : f32
    %390 = vector.broadcast %cst_305 : f32 to vector<16x32xf32>
    %391 = arith.mulf %389, %390 : vector<16x32xf32>
    %c1_306 = arith.constant 1 : index
    %c3_307 = arith.constant 3 : index
    %c0_308 = arith.constant 0 : index
    %c0_309 = arith.constant 0 : index
    %392 = vector.load %arg2[%c1_306, %c3_307, %c0_308, %c0_309] : memref<2x4x128x32xbf16, #tpu.memory_space<vmem>>, vector<1x1x128x32xbf16>
    %393 = vector.shape_cast %392 : vector<1x1x128x32xbf16> to vector<128x32xbf16>
    %cst_310 = arith.constant dense<0.000000e+00> : vector<16x32xf32>
    %394 = tpu.matmul %253, %393, %cst_310 {dimension_numbers = #tpu.dot_dimension_numbers<[1], [0], [0], [1], [0, 0, 1, 1], [], []>} : vector<16x128xbf16>, vector<128x32xbf16>, vector<16x32xf32> -> vector<16x32xf32>
    %c1_311 = arith.constant 1 : index
    %c3_312 = arith.constant 3 : index
    %c0_313 = arith.constant 0 : index
    %c0_314 = arith.constant 0 : index
    %395 = vector.load %arg5[%c1_311, %c3_312, %c0_313, %c0_314] : memref<2x4x1x32xf32, #tpu.memory_space<vmem>>, vector<1x1x1x32xf32>
    %396 = vector.shape_cast %395 : vector<1x1x1x32xf32> to vector<1x32xf32>
    %397 = vector.broadcast %396 : vector<1x32xf32> to vector<16x32xf32>
    %398 = arith.addf %394, %397 : vector<16x32xf32>
    %c1_315 = arith.constant 1 : index
    %c3_316 = arith.constant 3 : index
    %c0_317 = arith.constant 0 : index
    %c0_318 = arith.constant 0 : index
    %399 = vector.load %arg3[%c1_315, %c3_316, %c0_317, %c0_318] : memref<2x4x128x32xbf16, #tpu.memory_space<vmem>>, vector<1x1x128x32xbf16>
    %400 = vector.shape_cast %399 : vector<1x1x128x32xbf16> to vector<128x32xbf16>
    %cst_319 = arith.constant dense<0.000000e+00> : vector<16x32xf32>
    %401 = tpu.matmul %253, %400, %cst_319 {dimension_numbers = #tpu.dot_dimension_numbers<[1], [0], [0], [1], [0, 0, 1, 1], [], []>} : vector<16x128xbf16>, vector<128x32xbf16>, vector<16x32xf32> -> vector<16x32xf32>
    %c1_320 = arith.constant 1 : index
    %c3_321 = arith.constant 3 : index
    %c0_322 = arith.constant 0 : index
    %c0_323 = arith.constant 0 : index
    %402 = vector.load %arg6[%c1_320, %c3_321, %c0_322, %c0_323] : memref<2x4x1x32xf32, #tpu.memory_space<vmem>>, vector<1x1x1x32xf32>
    %403 = vector.shape_cast %402 : vector<1x1x1x32xf32> to vector<1x32xf32>
    %404 = vector.broadcast %403 : vector<1x32xf32> to vector<16x32xf32>
    %405 = arith.addf %401, %404 : vector<16x32xf32>
    %406 = vector.shape_cast %391 : vector<16x32xf32> to vector<2x8x32xf32>
    %407 = vector.shape_cast %398 : vector<16x32xf32> to vector<2x8x32xf32>
    %408 = vector.shape_cast %405 : vector<16x32xf32> to vector<2x8x32xf32>
    "tpu.trace_start"() <{level = 10 : i32, message = "bqd,bkd->bqk"}> : () -> ()
    %cst_324 = arith.constant dense<0.000000e+00> : vector<2x8x8xf32>
    %409 = tpu.matmul %406, %407, %cst_324 {dimension_numbers = #tpu.dot_dimension_numbers<[2], [2], [1], [1], [0, 0, 0, 1, 1, 1], [0], [0]>} : vector<2x8x32xf32>, vector<2x8x32xf32>, vector<2x8x8xf32> -> vector<2x8x8xf32>
    "tpu.trace_stop"() : () -> ()
    %cst_325 = arith.constant dense<0xFF800000> : vector<2x8xf32>
    %410 = vector.multi_reduction <maximumf>, %409, %cst_325 [2] : vector<2x8x8xf32> to vector<2x8xf32>
    %411 = vector.shape_cast %410 : vector<2x8xf32> to vector<2x8x1xf32>
    %412 = vector.broadcast %411 : vector<2x8x1xf32> to vector<2x8x8xf32>
    %413 = arith.subf %409, %412 : vector<2x8x8xf32>
    %414 = math.exp %413 : vector<2x8x8xf32>
    %cst_326 = arith.constant dense<0.000000e+00> : vector<2x8xf32>
    %415 = vector.multi_reduction <add>, %414, %cst_326 [2] : vector<2x8x8xf32> to vector<2x8xf32>
    %416 = vector.shape_cast %415 : vector<2x8xf32> to vector<2x8x1xf32>
    %417 = tpu.reciprocal %416 {approx = true} : vector<2x8x1xf32> -> vector<2x8x1xf32>
    %418 = vector.broadcast %417 : vector<2x8x1xf32> to vector<2x8x8xf32>
    %419 = arith.mulf %414, %418 : vector<2x8x8xf32>
    "tpu.trace_start"() <{level = 10 : i32, message = "bqk,bkd->bqd"}> : () -> ()
    %cst_327 = arith.constant dense<0.000000e+00> : vector<2x8x32xf32>
    %420 = tpu.matmul %419, %408, %cst_327 {dimension_numbers = #tpu.dot_dimension_numbers<[2], [1], [1], [2], [0, 0, 0, 1, 1, 2], [0], [0]>} : vector<2x8x8xf32>, vector<2x8x32xf32>, vector<2x8x32xf32> -> vector<2x8x32xf32>
    "tpu.trace_stop"() : () -> ()
    %421 = vector.shape_cast %420 : vector<2x8x32xf32> to vector<16x32xf32>
    %422 = arith.truncf %421 : vector<16x32xf32> to vector<16x32xbf16>
    %c1_328 = arith.constant 1 : index
    %c3_329 = arith.constant 3 : index
    %c0_330 = arith.constant 0 : index
    %c0_331 = arith.constant 0 : index
    %423 = vector.load %arg7[%c1_328, %c3_329, %c0_330, %c0_331] : memref<2x4x32x128xbf16, #tpu.memory_space<vmem>>, vector<1x1x32x128xbf16>
    %424 = vector.shape_cast %423 : vector<1x1x32x128xbf16> to vector<32x128xbf16>
    %cst_332 = arith.constant dense<0.000000e+00> : vector<16x128xf32>
    %425 = tpu.matmul %422, %424, %cst_332 {dimension_numbers = #tpu.dot_dimension_numbers<[1], [0], [0], [1], [0, 0, 1, 1], [], []>} : vector<16x32xbf16>, vector<32x128xbf16>, vector<16x128xf32> -> vector<16x128xf32>
    %426 = arith.addf %296, %339 : vector<16x128xf32>
    %427 = arith.addf %426, %382 : vector<16x128xf32>
    %428 = arith.addf %427, %425 : vector<16x128xf32>
    %c1_333 = arith.constant 1 : index
    %c0_334 = arith.constant 0 : index
    %c0_335 = arith.constant 0 : index
    %429 = vector.load %arg8[%c1_333, %c0_334, %c0_335] : memref<2x1x128xf32, #tpu.memory_space<vmem>>, vector<1x1x128xf32>
    %430 = vector.shape_cast %429 : vector<1x1x128xf32> to vector<1x128xf32>
    %431 = vector.broadcast %430 : vector<1x128xf32> to vector<16x128xf32>
    %432 = arith.addf %428, %431 : vector<16x128xf32>
    %433 = arith.addf %252, %432 : vector<16x128xf32>
    %c1_336 = arith.constant 1 : index
    %c0_337 = arith.constant 0 : index
    %c0_338 = arith.constant 0 : index
    %434 = vector.load %arg9[%c1_336, %c0_337, %c0_338] : memref<2x1x128xf32, #tpu.memory_space<vmem>>, vector<1x1x128xf32>
    %435 = vector.shape_cast %434 : vector<1x1x128xf32> to vector<1x128xf32>
    %c1_339 = arith.constant 1 : index
    %c0_340 = arith.constant 0 : index
    %c0_341 = arith.constant 0 : index
    %436 = vector.load %arg10[%c1_339, %c0_340, %c0_341] : memref<2x1x128xf32, #tpu.memory_space<vmem>>, vector<1x1x128xf32>
    %437 = vector.shape_cast %436 : vector<1x1x128xf32> to vector<1x128xf32>
    %cst_342 = arith.constant dense<0.000000e+00> : vector<16xf32>
    %438 = vector.multi_reduction <add>, %433, %cst_342 [1] : vector<16x128xf32> to vector<16xf32>
    %439 = vector.shape_cast %438 : vector<16xf32> to vector<16x1xf32>
    %cst_343 = arith.constant 1.280000e+02 : f32
    %440 = vector.broadcast %cst_343 : f32 to vector<16x1xf32>
    %441 = arith.divf %439, %440 : vector<16x1xf32>
    %442 = vector.broadcast %441 : vector<16x1xf32> to vector<16x128xf32>
    %443 = arith.subf %433, %442 : vector<16x128xf32>
    %444 = arith.mulf %443, %443 : vector<16x128xf32>
    %cst_344 = arith.constant dense<0.000000e+00> : vector<16xf32>
    %445 = vector.multi_reduction <add>, %444, %cst_344 [1] : vector<16x128xf32> to vector<16xf32>
    %446 = vector.shape_cast %445 : vector<16xf32> to vector<16x1xf32>
    %cst_345 = arith.constant 1.280000e+02 : f32
    %447 = vector.broadcast %cst_345 : f32 to vector<16x1xf32>
    %448 = arith.divf %446, %447 : vector<16x1xf32>
    %449 = vector.broadcast %441 : vector<16x1xf32> to vector<16x128xf32>
    %450 = arith.subf %433, %449 : vector<16x128xf32>
    %cst_346 = arith.constant 9.99999974E-6 : f32
    %451 = vector.broadcast %cst_346 : f32 to vector<16x1xf32>
    %452 = arith.addf %448, %451 : vector<16x1xf32>
    %453 = math.rsqrt %452 : vector<16x1xf32>
    %454 = vector.broadcast %453 : vector<16x1xf32> to vector<16x128xf32>
    %455 = arith.mulf %450, %454 : vector<16x128xf32>
    %456 = vector.broadcast %435 : vector<1x128xf32> to vector<16x128xf32>
    %457 = arith.mulf %455, %456 : vector<16x128xf32>
    %458 = vector.broadcast %437 : vector<1x128xf32> to vector<16x128xf32>
    %459 = arith.addf %457, %458 : vector<16x128xf32>
    %460 = arith.truncf %459 : vector<16x128xf32> to vector<16x128xbf16>
    %c1_347 = arith.constant 1 : index
    %c0_348 = arith.constant 0 : index
    %c0_349 = arith.constant 0 : index
    %461 = vector.load %arg11[%c1_347, %c0_348, %c0_349] : memref<2x128x64xbf16, #tpu.memory_space<vmem>>, vector<1x128x64xbf16>
    %462 = vector.shape_cast %461 : vector<1x128x64xbf16> to vector<128x64xbf16>
    %cst_350 = arith.constant dense<0.000000e+00> : vector<16x64xf32>
    %463 = tpu.matmul %460, %462, %cst_350 {dimension_numbers = #tpu.dot_dimension_numbers<[1], [0], [0], [1], [0, 0, 1, 1], [], []>} : vector<16x128xbf16>, vector<128x64xbf16>, vector<16x64xf32> -> vector<16x64xf32>
    %c1_351 = arith.constant 1 : index
    %c0_352 = arith.constant 0 : index
    %c0_353 = arith.constant 0 : index
    %464 = vector.load %arg12[%c1_351, %c0_352, %c0_353] : memref<2x1x64xf32, #tpu.memory_space<vmem>>, vector<1x1x64xf32>
    %465 = vector.shape_cast %464 : vector<1x1x64xf32> to vector<1x64xf32>
    %466 = vector.broadcast %465 : vector<1x64xf32> to vector<16x64xf32>
    %467 = arith.addf %463, %466 : vector<16x64xf32>
    %cst_354 = arith.constant 0.000000e+00 : f32
    %468 = vector.broadcast %cst_354 : f32 to vector<16x64xf32>
    %469 = arith.maximumf %467, %468 : vector<16x64xf32>
    %470 = arith.truncf %469 : vector<16x64xf32> to vector<16x64xbf16>
    %c1_355 = arith.constant 1 : index
    %c0_356 = arith.constant 0 : index
    %c0_357 = arith.constant 0 : index
    %471 = vector.load %arg13[%c1_355, %c0_356, %c0_357] : memref<2x64x128xbf16, #tpu.memory_space<vmem>>, vector<1x64x128xbf16>
    %472 = vector.shape_cast %471 : vector<1x64x128xbf16> to vector<64x128xbf16>
    %cst_358 = arith.constant dense<0.000000e+00> : vector<16x128xf32>
    %473 = tpu.matmul %470, %472, %cst_358 {dimension_numbers = #tpu.dot_dimension_numbers<[1], [0], [0], [1], [0, 0, 1, 1], [], []>} : vector<16x64xbf16>, vector<64x128xbf16>, vector<16x128xf32> -> vector<16x128xf32>
    %c1_359 = arith.constant 1 : index
    %c0_360 = arith.constant 0 : index
    %c0_361 = arith.constant 0 : index
    %474 = vector.load %arg14[%c1_359, %c0_360, %c0_361] : memref<2x1x128xf32, #tpu.memory_space<vmem>>, vector<1x1x128xf32>
    %475 = vector.shape_cast %474 : vector<1x1x128xf32> to vector<1x128xf32>
    %476 = vector.broadcast %475 : vector<1x128xf32> to vector<16x128xf32>
    %477 = arith.addf %473, %476 : vector<16x128xf32>
    %478 = arith.addf %459, %477 : vector<16x128xf32>
    %c1_362 = arith.constant 1 : index
    %c0_363 = arith.constant 0 : index
    %c0_364 = arith.constant 0 : index
    %479 = vector.load %arg15[%c1_362, %c0_363, %c0_364] : memref<2x1x128xf32, #tpu.memory_space<vmem>>, vector<1x1x128xf32>
    %480 = vector.shape_cast %479 : vector<1x1x128xf32> to vector<1x128xf32>
    %c1_365 = arith.constant 1 : index
    %c0_366 = arith.constant 0 : index
    %c0_367 = arith.constant 0 : index
    %481 = vector.load %arg16[%c1_365, %c0_366, %c0_367] : memref<2x1x128xf32, #tpu.memory_space<vmem>>, vector<1x1x128xf32>
    %482 = vector.shape_cast %481 : vector<1x1x128xf32> to vector<1x128xf32>
    %cst_368 = arith.constant dense<0.000000e+00> : vector<16xf32>
    %483 = vector.multi_reduction <add>, %478, %cst_368 [1] : vector<16x128xf32> to vector<16xf32>
    %484 = vector.shape_cast %483 : vector<16xf32> to vector<16x1xf32>
    %cst_369 = arith.constant 1.280000e+02 : f32
    %485 = vector.broadcast %cst_369 : f32 to vector<16x1xf32>
    %486 = arith.divf %484, %485 : vector<16x1xf32>
    %487 = vector.broadcast %486 : vector<16x1xf32> to vector<16x128xf32>
    %488 = arith.subf %478, %487 : vector<16x128xf32>
    %489 = arith.mulf %488, %488 : vector<16x128xf32>
    %cst_370 = arith.constant dense<0.000000e+00> : vector<16xf32>
    %490 = vector.multi_reduction <add>, %489, %cst_370 [1] : vector<16x128xf32> to vector<16xf32>
    %491 = vector.shape_cast %490 : vector<16xf32> to vector<16x1xf32>
    %cst_371 = arith.constant 1.280000e+02 : f32
    %492 = vector.broadcast %cst_371 : f32 to vector<16x1xf32>
    %493 = arith.divf %491, %492 : vector<16x1xf32>
    %494 = vector.broadcast %486 : vector<16x1xf32> to vector<16x128xf32>
    %495 = arith.subf %478, %494 : vector<16x128xf32>
    %cst_372 = arith.constant 9.99999974E-6 : f32
    %496 = vector.broadcast %cst_372 : f32 to vector<16x1xf32>
    %497 = arith.addf %493, %496 : vector<16x1xf32>
    %498 = math.rsqrt %497 : vector<16x1xf32>
    %499 = vector.broadcast %498 : vector<16x1xf32> to vector<16x128xf32>
    %500 = arith.mulf %495, %499 : vector<16x128xf32>
    %501 = vector.broadcast %480 : vector<1x128xf32> to vector<16x128xf32>
    %502 = arith.mulf %500, %501 : vector<16x128xf32>
    %503 = vector.broadcast %482 : vector<1x128xf32> to vector<16x128xf32>
    %504 = arith.addf %502, %503 : vector<16x128xf32>
    %505 = vector.shape_cast %504 : vector<16x128xf32> to vector<2x8x128xf32>
    %cst_373 = arith.constant dense<0.000000e+00> : vector<2x128xf32>
    %506 = vector.multi_reduction <add>, %505, %cst_373 [1] : vector<2x8x128xf32> to vector<2x128xf32>
    %cst_374 = arith.constant 8.000000e+00 : f32
    %507 = vector.broadcast %cst_374 : f32 to vector<2x128xf32>
    %508 = arith.divf %506, %507 : vector<2x128xf32>
    %cst_375 = arith.constant dense<0xFF800000> : vector<2x128xf32>
    %509 = vector.multi_reduction <maximumf>, %505, %cst_375 [1] : vector<2x8x128xf32> to vector<2x128xf32>
    %510 = tpu.concatenate %508, %509 in 1 : vector<2x128xf32>, vector<2x128xf32> -> vector<2x256xf32>
    %511 = arith.truncf %510 : vector<2x256xf32> to vector<2x256xbf16>
    %c0_376 = arith.constant 0 : index
    %c0_377 = arith.constant 0 : index
    %512 = vector.load %arg17[%c0_376, %c0_377] : memref<256x128xbf16, #tpu.memory_space<vmem>>, vector<256x128xbf16>
    %cst_378 = arith.constant dense<0.000000e+00> : vector<2x128xf32>
    %513 = tpu.matmul %511, %512, %cst_378 {dimension_numbers = #tpu.dot_dimension_numbers<[1], [0], [0], [1], [0, 0, 1, 1], [], []>} : vector<2x256xbf16>, vector<256x128xbf16>, vector<2x128xf32> -> vector<2x128xf32>
    %c0_379 = arith.constant 0 : index
    %c0_380 = arith.constant 0 : index
    %514 = vector.load %arg18[%c0_379, %c0_380] : memref<1x128xf32, #tpu.memory_space<vmem>>, vector<1x128xf32>
    %515 = vector.broadcast %514 : vector<1x128xf32> to vector<2x128xf32>
    %516 = arith.addf %513, %515 : vector<2x128xf32>
    %cst_381 = arith.constant 0.000000e+00 : f32
    %517 = vector.broadcast %cst_381 : f32 to vector<2x128xf32>
    %518 = arith.maximumf %516, %517 : vector<2x128xf32>
    %519 = arith.truncf %518 : vector<2x128xf32> to vector<2x128xbf16>
    %c0_382 = arith.constant 0 : index
    %c0_383 = arith.constant 0 : index
    %520 = vector.load %arg19[%c0_382, %c0_383] : memref<128x64xbf16, #tpu.memory_space<vmem>>, vector<128x64xbf16>
    %cst_384 = arith.constant dense<0.000000e+00> : vector<2x64xf32>
    %521 = tpu.matmul %519, %520, %cst_384 {dimension_numbers = #tpu.dot_dimension_numbers<[1], [0], [0], [1], [0, 0, 1, 1], [], []>} : vector<2x128xbf16>, vector<128x64xbf16>, vector<2x64xf32> -> vector<2x64xf32>
    %c0_385 = arith.constant 0 : index
    %c0_386 = arith.constant 0 : index
    %522 = vector.load %arg20[%c0_385, %c0_386] : memref<1x64xf32, #tpu.memory_space<vmem>>, vector<1x64xf32>
    %523 = vector.broadcast %522 : vector<1x64xf32> to vector<2x64xf32>
    %524 = arith.addf %521, %523 : vector<2x64xf32>
    %cst_387 = arith.constant 0.000000e+00 : f32
    %525 = vector.broadcast %cst_387 : f32 to vector<2x64xf32>
    %526 = arith.maximumf %524, %525 : vector<2x64xf32>
    %527 = arith.truncf %526 : vector<2x64xf32> to vector<2x64xbf16>
    %c0_388 = arith.constant 0 : index
    %c0_389 = arith.constant 0 : index
    %528 = vector.load %arg21[%c0_388, %c0_389] : memref<64x32xbf16, #tpu.memory_space<vmem>>, vector<64x32xbf16>
    %cst_390 = arith.constant dense<0.000000e+00> : vector<2x32xf32>
    %529 = tpu.matmul %527, %528, %cst_390 {dimension_numbers = #tpu.dot_dimension_numbers<[1], [0], [0], [1], [0, 0, 1, 1], [], []>} : vector<2x64xbf16>, vector<64x32xbf16>, vector<2x32xf32> -> vector<2x32xf32>
    %c0_391 = arith.constant 0 : index
    %c0_392 = arith.constant 0 : index
    %530 = vector.load %arg22[%c0_391, %c0_392] : memref<1x32xf32, #tpu.memory_space<vmem>>, vector<1x32xf32>
    %531 = vector.broadcast %530 : vector<1x32xf32> to vector<2x32xf32>
    %532 = arith.addf %529, %531 : vector<2x32xf32>
    %cst_393 = arith.constant 0.000000e+00 : f32
    %533 = vector.broadcast %cst_393 : f32 to vector<2x32xf32>
    %534 = arith.maximumf %532, %533 : vector<2x32xf32>
    %c0_394 = arith.constant 0 : index
    %c0_395 = arith.constant 0 : index
    %535 = vector.load %arg23[%c0_394, %c0_395] : memref<32x1xf32, #tpu.memory_space<vmem>>, vector<32x1xf32>
    %cst_396 = arith.constant dense<0.000000e+00> : vector<2x1xf32>
    %536 = tpu.matmul %534, %535, %cst_396 {dimension_numbers = #tpu.dot_dimension_numbers<[1], [0], [0], [1], [0, 0, 1, 1], [], []>} : vector<2x32xf32>, vector<32x1xf32>, vector<2x1xf32> -> vector<2x1xf32>
    %c0_397 = arith.constant 0 : index
    %c0_398 = arith.constant 0 : index
    %537 = vector.load %arg24[%c0_397, %c0_398] : memref<1x1xf32, #tpu.memory_space<vmem>>, vector<1x1xf32>
    %538 = vector.broadcast %537 : vector<1x1xf32> to vector<2x1xf32>
    %539 = arith.addf %536, %538 : vector<2x1xf32>
    %c0_399 = arith.constant 0 : index
    %c0_400 = arith.constant 0 : index
    %540 = vector.load %arg25[%c0_399, %c0_400] : memref<2x1xf32, #tpu.memory_space<vmem>>, vector<2x1xf32>
    tpu.vector_store %arg25[%c0_399, %c0_400], %539 {strides = array<i32>} : memref<2x1xf32, #tpu.memory_space<vmem>>, vector<2x1xf32>,
    return
  }
}

</mosaic_0001>

<llo_original>
// kernel: tpu_custom_call.1
$region0: #{tpu_custom_call.1}
  #allocation0 [shape = 'u32[]', space=smem, size = 0x4, offset = 0x4, fixed_abs, tag = 'smem constant byte address 0x4 - core index']
  #allocation1 [shape = 'u32[72,128]{1,0:T(1,128)}', space=vmem, size = 0x9000, scoped, tag = 'internal scratch']
  #allocation2 [shape = 'f32[1,1]{1,0:T(1,128)S(1)}', space=vmem, size = 0x200, scoped, tag = 'scoped memory for tpu_custom_call.1']
  %s0 = inlined_call_operand.vmem [shape: f32[16,128], index: 0, kind: input, shape index: {}]
  %s1 = inlined_call_operand.vmem [shape: bf16[2,4,128,32], index: 1, kind: input, shape index: {}]
  %s2 = inlined_call_operand.vmem [shape: bf16[2,4,128,32], index: 2, kind: input, shape index: {}]
  %s3 = inlined_call_operand.vmem [shape: bf16[2,4,128,32], index: 3, kind: input, shape index: {}]
  %s4 = inlined_call_operand.vmem [shape: f32[2,4,1,32], index: 4, kind: input, shape index: {}]
  %s5 = inlined_call_operand.vmem [shape: f32[2,4,1,32], index: 5, kind: input, shape index: {}]
  %s6 = inlined_call_operand.vmem [shape: f32[2,4,1,32], index: 6, kind: input, shape index: {}]
  %s7 = inlined_call_operand.vmem [shape: bf16[2,4,32,128], index: 7, kind: input, shape index: {}]
  %s8 = inlined_call_operand.vmem [shape: f32[2,1,128], index: 8, kind: input, shape index: {}]
  %s9 = inlined_call_operand.vmem [shape: f32[2,1,128], index: 9, kind: input, shape index: {}]
  %s10 = inlined_call_operand.vmem [shape: f32[2,1,128], index: 10, kind: input, shape index: {}]
  %s11 = inlined_call_operand.vmem [shape: bf16[2,128,64], index: 11, kind: input, shape index: {}]
  %s12 = inlined_call_operand.vmem [shape: f32[2,1,64], index: 12, kind: input, shape index: {}]
  %s13 = inlined_call_operand.vmem [shape: bf16[2,64,128], index: 13, kind: input, shape index: {}]
  %s14 = inlined_call_operand.vmem [shape: f32[2,1,128], index: 14, kind: input, shape index: {}]
  %s15 = inlined_call_operand.vmem [shape: f32[2,1,128], index: 15, kind: input, shape index: {}]
  %s16 = inlined_call_operand.vmem [shape: f32[2,1,128], index: 16, kind: input, shape index: {}]
  %s17 = inlined_call_operand.vmem [shape: bf16[256,128], index: 17, kind: input, shape index: {}]
  %s18 = inlined_call_operand.vmem [shape: f32[1,128], index: 18, kind: input, shape index: {}]
  %s19 = inlined_call_operand.vmem [shape: bf16[128,64], index: 19, kind: input, shape index: {}]
  %s20 = inlined_call_operand.vmem [shape: f32[1,64], index: 20, kind: input, shape index: {}]
  %s21 = inlined_call_operand.vmem [shape: bf16[64,32], index: 21, kind: input, shape index: {}]
  %s22 = inlined_call_operand.vmem [shape: f32[1,32], index: 22, kind: input, shape index: {}]
  %s23 = inlined_call_operand.vmem [shape: f32[32,1], index: 23, kind: input, shape index: {}]
  %s24 = inlined_call_operand.<no memory space> [shape: f32[1,1], index: 24, kind: input, shape index: {}]
  %s25 = inlined_call_operand.vmem [shape: f32[2,1], index: 25, kind: output, shape index: {}]
  %s26 = sld [smem:[#allocation0]]
  $region110: #{tpu_custom_call.1} parent=0
    _
  %s28 = ssub.s32 1, %s26
  %s29 = scalar_select 0, %s28, %s26
  %v30 = vstv %s24
  %31 = vst [vmem:[#allocation2] sm:$0x1] %v30
  // Predicated region
  $region2: #{tpu_custom_call.1} parent=0 // pred_check
    _
  $region3: #{tpu_custom_call.1} parent=0 // pred_check_branch
    %33 = sbr.rel (0) target = $region5
  $region4: #{tpu_custom_call.1} parent=0 // pred_region
    _
  $region5: #{tpu_custom_call.1} parent=0 // pred_fallthru
    _
  // Predicated region
  $region6: #{tpu_custom_call.1} parent=0 // pred_check
    _
  $region7: #{tpu_custom_call.1} parent=0 // pred_check_branch
    %35 = sbr.rel (0) target = $region9
  $region8: #{tpu_custom_call.1} parent=0 // pred_region
    _
  $region9: #{tpu_custom_call.1} parent=0 // pred_fallthru
    _
  // Predicated region
  $region10: #{tpu_custom_call.1} parent=0 // pred_check
    _
  $region11: #{tpu_custom_call.1} parent=0 // pred_check_branch
    %37 = sbr.rel (0) target = $region13
  $region12: #{tpu_custom_call.1} parent=0 // pred_region
    _
  $region13: #{tpu_custom_call.1} parent=0 // pred_fallthru
    _
  // Predicated region
  $region14: #{tpu_custom_call.1} parent=0 // pred_check
    _
  $region15: #{tpu_custom_call.1} parent=0 // pred_check_branch
    %39 = sbr.rel (0) target = $region17
  $region16: #{tpu_custom_call.1} parent=0 // pred_region
    _
  $region17: #{tpu_custom_call.1} parent=0 // pred_fallthru
    _
  // Predicated region
  $region18: #{tpu_custom_call.1} parent=0 // pred_check
    _
  $region19: #{tpu_custom_call.1} parent=0 // pred_check_branch
    %41 = sbr.rel (0) target = $region21
  $region20: #{tpu_custom_call.1} parent=0 // pred_region
    _
  $region21: #{tpu_custom_call.1} parent=0 // pred_fallthru
    _
  // Predicated region
  $region22: #{tpu_custom_call.1} parent=0 // pred_check
    _
  $region23: #{tpu_custom_call.1} parent=0 // pred_check_branch
    %43 = sbr.rel (0) target = $region25
  $region24: #{tpu_custom_call.1} parent=0 // pred_region
    _
  $region25: #{tpu_custom_call.1} parent=0 // pred_fallthru
    _
  // Predicated region
  $region26: #{tpu_custom_call.1} parent=0 // pred_check
    _
  $region27: #{tpu_custom_call.1} parent=0 // pred_check_branch
    %45 = sbr.rel (0) target = $region29
  $region28: #{tpu_custom_call.1} parent=0 // pred_region
    _
  $region29: #{tpu_custom_call.1} parent=0 // pred_fallthru
    _
  // Predicated region
  $region30: #{tpu_custom_call.1} parent=0 // pred_check
    _
  $region31: #{tpu_custom_call.1} parent=0 // pred_check_branch
    %47 = sbr.rel (0) target = $region33
  $region32: #{tpu_custom_call.1} parent=0 // pred_region
    _
  $region33: #{tpu_custom_call.1} parent=0 // pred_fallthru
    _
  // Predicated region
  $region34: #{tpu_custom_call.1} parent=0 // pred_check
    _
  $region35: #{tpu_custom_call.1} parent=0 // pred_check_branch
    %49 = sbr.rel (0) target = $region37
  $region36: #{tpu_custom_call.1} parent=0 // pred_region
    _
  $region37: #{tpu_custom_call.1} parent=0 // pred_fallthru
    _
  // Predicated region
  $region38: #{tpu_custom_call.1} parent=0 // pred_check
    _
  $region39: #{tpu_custom_call.1} parent=0 // pred_check_branch
    %51 = sbr.rel (0) target = $region41
  $region40: #{tpu_custom_call.1} parent=0 // pred_region
    _
  $region41: #{tpu_custom_call.1} parent=0 // pred_fallthru
    _
  // Predicated region
  $region42: #{tpu_custom_call.1} parent=0 // pred_check
    _
  $region43: #{tpu_custom_call.1} parent=0 // pred_check_branch
    %53 = sbr.rel (0) target = $region45
  $region44: #{tpu_custom_call.1} parent=0 // pred_region
    _
  $region45: #{tpu_custom_call.1} parent=0 // pred_fallthru
    _
  // Predicated region
  $region46: #{tpu_custom_call.1} parent=0 // pred_check
    _
  $region47: #{tpu_custom_call.1} parent=0 // pred_check_branch
    %55 = sbr.rel (0) target = $region49
  $region48: #{tpu_custom_call.1} parent=0 // pred_region
    _
  $region49: #{tpu_custom_call.1} parent=0 // pred_fallthru
    _
  // Predicated region
  $region50: #{tpu_custom_call.1} parent=0 // pred_check
    _
  $region51: #{tpu_custom_call.1} parent=0 // pred_check_branch
    %57 = sbr.rel (0) target = $region53
  $region52: #{tpu_custom_call.1} parent=0 // pred_region
    _
  $region53: #{tpu_custom_call.1} parent=0 // pred_fallthru
    _
  // Predicated region
  $region54: #{tpu_custom_call.1} parent=0 // pred_check
    _
  $region55: #{tpu_custom_call.1} parent=0 // pred_check_branch
    %59 = sbr.rel (0) target = $region57
  $region56: #{tpu_custom_call.1} parent=0 // pred_region
    _
  $region57: #{tpu_custom_call.1} parent=0 // pred_fallthru
    _
  // Predicated region
  $region58: #{tpu_custom_call.1} parent=0 // pred_check
    _
  $region59: #{tpu_custom_call.1} parent=0 // pred_check_branch
    %61 = sbr.rel (0) target = $region61
  $region60: #{tpu_custom_call.1} parent=0 // pred_region
    _
  $region61: #{tpu_custom_call.1} parent=0 // pred_fallthru
    _
  // Predicated region
  $region62: #{tpu_custom_call.1} parent=0 // pred_check
    _
  $region63: #{tpu_custom_call.1} parent=0 // pred_check_branch
    %63 = sbr.rel (0) target = $region65
  $region64: #{tpu_custom_call.1} parent=0 // pred_region
    _
  $region65: #{tpu_custom_call.1} parent=0 // pred_fallthru
    _
  // Predicated region
  $region66: #{tpu_custom_call.1} parent=0 // pred_check
    _
  $region67: #{tpu_custom_call.1} parent=0 // pred_check_branch
    %65 = sbr.rel (0) target = $region69
  $region68: #{tpu_custom_call.1} parent=0 // pred_region
    _
  $region69: #{tpu_custom_call.1} parent=0 // pred_fallthru
    _
  // Predicated region
  $region70: #{tpu_custom_call.1} parent=0 // pred_check
    _
  $region71: #{tpu_custom_call.1} parent=0 // pred_check_branch
    %67 = sbr.rel (0) target = $region73
  $region72: #{tpu_custom_call.1} parent=0 // pred_region
    _
  $region73: #{tpu_custom_call.1} parent=0 // pred_fallthru
    _
  // Predicated region
  $region74: #{tpu_custom_call.1} parent=0 // pred_check
    _
  $region75: #{tpu_custom_call.1} parent=0 // pred_check_branch
    %69 = sbr.rel (0) target = $region77
  $region76: #{tpu_custom_call.1} parent=0 // pred_region
    _
  $region77: #{tpu_custom_call.1} parent=0 // pred_fallthru
    _
  // Predicated region
  $region78: #{tpu_custom_call.1} parent=0 // pred_check
    _
  $region79: #{tpu_custom_call.1} parent=0 // pred_check_branch
    %71 = sbr.rel (0) target = $region81
  $region80: #{tpu_custom_call.1} parent=0 // pred_region
    _
  $region81: #{tpu_custom_call.1} parent=0 // pred_fallthru
    _
  // Predicated region
  $region82: #{tpu_custom_call.1} parent=0 // pred_check
    _
  $region83: #{tpu_custom_call.1} parent=0 // pred_check_branch
    %73 = sbr.rel (0) target = $region85
  $region84: #{tpu_custom_call.1} parent=0 // pred_region
    _
  $region85: #{tpu_custom_call.1} parent=0 // pred_fallthru
    _
  // Predicated region
  $region86: #{tpu_custom_call.1} parent=0 // pred_check
    _
  $region87: #{tpu_custom_call.1} parent=0 // pred_check_branch
    %75 = sbr.rel (0) target = $region89
  $region88: #{tpu_custom_call.1} parent=0 // pred_region
    _
  $region89: #{tpu_custom_call.1} parent=0 // pred_fallthru
    _
  // Predicated region
  $region90: #{tpu_custom_call.1} parent=0 // pred_check
    _
  $region91: #{tpu_custom_call.1} parent=0 // pred_check_branch
    %77 = sbr.rel (0) target = $region93
  $region92: #{tpu_custom_call.1} parent=0 // pred_region
    _
  $region93: #{tpu_custom_call.1} parent=0 // pred_fallthru
    _
  // Predicated region
  $region94: #{tpu_custom_call.1} parent=0 // pred_check
    _
  $region95: #{tpu_custom_call.1} parent=0 // pred_check_branch
    %79 = sbr.rel (0) target = $region97
  $region96: #{tpu_custom_call.1} parent=0 // pred_region
    _
  $region97: #{tpu_custom_call.1} parent=0 // pred_fallthru
    _
  // Predicated region
  $region98: #{tpu_custom_call.1} parent=0 // pred_check
    _
  $region99: #{tpu_custom_call.1} parent=0 // pred_check_branch
    %81 = sbr.rel (0) target = $region101
  $region100: #{tpu_custom_call.1} parent=0 // pred_region
    _
  $region101: #{tpu_custom_call.1} parent=0 // pred_fallthru
    _
  %v83 = vld [vmem:[%s0] sm:$0xff]
  %v84 = vld [vmem:[%s0 + $0x8] sm:$0xff]
  %v85 = vpack.c.bf16 %v84, %v83
  %v86 = vld [vmem:[%s1] sm:$0xf]
  %v87 = vld [vmem:[%s1 + $0x4] sm:$0xf]
  %v88 = vld [vmem:[%s1 + $0x8] sm:$0xf]
  %v89 = vld [vmem:[%s1 + $0xc] sm:$0xf]
  %v90 = vld [vmem:[%s1 + $0x10] sm:$0xf]
  %v91 = vld [vmem:[%s1 + $0x14] sm:$0xf]
  %v92 = vld [vmem:[%s1 + $0x18] sm:$0xf]
  %v93 = vld [vmem:[%s1 + $0x1c] sm:$0xf]
  %v94 = vld [vmem:[%s1 + $0x20] sm:$0xf]
  %v95 = vld [vmem:[%s1 + $0x24] sm:$0xf]
  %v96 = vld [vmem:[%s1 + $0x28] sm:$0xf]
  %v97 = vld [vmem:[%s1 + $0x2c] sm:$0xf]
  %v98 = vld [vmem:[%s1 + $0x30] sm:$0xf]
  %v99 = vld [vmem:[%s1 + $0x34] sm:$0xf]
  %v100 = vld [vmem:[%s1 + $0x38] sm:$0xf]
  %v101 = vld [vmem:[%s1 + $0x3c] sm:$0xf]
  %v102 = vld [vmem:[%s4] sm:$0x1]
  %v104 = vperm.slane %v102, 0
  %v122 = vunpack.c.l.b16 %v86
  %v123 = vunpack.c.l.b16 %v87
  %v124 = vunpack.c.l.b16 %v88
  %v125 = vunpack.c.l.b16 %v89
  %v126 = vunpack.c.l.b16 %v90
  %v127 = vunpack.c.l.b16 %v91
  %v128 = vunpack.c.l.b16 %v92
  %v129 = vunpack.c.l.b16 %v93
  %v130 = vunpack.c.l.b16 %v94
  %v131 = vunpack.c.l.b16 %v95
  %v132 = vunpack.c.l.b16 %v96
  %v133 = vunpack.c.l.b16 %v97
  %v134 = vunpack.c.l.b16 %v98
  %v135 = vunpack.c.l.b16 %v99
  %v136 = vunpack.c.l.b16 %v100
  %v137 = vunpack.c.l.b16 %v101
  %v138 = vpack.c.b16 %v123, %v122
  %v139 = vpack.c.b16 %v125, %v124
  %v140 = vpack.c.b16 %v127, %v126
  %v141 = vpack.c.b16 %v129, %v128
  %v142 = vpack.c.b16 %v131, %v130
  %v143 = vpack.c.b16 %v133, %v132
  %v144 = vpack.c.b16 %v135, %v134
  %v145 = vpack.c.b16 %v137, %v136
  %154 = vmatpush.bf16.msra.mxu0 %v145
  %155 = vmatpush.bf16.msra.mxu0 %v144
  %156 = vmatpush.bf16.msra.mxu0 %v143
  %157 = vmatpush.bf16.msra.mxu0 %v142
  %158 = vmatpush.bf16.msra.mxu0 %v141
  %159 = vmatpush.bf16.msra.mxu0 %v140
  %160 = vmatpush.bf16.msra.mxu0 %v139
  %161 = vmatpush.bf16.msra.mxu0 %v138
  %162 = vmatmul.bf16.gmra.mxu0 %v85
  %v163 = vpop.f32.mrf.mxu0
  %v164 = vadd.f32 %v104, %v163
  %v165 = vpop.f32.mrf.mxu0
  %v166 = vadd.f32 %v104, %v165
  %167 = vdwg.mxu0
  %v168 = vmul.f32 %v164, 0.17677669
  %v169 = vmul.f32 %v166, 0.17677669
  %v170 = vld [vmem:[%s2] sm:$0xf]
  %v171 = vld [vmem:[%s2 + $0x4] sm:$0xf]
  %v172 = vld [vmem:[%s2 + $0x8] sm:$0xf]
  %v173 = vld [vmem:[%s2 + $0xc] sm:$0xf]
  %v174 = vld [vmem:[%s2 + $0x10] sm:$0xf]
  %v175 = vld [vmem:[%s2 + $0x14] sm:$0xf]
  %v176 = vld [vmem:[%s2 + $0x18] sm:$0xf]
  %v177 = vld [vmem:[%s2 + $0x1c] sm:$0xf]
  %v178 = vld [vmem:[%s2 + $0x20] sm:$0xf]
  %v179 = vld [vmem:[%s2 + $0x24] sm:$0xf]
  %v180 = vld [vmem:[%s2 + $0x28] sm:$0xf]
  %v181 = vld [vmem:[%s2 + $0x2c] sm:$0xf]
  %v182 = vld [vmem:[%s2 + $0x30] sm:$0xf]
  %v183 = vld [vmem:[%s2 + $0x34] sm:$0xf]
  %v184 = vld [vmem:[%s2 + $0x38] sm:$0xf]
  %v185 = vld [vmem:[%s2 + $0x3c] sm:$0xf]
  %v186 = vld [vmem:[%s5] sm:$0x1]
  %v188 = vperm.slane %v186, 0
  %v206 = vunpack.c.l.b16 %v170
  %v207 = vunpack.c.l.b16 %v171
  %v208 = vunpack.c.l.b16 %v172
  %v209 = vunpack.c.l.b16 %v173
  %v210 = vunpack.c.l.b16 %v174
  %v211 = vunpack.c.l.b16 %v175
  %v212 = vunpack.c.l.b16 %v176
  %v213 = vunpack.c.l.b16 %v177
  %v214 = vunpack.c.l.b16 %v178
  %v215 = vunpack.c.l.b16 %v179
  %v216 = vunpack.c.l.b16 %v180
  %v217 = vunpack.c.l.b16 %v181
  %v218 = vunpack.c.l.b16 %v182
  %v219 = vunpack.c.l.b16 %v183
  %v220 = vunpack.c.l.b16 %v184
  %v221 = vunpack.c.l.b16 %v185
  %v222 = vpack.c.b16 %v207, %v206
  %v223 = vpack.c.b16 %v209, %v208
  %v224 = vpack.c.b16 %v211, %v210
  %v225 = vpack.c.b16 %v213, %v212
  %v226 = vpack.c.b16 %v215, %v214
  %v227 = vpack.c.b16 %v217, %v216
  %v228 = vpack.c.b16 %v219, %v218
  %v229 = vpack.c.b16 %v221, %v220
  %238 = vmatpush.bf16.msra.mxu0 %v229
  %239 = vmatpush.bf16.msra.mxu0 %v228
  %240 = vmatpush.bf16.msra.mxu0 %v227
  %241 = vmatpush.bf16.msra.mxu0 %v226
  %242 = vmatpush.bf16.msra.mxu0 %v225
  %243 = vmatpush.bf16.msra.mxu0 %v224
  %244 = vmatpush.bf16.msra.mxu0 %v223
  %245 = vmatpush.bf16.msra.mxu0 %v222
  %246 = vmatmul.bf16.gmra.mxu0 %v85
  %v247 = vpop.f32.mrf.mxu0
  %v248 = vadd.f32 %v188, %v247
  %v249 = vpop.f32.mrf.mxu0
  %v250 = vadd.f32 %v188, %v249
  %251 = vdwg.mxu0
  %v252 = vld [vmem:[%s3] sm:$0xf]
  %v253 = vld [vmem:[%s3 + $0x4] sm:$0xf]
  %v254 = vld [vmem:[%s3 + $0x8] sm:$0xf]
  %v255 = vld [vmem:[%s3 + $0xc] sm:$0xf]
  %v256 = vld [vmem:[%s3 + $0x10] sm:$0xf]
  %v257 = vld [vmem:[%s3 + $0x14] sm:$0xf]
  %v258 = vld [vmem:[%s3 + $0x18] sm:$0xf]
  %v259 = vld [vmem:[%s3 + $0x1c] sm:$0xf]
  %v260 = vld [vmem:[%s3 + $0x20] sm:$0xf]
  %v261 = vld [vmem:[%s3 + $0x24] sm:$0xf]
  %v262 = vld [vmem:[%s3 + $0x28] sm:$0xf]
  %v263 = vld [vmem:[%s3 + $0x2c] sm:$0xf]
  %v264 = vld [vmem:[%s3 + $0x30] sm:$0xf]
  %v265 = vld [vmem:[%s3 + $0x34] sm:$0xf]
  %v266 = vld [vmem:[%s3 + $0x38] sm:$0xf]
  %v267 = vld [vmem:[%s3 + $0x3c] sm:$0xf]
  %v268 = vld [vmem:[%s6] sm:$0x1]
  %v270 = vperm.slane %v268, 0
  %v288 = vunpack.c.l.b16 %v252
  %v289 = vunpack.c.l.b16 %v253
  %v290 = vunpack.c.l.b16 %v254
  %v291 = vunpack.c.l.b16 %v255
  %v292 = vunpack.c.l.b16 %v256
  %v293 = vunpack.c.l.b16 %v257
  %v294 = vunpack.c.l.b16 %v258
  %v295 = vunpack.c.l.b16 %v259
  %v296 = vunpack.c.l.b16 %v260
  %v297 = vunpack.c.l.b16 %v261
  %v298 = vunpack.c.l.b16 %v262
  %v299 = vunpack.c.l.b16 %v263
  %v300 = vunpack.c.l.b16 %v264
  %v301 = vunpack.c.l.b16 %v265
  %v302 = vunpack.c.l.b16 %v266
  %v303 = vunpack.c.l.b16 %v267
  %v304 = vpack.c.b16 %v289, %v288
  %v305 = vpack.c.b16 %v291, %v290
  %v306 = vpack.c.b16 %v293, %v292
  %v307 = vpack.c.b16 %v295, %v294
  %v308 = vpack.c.b16 %v297, %v296
  %v309 = vpack.c.b16 %v299, %v298
  %v310 = vpack.c.b16 %v301, %v300
  %v311 = vpack.c.b16 %v303, %v302
  %320 = vmatpush.bf16.msra.mxu0 %v311
  %321 = vmatpush.bf16.msra.mxu0 %v310
  %322 = vmatpush.bf16.msra.mxu0 %v309
  %323 = vmatpush.bf16.msra.mxu0 %v308
  %324 = vmatpush.bf16.msra.mxu0 %v307
  %325 = vmatpush.bf16.msra.mxu0 %v306
  %326 = vmatpush.bf16.msra.mxu0 %v305
  %327 = vmatpush.bf16.msra.mxu0 %v304
  %328 = vmatmul.bf16.gmra.mxu0 %v85
  %v329 = vpop.f32.mrf.mxu0
  %v330 = vadd.f32 %v270, %v329
  %v331 = vpop.f32.mrf.mxu0
  %v332 = vadd.f32 %v270, %v331
  %333 = vdwg.mxu0
  %vm334 = vcmask 261120
  %v336 = vsel %vm334, %v168, 0
  %v339 = vsel %vm334, %v248, 0
  %341 = vmatpush.xpose.msra.mxu0 0.0
  %342 = vmatpush.xpose.msra.mxu0 0.0
  %343 = vmatpush.xpose.msra.mxu0 0.0
  %344 = vmatpush.xpose.msra.mxu0 0.0
  %345 = vmatpush.xpose.msra.mxu0 0.0
  %346 = vmatpush.xpose.msra.mxu0 0.0
  %347 = vmatpush.xpose.msra.mxu0 0.0
  %348 = vmatpush.xpose.msra.mxu0 0.0
  %349 = vmatpush.xpose.msra.mxu0 0.0
  %350 = vmatpush.xpose.msra.mxu0 0.0
  %351 = vmatpush.xpose.msra.mxu0 0.0
  %352 = vmatpush.xpose.msra.mxu0 0.0
  %353 = vmatpush.xpose.msra.mxu0 0.0
  %354 = vmatpush.xpose.msra.mxu0 0.0
  %355 = vmatpush.xpose.msra.mxu0 0.0
  %356 = vmatpush.xpose.msra.mxu0 %v339
  %357 = vmatmul.f32.gmra.mxu0 %v336
  %v358 = vpop.f32.mrf.mxu0
  %v359 = vadd.f32 0.0, %v358
  %360 = vdwg.mxu0
  %v362 = vsel %vm334, %v169, 0
  %v365 = vsel %vm334, %v250, 0
  %367 = vmatpush.xpose.msra.mxu0 0.0
  %368 = vmatpush.xpose.msra.mxu0 0.0
  %369 = vmatpush.xpose.msra.mxu0 0.0
  %370 = vmatpush.xpose.msra.mxu0 0.0
  %371 = vmatpush.xpose.msra.mxu0 0.0
  %372 = vmatpush.xpose.msra.mxu0 0.0
  %373 = vmatpush.xpose.msra.mxu0 0.0
  %374 = vmatpush.xpose.msra.mxu0 0.0
  %375 = vmatpush.xpose.msra.mxu0 0.0
  %376 = vmatpush.xpose.msra.mxu0 0.0
  %377 = vmatpush.xpose.msra.mxu0 0.0
  %378 = vmatpush.xpose.msra.mxu0 0.0
  %379 = vmatpush.xpose.msra.mxu0 0.0
  %380 = vmatpush.xpose.msra.mxu0 0.0
  %381 = vmatpush.xpose.msra.mxu0 0.0
  %382 = vmatpush.xpose.msra.mxu0 %v365
  %383 = vmatmul.f32.gmra.mxu0 %v362
  %v384 = vpop.f32.mrf.mxu0
  %v385 = vadd.f32 0.0, %v384
  %386 = vdwg.mxu0
  %vm387 = vcmask 64512
  %v388 = vsel %vm387, %v359, -inf
  %389 = vmax.xlane.f32.xlu0 %v388
  %v390 = vpop.xlane.xlu0 %389
  %v391 = vsel %vm387, %v385, -inf
  %392 = vmax.xlane.f32.xlu0 %v391
  %v393 = vpop.xlane.xlu0 %392
  %v394 = vsub.f32 %v359, %v390
  %v395 = vsub.f32 %v385, %v393
  %v396 = vmul.f32 %v394, 1.442695
  %v397 = vpow.pop %v396
  %v398 = vmul.f32 %v395, 1.442695
  %v399 = vpow.pop %v398
  %v400 = vsel %vm387, %v397, 0.0
  %401 = vadd.xlane.f32.xlu0 %v400
  %v402 = vpop.xlane.xlu0 %401
  %v403 = vsel %vm387, %v399, 0.0
  %404 = vadd.xlane.f32.xlu0 %v403
  %v405 = vpop.xlane.xlu0 %404
  %v406 = vrcp.pop %v402
  %v407 = vrcp.pop %v405
  %v408 = vmul.f32 %v397, %v406
  %v409 = vmul.f32 %v399, %v407
  %v411 = vsel %vm387, %v408, 0
  %413 = vmatpush.msra.mxu0 0.0
  %414 = vmatpush.msra.mxu0 0.0
  %415 = vmatpush.msra.mxu0 0.0
  %416 = vmatpush.msra.mxu0 0.0
  %417 = vmatpush.msra.mxu0 0.0
  %418 = vmatpush.msra.mxu0 0.0
  %419 = vmatpush.msra.mxu0 0.0
  %420 = vmatpush.msra.mxu0 0.0
  %421 = vmatpush.msra.mxu0 0.0
  %422 = vmatpush.msra.mxu0 0.0
  %423 = vmatpush.msra.mxu0 0.0
  %424 = vmatpush.msra.mxu0 0.0
  %425 = vmatpush.msra.mxu0 0.0
  %426 = vmatpush.msra.mxu0 0.0
  %427 = vmatpush.msra.mxu0 0.0
  %428 = vmatpush.msra.mxu0 %v330
  %429 = vmatmul.f32.gmra.mxu0 %v411
  %v430 = vpop.f32.mrf.mxu0
  %v431 = vadd.f32 0.0, %v430
  %432 = vdwg.mxu0
  %v434 = vsel %vm387, %v409, 0
  %436 = vmatpush.msra.mxu0 0.0
  %437 = vmatpush.msra.mxu0 0.0
  %438 = vmatpush.msra.mxu0 0.0
  %439 = vmatpush.msra.mxu0 0.0
  %440 = vmatpush.msra.mxu0 0.0
  %441 = vmatpush.msra.mxu0 0.0
  %442 = vmatpush.msra.mxu0 0.0
  %443 = vmatpush.msra.mxu0 0.0
  %444 = vmatpush.msra.mxu0 0.0
  %445 = vmatpush.msra.mxu0 0.0
  %446 = vmatpush.msra.mxu0 0.0
  %447 = vmatpush.msra.mxu0 0.0
  %448 = vmatpush.msra.mxu0 0.0
  %449 = vmatpush.msra.mxu0 0.0
  %450 = vmatpush.msra.mxu0 0.0
  %451 = vmatpush.msra.mxu0 %v332
  %452 = vmatmul.f32.gmra.mxu0 %v434
  %v453 = vpop.f32.mrf.mxu0
  %v454 = vadd.f32 0.0, %v453
  %455 = vdwg.mxu0
  %v456 = vpack.c.bf16 %v454, %v431
  %v457 = vld [vmem:[%s7] sm:$0xf]
  %v458 = vld [vmem:[%s7 + $0x4] sm:$0xf]
  %v459 = vld [vmem:[%s7 + $0x8] sm:$0xf]
  %v460 = vld [vmem:[%s7 + $0xc] sm:$0xf]
  %s461 = scalar_lea.vmem %s1, 64
  %v462 = vld [vmem:[%s461] sm:$0xf]
  %v463 = vld [vmem:[%s461 + $0x4] sm:$0xf]
  %v464 = vld [vmem:[%s461 + $0x8] sm:$0xf]
  %v465 = vld [vmem:[%s461 + $0xc] sm:$0xf]
  %v466 = vld [vmem:[%s461 + $0x10] sm:$0xf]
  %v467 = vld [vmem:[%s461 + $0x14] sm:$0xf]
  %v468 = vld [vmem:[%s461 + $0x18] sm:$0xf]
  %v469 = vld [vmem:[%s461 + $0x1c] sm:$0xf]
  %v470 = vld [vmem:[%s461 + $0x20] sm:$0xf]
  %v471 = vld [vmem:[%s461 + $0x24] sm:$0xf]
  %v472 = vld [vmem:[%s461 + $0x28] sm:$0xf]
  %v473 = vld [vmem:[%s461 + $0x2c] sm:$0xf]
  %v474 = vld [vmem:[%s461 + $0x30] sm:$0xf]
  %v475 = vld [vmem:[%s461 + $0x34] sm:$0xf]
  %v476 = vld [vmem:[%s461 + $0x38] sm:$0xf]
  %v477 = vld [vmem:[%s461 + $0x3c] sm:$0xf]
  %s478 = scalar_lea.vmem %s4, 1
  %v479 = vld [vmem:[%s478] sm:$0x1]
  %v481 = vperm.slane %v479, 0
  %v499 = vunpack.c.l.b16 %v462
  %v500 = vunpack.c.l.b16 %v463
  %v501 = vunpack.c.l.b16 %v464
  %v502 = vunpack.c.l.b16 %v465
  %v503 = vunpack.c.l.b16 %v466
  %v504 = vunpack.c.l.b16 %v467
  %v505 = vunpack.c.l.b16 %v468
  %v506 = vunpack.c.l.b16 %v469
  %v507 = vunpack.c.l.b16 %v470
  %v508 = vunpack.c.l.b16 %v471
  %v509 = vunpack.c.l.b16 %v472
  %v510 = vunpack.c.l.b16 %v473
  %v511 = vunpack.c.l.b16 %v474
  %v512 = vunpack.c.l.b16 %v475
  %v513 = vunpack.c.l.b16 %v476
  %v514 = vunpack.c.l.b16 %v477
  %v515 = vpack.c.b16 %v500, %v499
  %v516 = vpack.c.b16 %v502, %v501
  %v517 = vpack.c.b16 %v504, %v503
  %v518 = vpack.c.b16 %v506, %v505
  %v519 = vpack.c.b16 %v508, %v507
  %v520 = vpack.c.b16 %v510, %v509
  %v521 = vpack.c.b16 %v512, %v511
  %v522 = vpack.c.b16 %v514, %v513
  %531 = vmatpush.bf16.msra.mxu0 %v522
  %532 = vmatpush.bf16.msra.mxu0 %v521
  %533 = vmatpush.bf16.msra.mxu0 %v520
  %534 = vmatpush.bf16.msra.mxu0 %v519
  %535 = vmatpush.bf16.msra.mxu0 %v518
  %536 = vmatpush.bf16.msra.mxu0 %v517
  %537 = vmatpush.bf16.msra.mxu0 %v516
  %538 = vmatpush.bf16.msra.mxu0 %v515
  %539 = vmatmul.bf16.gmra.mxu0 %v85
  %v540 = vpop.f32.mrf.mxu0
  %v541 = vadd.f32 %v481, %v540
  %v542 = vpop.f32.mrf.mxu0
  %v543 = vadd.f32 %v481, %v542
  %544 = vdwg.mxu0
  %v545 = vmul.f32 %v541, 0.17677669
  %v546 = vmul.f32 %v543, 0.17677669
  %s547 = scalar_lea.vmem %s2, 64
  %v548 = vld [vmem:[%s547] sm:$0xf]
  %v549 = vld [vmem:[%s547 + $0x4] sm:$0xf]
  %v550 = vld [vmem:[%s547 + $0x8] sm:$0xf]
  %v551 = vld [vmem:[%s547 + $0xc] sm:$0xf]
  %v552 = vld [vmem:[%s547 + $0x10] sm:$0xf]
  %v553 = vld [vmem:[%s547 + $0x14] sm:$0xf]
  %v554 = vld [vmem:[%s547 + $0x18] sm:$0xf]
  %v555 = vld [vmem:[%s547 + $0x1c] sm:$0xf]
  %v556 = vld [vmem:[%s547 + $0x20] sm:$0xf]
  %v557 = vld [vmem:[%s547 + $0x24] sm:$0xf]
  %v558 = vld [vmem:[%s547 + $0x28] sm:$0xf]
  %v559 = vld [vmem:[%s547 + $0x2c] sm:$0xf]
  %v560 = vld [vmem:[%s547 + $0x30] sm:$0xf]
  %v561 = vld [vmem:[%s547 + $0x34] sm:$0xf]
  %v562 = vld [vmem:[%s547 + $0x38] sm:$0xf]
  %v563 = vld [vmem:[%s547 + $0x3c] sm:$0xf]
  %s564 = scalar_lea.vmem %s5, 1
  %v565 = vld [vmem:[%s564] sm:$0x1]
  %v567 = vperm.slane %v565, 0
  %v585 = vunpack.c.l.b16 %v548
  %v586 = vunpack.c.l.b16 %v549
  %v587 = vunpack.c.l.b16 %v550
  %v588 = vunpack.c.l.b16 %v551
  %v589 = vunpack.c.l.b16 %v552
  %v590 = vunpack.c.l.b16 %v553
  %v591 = vunpack.c.l.b16 %v554
  %v592 = vunpack.c.l.b16 %v555
  %v593 = vunpack.c.l.b16 %v556
  %v594 = vunpack.c.l.b16 %v557
  %v595 = vunpack.c.l.b16 %v558
  %v596 = vunpack.c.l.b16 %v559
  %v597 = vunpack.c.l.b16 %v560
  %v598 = vunpack.c.l.b16 %v561
  %v599 = vunpack.c.l.b16 %v562
  %v600 = vunpack.c.l.b16 %v563
  %v601 = vpack.c.b16 %v586, %v585
  %v602 = vpack.c.b16 %v588, %v587
  %v603 = vpack.c.b16 %v590, %v589
  %v604 = vpack.c.b16 %v592, %v591
  %v605 = vpack.c.b16 %v594, %v593
  %v606 = vpack.c.b16 %v596, %v595
  %v607 = vpack.c.b16 %v598, %v597
  %v608 = vpack.c.b16 %v600, %v599
  %617 = vmatpush.bf16.msra.mxu0 %v608
  %618 = vmatpush.bf16.msra.mxu0 %v607
  %619 = vmatpush.bf16.msra.mxu0 %v606
  %620 = vmatpush.bf16.msra.mxu0 %v605
  %621 = vmatpush.bf16.msra.mxu0 %v604
  %622 = vmatpush.bf16.msra.mxu0 %v603
  %623 = vmatpush.bf16.msra.mxu0 %v602
  %624 = vmatpush.bf16.msra.mxu0 %v601
  %625 = vmatmul.bf16.gmra.mxu0 %v85
  %v626 = vpop.f32.mrf.mxu0
  %v627 = vadd.f32 %v567, %v626
  %v628 = vpop.f32.mrf.mxu0
  %v629 = vadd.f32 %v567, %v628
  %630 = vdwg.mxu0
  %s631 = scalar_lea.vmem %s3, 64
  %v632 = vld [vmem:[%s631] sm:$0xf]
  %v633 = vld [vmem:[%s631 + $0x4] sm:$0xf]
  %v634 = vld [vmem:[%s631 + $0x8] sm:$0xf]
  %v635 = vld [vmem:[%s631 + $0xc] sm:$0xf]
  %v636 = vld [vmem:[%s631 + $0x10] sm:$0xf]
  %v637 = vld [vmem:[%s631 + $0x14] sm:$0xf]
  %v638 = vld [vmem:[%s631 + $0x18] sm:$0xf]
  %v639 = vld [vmem:[%s631 + $0x1c] sm:$0xf]
  %v640 = vld [vmem:[%s631 + $0x20] sm:$0xf]
  %v641 = vld [vmem:[%s631 + $0x24] sm:$0xf]
  %v642 = vld [vmem:[%s631 + $0x28] sm:$0xf]
  %v643 = vld [vmem:[%s631 + $0x2c] sm:$0xf]
  %v644 = vld [vmem:[%s631 + $0x30] sm:$0xf]
  %v645 = vld [vmem:[%s631 + $0x34] sm:$0xf]
  %v646 = vld [vmem:[%s631 + $0x38] sm:$0xf]
  %v647 = vld [vmem:[%s631 + $0x3c] sm:$0xf]
  %s648 = scalar_lea.vmem %s6, 1
  %v649 = vld [vmem:[%s648] sm:$0x1]
  %v651 = vperm.slane %v649, 0
  %v669 = vunpack.c.l.b16 %v632
  %v670 = vunpack.c.l.b16 %v633
  %v671 = vunpack.c.l.b16 %v634
  %v672 = vunpack.c.l.b16 %v635
  %v673 = vunpack.c.l.b16 %v636
  %v674 = vunpack.c.l.b16 %v637
  %v675 = vunpack.c.l.b16 %v638
  %v676 = vunpack.c.l.b16 %v639
  %v677 = vunpack.c.l.b16 %v640
  %v678 = vunpack.c.l.b16 %v641
  %v679 = vunpack.c.l.b16 %v642
  %v680 = vunpack.c.l.b16 %v643
  %v681 = vunpack.c.l.b16 %v644
  %v682 = vunpack.c.l.b16 %v645
  %v683 = vunpack.c.l.b16 %v646
  %v684 = vunpack.c.l.b16 %v647
  %v685 = vpack.c.b16 %v670, %v669
  %v686 = vpack.c.b16 %v672, %v671
  %v687 = vpack.c.b16 %v674, %v673
  %v688 = vpack.c.b16 %v676, %v675
  %v689 = vpack.c.b16 %v678, %v677
  %v690 = vpack.c.b16 %v680, %v679
  %v691 = vpack.c.b16 %v682, %v681
  %v692 = vpack.c.b16 %v684, %v683
  %701 = vmatpush.bf16.msra.mxu0 %v692
  %702 = vmatpush.bf16.msra.mxu0 %v691
  %703 = vmatpush.bf16.msra.mxu0 %v690
  %704 = vmatpush.bf16.msra.mxu0 %v689
  %705 = vmatpush.bf16.msra.mxu0 %v688
  %706 = vmatpush.bf16.msra.mxu0 %v687
  %707 = vmatpush.bf16.msra.mxu0 %v686
  %708 = vmatpush.bf16.msra.mxu0 %v685
  %709 = vmatmul.bf16.gmra.mxu0 %v85
  %v710 = vpop.f32.mrf.mxu0
  %v711 = vadd.f32 %v651, %v710
  %v712 = vpop.f32.mrf.mxu0
  %v713 = vadd.f32 %v651, %v712
  %714 = vdwg.mxu0
  %v716 = vsel %vm334, %v545, 0
  %v719 = vsel %vm334, %v627, 0
  %721 = vmatpush.xpose.msra.mxu0 0.0
  %722 = vmatpush.xpose.msra.mxu0 0.0
  %723 = vmatpush.xpose.msra.mxu0 0.0
  %724 = vmatpush.xpose.msra.mxu0 0.0
  %725 = vmatpush.xpose.msra.mxu0 0.0
  %726 = vmatpush.xpose.msra.mxu0 0.0
  %727 = vmatpush.xpose.msra.mxu0 0.0
  %728 = vmatpush.xpose.msra.mxu0 0.0
  %729 = vmatpush.xpose.msra.mxu0 0.0
  %730 = vmatpush.xpose.msra.mxu0 0.0
  %731 = vmatpush.xpose.msra.mxu0 0.0
  %732 = vmatpush.xpose.msra.mxu0 0.0
  %733 = vmatpush.xpose.msra.mxu0 0.0
  %734 = vmatpush.xpose.msra.mxu0 0.0
  %735 = vmatpush.xpose.msra.mxu0 0.0
  %736 = vmatpush.xpose.msra.mxu0 %v719
  %737 = vmatmul.f32.gmra.mxu0 %v716
  %v738 = vpop.f32.mrf.mxu0
  %v739 = vadd.f32 0.0, %v738
  %740 = vdwg.mxu0
  %v742 = vsel %vm334, %v546, 0
  %v745 = vsel %vm334, %v629, 0
  %747 = vmatpush.xpose.msra.mxu0 0.0
  %748 = vmatpush.xpose.msra.mxu0 0.0
  %749 = vmatpush.xpose.msra.mxu0 0.0
  %750 = vmatpush.xpose.msra.mxu0 0.0
  %751 = vmatpush.xpose.msra.mxu0 0.0
  %752 = vmatpush.xpose.msra.mxu0 0.0
  %753 = vmatpush.xpose.msra.mxu0 0.0
  %754 = vmatpush.xpose.msra.mxu0 0.0
  %755 = vmatpush.xpose.msra.mxu0 0.0
  %756 = vmatpush.xpose.msra.mxu0 0.0
  %757 = vmatpush.xpose.msra.mxu0 0.0
  %758 = vmatpush.xpose.msra.mxu0 0.0
  %759 = vmatpush.xpose.msra.mxu0 0.0
  %760 = vmatpush.xpose.msra.mxu0 0.0
  %761 = vmatpush.xpose.msra.mxu0 0.0
  %762 = vmatpush.xpose.msra.mxu0 %v745
  %763 = vmatmul.f32.gmra.mxu0 %v742
  %v764 = vpop.f32.mrf.mxu0
  %v765 = vadd.f32 0.0, %v764
  %766 = vdwg.mxu0
  %v767 = vsel %vm387, %v739, -inf
  %768 = vmax.xlane.f32.xlu0 %v767
  %v769 = vpop.xlane.xlu0 %768
  %v770 = vsel %vm387, %v765, -inf
  %771 = vmax.xlane.f32.xlu0 %v770
  %v772 = vpop.xlane.xlu0 %771
  %v773 = vsub.f32 %v739, %v769
  %v774 = vsub.f32 %v765, %v772
  %v775 = vmul.f32 %v773, 1.442695
  %v776 = vpow.pop %v775
  %v777 = vmul.f32 %v774, 1.442695
  %v778 = vpow.pop %v777
  %v779 = vsel %vm387, %v776, 0.0
  %780 = vadd.xlane.f32.xlu0 %v779
  %v781 = vpop.xlane.xlu0 %780
  %v782 = vsel %vm387, %v778, 0.0
  %783 = vadd.xlane.f32.xlu0 %v782
  %v784 = vpop.xlane.xlu0 %783
  %v785 = vrcp.pop %v781
  %v786 = vrcp.pop %v784
  %v787 = vmul.f32 %v776, %v785
  %v788 = vmul.f32 %v778, %v786
  %v790 = vsel %vm387, %v787, 0
  %792 = vmatpush.msra.mxu0 0.0
  %793 = vmatpush.msra.mxu0 0.0
  %794 = vmatpush.msra.mxu0 0.0
  %795 = vmatpush.msra.mxu0 0.0
  %796 = vmatpush.msra.mxu0 0.0
  %797 = vmatpush.msra.mxu0 0.0
  %798 = vmatpush.msra.mxu0 0.0
  %799 = vmatpush.msra.mxu0 0.0
  %800 = vmatpush.msra.mxu0 0.0
  %801 = vmatpush.msra.mxu0 0.0
  %802 = vmatpush.msra.mxu0 0.0
  %803 = vmatpush.msra.mxu0 0.0
  %804 = vmatpush.msra.mxu0 0.0
  %805 = vmatpush.msra.mxu0 0.0
  %806 = vmatpush.msra.mxu0 0.0
  %807 = vmatpush.msra.mxu0 %v711
  %808 = vmatmul.f32.gmra.mxu0 %v790
  %v809 = vpop.f32.mrf.mxu0
  %v810 = vadd.f32 0.0, %v809
  %811 = vdwg.mxu0
  %v813 = vsel %vm387, %v788, 0
  %815 = vmatpush.msra.mxu0 0.0
  %816 = vmatpush.msra.mxu0 0.0
  %817 = vmatpush.msra.mxu0 0.0
  %818 = vmatpush.msra.mxu0 0.0
  %819 = vmatpush.msra.mxu0 0.0
  %820 = vmatpush.msra.mxu0 0.0
  %821 = vmatpush.msra.mxu0 0.0
  %822 = vmatpush.msra.mxu0 0.0
  %823 = vmatpush.msra.mxu0 0.0
  %824 = vmatpush.msra.mxu0 0.0
  %825 = vmatpush.msra.mxu0 0.0
  %826 = vmatpush.msra.mxu0 0.0
  %827 = vmatpush.msra.mxu0 0.0
  %828 = vmatpush.msra.mxu0 0.0
  %829 = vmatpush.msra.mxu0 0.0
  %830 = vmatpush.msra.mxu0 %v713
  %831 = vmatmul.f32.gmra.mxu0 %v813
  %v832 = vpop.f32.mrf.mxu0
  %v833 = vadd.f32 0.0, %v832
  %834 = vdwg.mxu0
  %v835 = vpack.c.bf16 %v833, %v810
  %s836 = scalar_lea.vmem %s7, 16
  %v837 = vld [vmem:[%s836] sm:$0xf]
  %v838 = vld [vmem:[%s836 + $0x4] sm:$0xf]
  %v839 = vld [vmem:[%s836 + $0x8] sm:$0xf]
  %v840 = vld [vmem:[%s836 + $0xc] sm:$0xf]
  %v845 = vunpack.c.l.b16 %v837
  %v846 = vunpack.c.l.b16 %v838
  %v847 = vunpack.c.l.b16 %v839
  %v848 = vunpack.c.l.b16 %v840
  %v849 = vpack.c.b16 %v846, %v845
  %v850 = vpack.c.b16 %v848, %v847
  %v854 = vsel %vm334, %v835, 0
  %856 = vmatpush.bf16.msra.mxu0 0
  %857 = vmatpush.bf16.msra.mxu0 0
  %858 = vmatpush.bf16.msra.mxu0 0
  %859 = vmatpush.bf16.msra.mxu0 0
  %860 = vmatpush.bf16.msra.mxu0 0
  %861 = vmatpush.bf16.msra.mxu0 0
  %862 = vmatpush.bf16.msra.mxu0 %v850
  %863 = vmatpush.bf16.msra.mxu0 %v849
  %864 = vmatmul.bf16.gmra.mxu0 %v854
  %v865 = vpop.f32.mrf.mxu0
  %v866 = vadd.f32 0.0, %v865
  %v867 = vpop.f32.mrf.mxu0
  %v868 = vadd.f32 0.0, %v867
  %869 = vdwg.mxu0
  %s870 = scalar_lea.vmem %s1, 128
  %v871 = vld [vmem:[%s870] sm:$0xf]
  %v872 = vld [vmem:[%s870 + $0x4] sm:$0xf]
  %v873 = vld [vmem:[%s870 + $0x8] sm:$0xf]
  %v874 = vld [vmem:[%s870 + $0xc] sm:$0xf]
  %v875 = vld [vmem:[%s870 + $0x10] sm:$0xf]
  %v876 = vld [vmem:[%s870 + $0x14] sm:$0xf]
  %v877 = vld [vmem:[%s870 + $0x18] sm:$0xf]
  %v878 = vld [vmem:[%s870 + $0x1c] sm:$0xf]
  %v879 = vld [vmem:[%s870 + $0x20] sm:$0xf]
  %v880 = vld [vmem:[%s870 + $0x24] sm:$0xf]
  %v881 = vld [vmem:[%s870 + $0x28] sm:$0xf]
  %v882 = vld [vmem:[%s870 + $0x2c] sm:$0xf]
  %v883 = vld [vmem:[%s870 + $0x30] sm:$0xf]
  %v884 = vld [vmem:[%s870 + $0x34] sm:$0xf]
  %v885 = vld [vmem:[%s870 + $0x38] sm:$0xf]
  %v886 = vld [vmem:[%s870 + $0x3c] sm:$0xf]
  %s887 = scalar_lea.vmem %s4, 2
  %v888 = vld [vmem:[%s887] sm:$0x1]
  %v890 = vperm.slane %v888, 0
  %v908 = vunpack.c.l.b16 %v871
  %v909 = vunpack.c.l.b16 %v872
  %v910 = vunpack.c.l.b16 %v873
  %v911 = vunpack.c.l.b16 %v874
  %v912 = vunpack.c.l.b16 %v875
  %v913 = vunpack.c.l.b16 %v876
  %v914 = vunpack.c.l.b16 %v877
  %v915 = vunpack.c.l.b16 %v878
  %v916 = vunpack.c.l.b16 %v879
  %v917 = vunpack.c.l.b16 %v880
  %v918 = vunpack.c.l.b16 %v881
  %v919 = vunpack.c.l.b16 %v882
  %v920 = vunpack.c.l.b16 %v883
  %v921 = vunpack.c.l.b16 %v884
  %v922 = vunpack.c.l.b16 %v885
  %v923 = vunpack.c.l.b16 %v886
  %v924 = vpack.c.b16 %v909, %v908
  %v925 = vpack.c.b16 %v911, %v910
  %v926 = vpack.c.b16 %v913, %v912
  %v927 = vpack.c.b16 %v915, %v914
  %v928 = vpack.c.b16 %v917, %v916
  %v929 = vpack.c.b16 %v919, %v918
  %v930 = vpack.c.b16 %v921, %v920
  %v931 = vpack.c.b16 %v923, %v922
  %940 = vmatpush.bf16.msra.mxu0 %v931
  %941 = vmatpush.bf16.msra.mxu0 %v930
  %942 = vmatpush.bf16.msra.mxu0 %v929
  %943 = vmatpush.bf16.msra.mxu0 %v928
  %944 = vmatpush.bf16.msra.mxu0 %v927
  %945 = vmatpush.bf16.msra.mxu0 %v926
  %946 = vmatpush.bf16.msra.mxu0 %v925
  %947 = vmatpush.bf16.msra.mxu0 %v924
  %948 = vmatmul.bf16.gmra.mxu0 %v85
  %v949 = vpop.f32.mrf.mxu0
  %v950 = vadd.f32 %v890, %v949
  %v951 = vpop.f32.mrf.mxu0
  %v952 = vadd.f32 %v890, %v951
  %953 = vdwg.mxu0
  %v954 = vmul.f32 %v950, 0.17677669
  %v955 = vmul.f32 %v952, 0.17677669
  %s956 = scalar_lea.vmem %s2, 128
  %v957 = vld [vmem:[%s956] sm:$0xf]
  %v958 = vld [vmem:[%s956 + $0x4] sm:$0xf]
  %v959 = vld [vmem:[%s956 + $0x8] sm:$0xf]
  %v960 = vld [vmem:[%s956 + $0xc] sm:$0xf]
  %v961 = vld [vmem:[%s956 + $0x10] sm:$0xf]
  %v962 = vld [vmem:[%s956 + $0x14] sm:$0xf]
  %v963 = vld [vmem:[%s956 + $0x18] sm:$0xf]
  %v964 = vld [vmem:[%s956 + $0x1c] sm:$0xf]
  %v965 = vld [vmem:[%s956 + $0x20] sm:$0xf]
  %v966 = vld [vmem:[%s956 + $0x24] sm:$0xf]
  %v967 = vld [vmem:[%s956 + $0x28] sm:$0xf]
  %v968 = vld [vmem:[%s956 + $0x2c] sm:$0xf]
  %v969 = vld [vmem:[%s956 + $0x30] sm:$0xf]
  %v970 = vld [vmem:[%s956 + $0x34] sm:$0xf]
  %v971 = vld [vmem:[%s956 + $0x38] sm:$0xf]
  %v972 = vld [vmem:[%s956 + $0x3c] sm:$0xf]
  %s973 = scalar_lea.vmem %s5, 2
  %v974 = vld [vmem:[%s973] sm:$0x1]
  %v976 = vperm.slane %v974, 0
  %v994 = vunpack.c.l.b16 %v957
  %v995 = vunpack.c.l.b16 %v958
  %v996 = vunpack.c.l.b16 %v959
  %v997 = vunpack.c.l.b16 %v960
  %v998 = vunpack.c.l.b16 %v961
  %v999 = vunpack.c.l.b16 %v962
  %v1000 = vunpack.c.l.b16 %v963
  %v1001 = vunpack.c.l.b16 %v964
  %v1002 = vunpack.c.l.b16 %v965
  %v1003 = vunpack.c.l.b16 %v966
  %v1004 = vunpack.c.l.b16 %v967
  %v1005 = vunpack.c.l.b16 %v968
  %v1006 = vunpack.c.l.b16 %v969
  %v1007 = vunpack.c.l.b16 %v970
  %v1008 = vunpack.c.l.b16 %v971
  %v1009 = vunpack.c.l.b16 %v972
  %v1010 = vpack.c.b16 %v995, %v994
  %v1011 = vpack.c.b16 %v997, %v996
  %v1012 = vpack.c.b16 %v999, %v998
  %v1013 = vpack.c.b16 %v1001, %v1000
  %v1014 = vpack.c.b16 %v1003, %v1002
  %v1015 = vpack.c.b16 %v1005, %v1004
  %v1016 = vpack.c.b16 %v1007, %v1006
  %v1017 = vpack.c.b16 %v1009, %v1008
  %1026 = vmatpush.bf16.msra.mxu0 %v1017
  %1027 = vmatpush.bf16.msra.mxu0 %v1016
  %1028 = vmatpush.bf16.msra.mxu0 %v1015
  %1029 = vmatpush.bf16.msra.mxu0 %v1014
  %1030 = vmatpush.bf16.msra.mxu0 %v1013
  %1031 = vmatpush.bf16.msra.mxu0 %v1012
  %1032 = vmatpush.bf16.msra.mxu0 %v1011
  %1033 = vmatpush.bf16.msra.mxu0 %v1010
  %1034 = vmatmul.bf16.gmra.mxu0 %v85
  %v1035 = vpop.f32.mrf.mxu0
  %v1036 = vadd.f32 %v976, %v1035
  %v1037 = vpop.f32.mrf.mxu0
  %v1038 = vadd.f32 %v976, %v1037
  %1039 = vdwg.mxu0
  %s1040 = scalar_lea.vmem %s3, 128
  %v1041 = vld [vmem:[%s1040] sm:$0xf]
  %v1042 = vld [vmem:[%s1040 + $0x4] sm:$0xf]
  %v1043 = vld [vmem:[%s1040 + $0x8] sm:$0xf]
  %v1044 = vld [vmem:[%s1040 + $0xc] sm:$0xf]
  %v1045 = vld [vmem:[%s1040 + $0x10] sm:$0xf]
  %v1046 = vld [vmem:[%s1040 + $0x14] sm:$0xf]
  %v1047 = vld [vmem:[%s1040 + $0x18] sm:$0xf]
  %v1048 = vld [vmem:[%s1040 + $0x1c] sm:$0xf]
  %v1049 = vld [vmem:[%s1040 + $0x20] sm:$0xf]
  %v1050 = vld [vmem:[%s1040 + $0x24] sm:$0xf]
  %v1051 = vld [vmem:[%s1040 + $0x28] sm:$0xf]
  %v1052 = vld [vmem:[%s1040 + $0x2c] sm:$0xf]
  %v1053 = vld [vmem:[%s1040 + $0x30] sm:$0xf]
  %v1054 = vld [vmem:[%s1040 + $0x34] sm:$0xf]
  %v1055 = vld [vmem:[%s1040 + $0x38] sm:$0xf]
  %v1056 = vld [vmem:[%s1040 + $0x3c] sm:$0xf]
  %s1057 = scalar_lea.vmem %s6, 2
  %v1058 = vld [vmem:[%s1057] sm:$0x1]
  %v1060 = vperm.slane %v1058, 0
  %v1078 = vunpack.c.l.b16 %v1041
  %v1079 = vunpack.c.l.b16 %v1042
  %v1080 = vunpack.c.l.b16 %v1043
  %v1081 = vunpack.c.l.b16 %v1044
  %v1082 = vunpack.c.l.b16 %v1045
  %v1083 = vunpack.c.l.b16 %v1046
  %v1084 = vunpack.c.l.b16 %v1047
  %v1085 = vunpack.c.l.b16 %v1048
  %v1086 = vunpack.c.l.b16 %v1049
  %v1087 = vunpack.c.l.b16 %v1050
  %v1088 = vunpack.c.l.b16 %v1051
  %v1089 = vunpack.c.l.b16 %v1052
  %v1090 = vunpack.c.l.b16 %v1053
  %v1091 = vunpack.c.l.b16 %v1054
  %v1092 = vunpack.c.l.b16 %v1055
  %v1093 = vunpack.c.l.b16 %v1056
  %v1094 = vpack.c.b16 %v1079, %v1078
  %v1095 = vpack.c.b16 %v1081, %v1080
  %v1096 = vpack.c.b16 %v1083, %v1082
  %v1097 = vpack.c.b16 %v1085, %v1084
  %v1098 = vpack.c.b16 %v1087, %v1086
  %v1099 = vpack.c.b16 %v1089, %v1088
  %v1100 = vpack.c.b16 %v1091, %v1090
  %v1101 = vpack.c.b16 %v1093, %v1092
  %1110 = vmatpush.bf16.msra.mxu0 %v1101
  %1111 = vmatpush.bf16.msra.mxu0 %v1100
  %1112 = vmatpush.bf16.msra.mxu0 %v1099
  %1113 = vmatpush.bf16.msra.mxu0 %v1098
  %1114 = vmatpush.bf16.msra.mxu0 %v1097
  %1115 = vmatpush.bf16.msra.mxu0 %v1096
  %1116 = vmatpush.bf16.msra.mxu0 %v1095
  %1117 = vmatpush.bf16.msra.mxu0 %v1094
  %1118 = vmatmul.bf16.gmra.mxu0 %v85
  %v1119 = vpop.f32.mrf.mxu0
  %v1120 = vadd.f32 %v1060, %v1119
  %v1121 = vpop.f32.mrf.mxu0
  %v1122 = vadd.f32 %v1060, %v1121
  %1123 = vdwg.mxu0
  %v1125 = vsel %vm334, %v954, 0
  %v1128 = vsel %vm334, %v1036, 0
  %1130 = vmatpush.xpose.msra.mxu0 0.0
  %1131 = vmatpush.xpose.msra.mxu0 0.0
  %1132 = vmatpush.xpose.msra.mxu0 0.0
  %1133 = vmatpush.xpose.msra.mxu0 0.0
  %1134 = vmatpush.xpose.msra.mxu0 0.0
  %1135 = vmatpush.xpose.msra.mxu0 0.0
  %1136 = vmatpush.xpose.msra.mxu0 0.0
  %1137 = vmatpush.xpose.msra.mxu0 0.0
  %1138 = vmatpush.xpose.msra.mxu0 0.0
  %1139 = vmatpush.xpose.msra.mxu0 0.0
  %1140 = vmatpush.xpose.msra.mxu0 0.0
  %1141 = vmatpush.xpose.msra.mxu0 0.0
  %1142 = vmatpush.xpose.msra.mxu0 0.0
  %1143 = vmatpush.xpose.msra.mxu0 0.0
  %1144 = vmatpush.xpose.msra.mxu0 0.0
  %1145 = vmatpush.xpose.msra.mxu0 %v1128
  %1146 = vmatmul.f32.gmra.mxu0 %v1125
  %v1147 = vpop.f32.mrf.mxu0
  %v1148 = vadd.f32 0.0, %v1147
  %1149 = vdwg.mxu0
  %v1151 = vsel %vm334, %v955, 0
  %v1154 = vsel %vm334, %v1038, 0
  %1156 = vmatpush.xpose.msra.mxu0 0.0
  %1157 = vmatpush.xpose.msra.mxu0 0.0
  %1158 = vmatpush.xpose.msra.mxu0 0.0
  %1159 = vmatpush.xpose.msra.mxu0 0.0
  %1160 = vmatpush.xpose.msra.mxu0 0.0
  %1161 = vmatpush.xpose.msra.mxu0 0.0
  %1162 = vmatpush.xpose.msra.mxu0 0.0
  %1163 = vmatpush.xpose.msra.mxu0 0.0
  %1164 = vmatpush.xpose.msra.mxu0 0.0
  %1165 = vmatpush.xpose.msra.mxu0 0.0
  %1166 = vmatpush.xpose.msra.mxu0 0.0
  %1167 = vmatpush.xpose.msra.mxu0 0.0
  %1168 = vmatpush.xpose.msra.mxu0 0.0
  %1169 = vmatpush.xpose.msra.mxu0 0.0
  %1170 = vmatpush.xpose.msra.mxu0 0.0
  %1171 = vmatpush.xpose.msra.mxu0 %v1154
  %1172 = vmatmul.f32.gmra.mxu0 %v1151
  %v1173 = vpop.f32.mrf.mxu0
  %v1174 = vadd.f32 0.0, %v1173
  %1175 = vdwg.mxu0
  %v1176 = vsel %vm387, %v1148, -inf
  %1177 = vmax.xlane.f32.xlu0 %v1176
  %v1178 = vpop.xlane.xlu0 %1177
  %v1179 = vsel %vm387, %v1174, -inf
  %1180 = vmax.xlane.f32.xlu0 %v1179
  %v1181 = vpop.xlane.xlu0 %1180
  %v1182 = vsub.f32 %v1148, %v1178
  %v1183 = vsub.f32 %v1174, %v1181
  %v1184 = vmul.f32 %v1182, 1.442695
  %v1185 = vpow.pop %v1184
  %v1186 = vmul.f32 %v1183, 1.442695
  %v1187 = vpow.pop %v1186
  %v1188 = vsel %vm387, %v1185, 0.0
  %1189 = vadd.xlane.f32.xlu0 %v1188
  %v1190 = vpop.xlane.xlu0 %1189
  %v1191 = vsel %vm387, %v1187, 0.0
  %1192 = vadd.xlane.f32.xlu0 %v1191
  %v1193 = vpop.xlane.xlu0 %1192
  %v1194 = vrcp.pop %v1190
  %v1195 = vrcp.pop %v1193
  %v1196 = vmul.f32 %v1185, %v1194
  %v1197 = vmul.f32 %v1187, %v1195
  %v1199 = vsel %vm387, %v1196, 0
  %1201 = vmatpush.msra.mxu0 0.0
  %1202 = vmatpush.msra.mxu0 0.0
  %1203 = vmatpush.msra.mxu0 0.0
  %1204 = vmatpush.msra.mxu0 0.0
  %1205 = vmatpush.msra.mxu0 0.0
  %1206 = vmatpush.msra.mxu0 0.0
  %1207 = vmatpush.msra.mxu0 0.0
  %1208 = vmatpush.msra.mxu0 0.0
  %1209 = vmatpush.msra.mxu0 0.0
  %1210 = vmatpush.msra.mxu0 0.0
  %1211 = vmatpush.msra.mxu0 0.0
  %1212 = vmatpush.msra.mxu0 0.0
  %1213 = vmatpush.msra.mxu0 0.0
  %1214 = vmatpush.msra.mxu0 0.0
  %1215 = vmatpush.msra.mxu0 0.0
  %1216 = vmatpush.msra.mxu0 %v1120
  %1217 = vmatmul.f32.gmra.mxu0 %v1199
  %v1218 = vpop.f32.mrf.mxu0
  %v1219 = vadd.f32 0.0, %v1218
  %1220 = vdwg.mxu0
  %v1222 = vsel %vm387, %v1197, 0
  %1224 = vmatpush.msra.mxu0 0.0
  %1225 = vmatpush.msra.mxu0 0.0
  %1226 = vmatpush.msra.mxu0 0.0
  %1227 = vmatpush.msra.mxu0 0.0
  %1228 = vmatpush.msra.mxu0 0.0
  %1229 = vmatpush.msra.mxu0 0.0
  %1230 = vmatpush.msra.mxu0 0.0
  %1231 = vmatpush.msra.mxu0 0.0
  %1232 = vmatpush.msra.mxu0 0.0
  %1233 = vmatpush.msra.mxu0 0.0
  %1234 = vmatpush.msra.mxu0 0.0
  %1235 = vmatpush.msra.mxu0 0.0
  %1236 = vmatpush.msra.mxu0 0.0
  %1237 = vmatpush.msra.mxu0 0.0
  %1238 = vmatpush.msra.mxu0 0.0
  %1239 = vmatpush.msra.mxu0 %v1122
  %1240 = vmatmul.f32.gmra.mxu0 %v1222
  %v1241 = vpop.f32.mrf.mxu0
  %v1242 = vadd.f32 0.0, %v1241
  %1243 = vdwg.mxu0
  %v1244 = vpack.c.bf16 %v1242, %v1219
  %s1245 = scalar_lea.vmem %s7, 32
  %v1246 = vld [vmem:[%s1245] sm:$0xf]
  %v1247 = vld [vmem:[%s1245 + $0x4] sm:$0xf]
  %v1248 = vld [vmem:[%s1245 + $0x8] sm:$0xf]
  %v1249 = vld [vmem:[%s1245 + $0xc] sm:$0xf]
  %v1254 = vunpack.c.l.b16 %v1246
  %v1255 = vunpack.c.l.b16 %v1247
  %v1256 = vunpack.c.l.b16 %v1248
  %v1257 = vunpack.c.l.b16 %v1249
  %v1258 = vpack.c.b16 %v1255, %v1254
  %v1259 = vpack.c.b16 %v1257, %v1256
  %v1263 = vsel %vm334, %v1244, 0
  %1265 = vmatpush.bf16.msra.mxu0 0
  %1266 = vmatpush.bf16.msra.mxu0 0
  %1267 = vmatpush.bf16.msra.mxu0 0
  %1268 = vmatpush.bf16.msra.mxu0 0
  %1269 = vmatpush.bf16.msra.mxu0 0
  %1270 = vmatpush.bf16.msra.mxu0 0
  %1271 = vmatpush.bf16.msra.mxu0 %v1259
  %1272 = vmatpush.bf16.msra.mxu0 %v1258
  %1273 = vmatmul.bf16.gmra.mxu0 %v1263
  %v1274 = vpop.f32.mrf.mxu0
  %v1275 = vadd.f32 0.0, %v1274
  %v1276 = vpop.f32.mrf.mxu0
  %v1277 = vadd.f32 0.0, %v1276
  %1278 = vdwg.mxu0
  %s1279 = scalar_lea.vmem %s1, 192
  %v1280 = vld [vmem:[%s1279] sm:$0xf]
  %v1281 = vld [vmem:[%s1279 + $0x4] sm:$0xf]
  %v1282 = vld [vmem:[%s1279 + $0x8] sm:$0xf]
  %v1283 = vld [vmem:[%s1279 + $0xc] sm:$0xf]
  %v1284 = vld [vmem:[%s1279 + $0x10] sm:$0xf]
  %v1285 = vld [vmem:[%s1279 + $0x14] sm:$0xf]
  %v1286 = vld [vmem:[%s1279 + $0x18] sm:$0xf]
  %v1287 = vld [vmem:[%s1279 + $0x1c] sm:$0xf]
  %v1288 = vld [vmem:[%s1279 + $0x20] sm:$0xf]
  %v1289 = vld [vmem:[%s1279 + $0x24] sm:$0xf]
  %v1290 = vld [vmem:[%s1279 + $0x28] sm:$0xf]
  %v1291 = vld [vmem:[%s1279 + $0x2c] sm:$0xf]
  %v1292 = vld [vmem:[%s1279 + $0x30] sm:$0xf]
  %v1293 = vld [vmem:[%s1279 + $0x34] sm:$0xf]
  %v1294 = vld [vmem:[%s1279 + $0x38] sm:$0xf]
  %v1295 = vld [vmem:[%s1279 + $0x3c] sm:$0xf]
  %s1296 = scalar_lea.vmem %s4, 3
  %v1297 = vld [vmem:[%s1296] sm:$0x1]
  %v1299 = vperm.slane %v1297, 0
  %v1317 = vunpack.c.l.b16 %v1280
  %v1318 = vunpack.c.l.b16 %v1281
  %v1319 = vunpack.c.l.b16 %v1282
  %v1320 = vunpack.c.l.b16 %v1283
  %v1321 = vunpack.c.l.b16 %v1284
  %v1322 = vunpack.c.l.b16 %v1285
  %v1323 = vunpack.c.l.b16 %v1286
  %v1324 = vunpack.c.l.b16 %v1287
  %v1325 = vunpack.c.l.b16 %v1288
  %v1326 = vunpack.c.l.b16 %v1289
  %v1327 = vunpack.c.l.b16 %v1290
  %v1328 = vunpack.c.l.b16 %v1291
  %v1329 = vunpack.c.l.b16 %v1292
  %v1330 = vunpack.c.l.b16 %v1293
  %v1331 = vunpack.c.l.b16 %v1294
  %v1332 = vunpack.c.l.b16 %v1295
  %v1333 = vpack.c.b16 %v1318, %v1317
  %v1334 = vpack.c.b16 %v1320, %v1319
  %v1335 = vpack.c.b16 %v1322, %v1321
  %v1336 = vpack.c.b16 %v1324, %v1323
  %v1337 = vpack.c.b16 %v1326, %v1325
  %v1338 = vpack.c.b16 %v1328, %v1327
  %v1339 = vpack.c.b16 %v1330, %v1329
  %v1340 = vpack.c.b16 %v1332, %v1331
  %1349 = vmatpush.bf16.msra.mxu0 %v1340
  %1350 = vmatpush.bf16.msra.mxu0 %v1339
  %1351 = vmatpush.bf16.msra.mxu0 %v1338
  %1352 = vmatpush.bf16.msra.mxu0 %v1337
  %1353 = vmatpush.bf16.msra.mxu0 %v1336
  %1354 = vmatpush.bf16.msra.mxu0 %v1335
  %1355 = vmatpush.bf16.msra.mxu0 %v1334
  %1356 = vmatpush.bf16.msra.mxu0 %v1333
  %1357 = vmatmul.bf16.gmra.mxu0 %v85
  %v1358 = vpop.f32.mrf.mxu0
  %v1359 = vadd.f32 %v1299, %v1358
  %v1360 = vpop.f32.mrf.mxu0
  %v1361 = vadd.f32 %v1299, %v1360
  %1362 = vdwg.mxu0
  %v1363 = vmul.f32 %v1359, 0.17677669
  %v1364 = vmul.f32 %v1361, 0.17677669
  %s1365 = scalar_lea.vmem %s2, 192
  %v1366 = vld [vmem:[%s1365] sm:$0xf]
  %v1367 = vld [vmem:[%s1365 + $0x4] sm:$0xf]
  %v1368 = vld [vmem:[%s1365 + $0x8] sm:$0xf]
  %v1369 = vld [vmem:[%s1365 + $0xc] sm:$0xf]
  %v1370 = vld [vmem:[%s1365 + $0x10] sm:$0xf]
  %v1371 = vld [vmem:[%s1365 + $0x14] sm:$0xf]
  %v1372 = vld [vmem:[%s1365 + $0x18] sm:$0xf]
  %v1373 = vld [vmem:[%s1365 + $0x1c] sm:$0xf]
  %v1374 = vld [vmem:[%s1365 + $0x20] sm:$0xf]
  %v1375 = vld [vmem:[%s1365 + $0x24] sm:$0xf]
  %v1376 = vld [vmem:[%s1365 + $0x28] sm:$0xf]
  %v1377 = vld [vmem:[%s1365 + $0x2c] sm:$0xf]
  %v1378 = vld [vmem:[%s1365 + $0x30] sm:$0xf]
  %v1379 = vld [vmem:[%s1365 + $0x34] sm:$0xf]
  %v1380 = vld [vmem:[%s1365 + $0x38] sm:$0xf]
  %v1381 = vld [vmem:[%s1365 + $0x3c] sm:$0xf]
  %s1382 = scalar_lea.vmem %s5, 3
  %v1383 = vld [vmem:[%s1382] sm:$0x1]
  %v1385 = vperm.slane %v1383, 0
  %v1403 = vunpack.c.l.b16 %v1366
  %v1404 = vunpack.c.l.b16 %v1367
  %v1405 = vunpack.c.l.b16 %v1368
  %v1406 = vunpack.c.l.b16 %v1369
  %v1407 = vunpack.c.l.b16 %v1370
  %v1408 = vunpack.c.l.b16 %v1371
  %v1409 = vunpack.c.l.b16 %v1372
  %v1410 = vunpack.c.l.b16 %v1373
  %v1411 = vunpack.c.l.b16 %v1374
  %v1412 = vunpack.c.l.b16 %v1375
  %v1413 = vunpack.c.l.b16 %v1376
  %v1414 = vunpack.c.l.b16 %v1377
  %v1415 = vunpack.c.l.b16 %v1378
  %v1416 = vunpack.c.l.b16 %v1379
  %v1417 = vunpack.c.l.b16 %v1380
  %v1418 = vunpack.c.l.b16 %v1381
  %v1419 = vpack.c.b16 %v1404, %v1403
  %v1420 = vpack.c.b16 %v1406, %v1405
  %v1421 = vpack.c.b16 %v1408, %v1407
  %v1422 = vpack.c.b16 %v1410, %v1409
  %v1423 = vpack.c.b16 %v1412, %v1411
  %v1424 = vpack.c.b16 %v1414, %v1413
  %v1425 = vpack.c.b16 %v1416, %v1415
  %v1426 = vpack.c.b16 %v1418, %v1417
  %1435 = vmatpush.bf16.msra.mxu0 %v1426
  %1436 = vmatpush.bf16.msra.mxu0 %v1425
  %1437 = vmatpush.bf16.msra.mxu0 %v1424
  %1438 = vmatpush.bf16.msra.mxu0 %v1423
  %1439 = vmatpush.bf16.msra.mxu0 %v1422
  %1440 = vmatpush.bf16.msra.mxu0 %v1421
  %1441 = vmatpush.bf16.msra.mxu0 %v1420
  %1442 = vmatpush.bf16.msra.mxu0 %v1419
  %1443 = vmatmul.bf16.gmra.mxu0 %v85
  %v1444 = vpop.f32.mrf.mxu0
  %v1445 = vadd.f32 %v1385, %v1444
  %v1446 = vpop.f32.mrf.mxu0
  %v1447 = vadd.f32 %v1385, %v1446
  %1448 = vdwg.mxu0
  %s1449 = scalar_lea.vmem %s3, 192
  %v1450 = vld [vmem:[%s1449] sm:$0xf]
  %v1451 = vld [vmem:[%s1449 + $0x4] sm:$0xf]
  %v1452 = vld [vmem:[%s1449 + $0x8] sm:$0xf]
  %v1453 = vld [vmem:[%s1449 + $0xc] sm:$0xf]
  %v1454 = vld [vmem:[%s1449 + $0x10] sm:$0xf]
  %v1455 = vld [vmem:[%s1449 + $0x14] sm:$0xf]
  %v1456 = vld [vmem:[%s1449 + $0x18] sm:$0xf]
  %v1457 = vld [vmem:[%s1449 + $0x1c] sm:$0xf]
  %v1458 = vld [vmem:[%s1449 + $0x20] sm:$0xf]
  %v1459 = vld [vmem:[%s1449 + $0x24] sm:$0xf]
  %v1460 = vld [vmem:[%s1449 + $0x28] sm:$0xf]
  %v1461 = vld [vmem:[%s1449 + $0x2c] sm:$0xf]
  %v1462 = vld [vmem:[%s1449 + $0x30] sm:$0xf]
  %v1463 = vld [vmem:[%s1449 + $0x34] sm:$0xf]
  %v1464 = vld [vmem:[%s1449 + $0x38] sm:$0xf]
  %v1465 = vld [vmem:[%s1449 + $0x3c] sm:$0xf]
  %s1466 = scalar_lea.vmem %s6, 3
  %v1467 = vld [vmem:[%s1466] sm:$0x1]
  %v1469 = vperm.slane %v1467, 0
  %v1487 = vunpack.c.l.b16 %v1450
  %v1488 = vunpack.c.l.b16 %v1451
  %v1489 = vunpack.c.l.b16 %v1452
  %v1490 = vunpack.c.l.b16 %v1453
  %v1491 = vunpack.c.l.b16 %v1454
  %v1492 = vunpack.c.l.b16 %v1455
  %v1493 = vunpack.c.l.b16 %v1456
  %v1494 = vunpack.c.l.b16 %v1457
  %v1495 = vunpack.c.l.b16 %v1458
  %v1496 = vunpack.c.l.b16 %v1459
  %v1497 = vunpack.c.l.b16 %v1460
  %v1498 = vunpack.c.l.b16 %v1461
  %v1499 = vunpack.c.l.b16 %v1462
  %v1500 = vunpack.c.l.b16 %v1463
  %v1501 = vunpack.c.l.b16 %v1464
  %v1502 = vunpack.c.l.b16 %v1465
  %v1503 = vpack.c.b16 %v1488, %v1487
  %v1504 = vpack.c.b16 %v1490, %v1489
  %v1505 = vpack.c.b16 %v1492, %v1491
  %v1506 = vpack.c.b16 %v1494, %v1493
  %v1507 = vpack.c.b16 %v1496, %v1495
  %v1508 = vpack.c.b16 %v1498, %v1497
  %v1509 = vpack.c.b16 %v1500, %v1499
  %v1510 = vpack.c.b16 %v1502, %v1501
  %1519 = vmatpush.bf16.msra.mxu0 %v1510
  %1520 = vmatpush.bf16.msra.mxu0 %v1509
  %1521 = vmatpush.bf16.msra.mxu0 %v1508
  %1522 = vmatpush.bf16.msra.mxu0 %v1507
  %1523 = vmatpush.bf16.msra.mxu0 %v1506
  %1524 = vmatpush.bf16.msra.mxu0 %v1505
  %1525 = vmatpush.bf16.msra.mxu0 %v1504
  %1526 = vmatpush.bf16.msra.mxu0 %v1503
  %1527 = vmatmul.bf16.gmra.mxu0 %v85
  %v1528 = vpop.f32.mrf.mxu0
  %v1529 = vadd.f32 %v1469, %v1528
  %v1530 = vpop.f32.mrf.mxu0
  %v1531 = vadd.f32 %v1469, %v1530
  %1532 = vdwg.mxu0
  %v1534 = vsel %vm334, %v1363, 0
  %v1537 = vsel %vm334, %v1445, 0
  %1539 = vmatpush.xpose.msra.mxu0 0.0
  %1540 = vmatpush.xpose.msra.mxu0 0.0
  %1541 = vmatpush.xpose.msra.mxu0 0.0
  %1542 = vmatpush.xpose.msra.mxu0 0.0
  %1543 = vmatpush.xpose.msra.mxu0 0.0
  %1544 = vmatpush.xpose.msra.mxu0 0.0
  %1545 = vmatpush.xpose.msra.mxu0 0.0
  %1546 = vmatpush.xpose.msra.mxu0 0.0
  %1547 = vmatpush.xpose.msra.mxu0 0.0
  %1548 = vmatpush.xpose.msra.mxu0 0.0
  %1549 = vmatpush.xpose.msra.mxu0 0.0
  %1550 = vmatpush.xpose.msra.mxu0 0.0
  %1551 = vmatpush.xpose.msra.mxu0 0.0
  %1552 = vmatpush.xpose.msra.mxu0 0.0
  %1553 = vmatpush.xpose.msra.mxu0 0.0
  %1554 = vmatpush.xpose.msra.mxu0 %v1537
  %1555 = vmatmul.f32.gmra.mxu0 %v1534
  %v1556 = vpop.f32.mrf.mxu0
  %v1557 = vadd.f32 0.0, %v1556
  %1558 = vdwg.mxu0
  %v1560 = vsel %vm334, %v1364, 0
  %v1563 = vsel %vm334, %v1447, 0
  %1565 = vmatpush.xpose.msra.mxu0 0.0
  %1566 = vmatpush.xpose.msra.mxu0 0.0
  %1567 = vmatpush.xpose.msra.mxu0 0.0
  %1568 = vmatpush.xpose.msra.mxu0 0.0
  %1569 = vmatpush.xpose.msra.mxu0 0.0
  %1570 = vmatpush.xpose.msra.mxu0 0.0
  %1571 = vmatpush.xpose.msra.mxu0 0.0
  %1572 = vmatpush.xpose.msra.mxu0 0.0
  %1573 = vmatpush.xpose.msra.mxu0 0.0
  %1574 = vmatpush.xpose.msra.mxu0 0.0
  %1575 = vmatpush.xpose.msra.mxu0 0.0
  %1576 = vmatpush.xpose.msra.mxu0 0.0
  %1577 = vmatpush.xpose.msra.mxu0 0.0
  %1578 = vmatpush.xpose.msra.mxu0 0.0
  %1579 = vmatpush.xpose.msra.mxu0 0.0
  %1580 = vmatpush.xpose.msra.mxu0 %v1563
  %1581 = vmatmul.f32.gmra.mxu0 %v1560
  %v1582 = vpop.f32.mrf.mxu0
  %v1583 = vadd.f32 0.0, %v1582
  %1584 = vdwg.mxu0
  %v1585 = vsel %vm387, %v1557, -inf
  %1586 = vmax.xlane.f32.xlu0 %v1585
  %v1587 = vpop.xlane.xlu0 %1586
  %v1588 = vsel %vm387, %v1583, -inf
  %1589 = vmax.xlane.f32.xlu0 %v1588
  %v1590 = vpop.xlane.xlu0 %1589
  %v1591 = vsub.f32 %v1557, %v1587
  %v1592 = vsub.f32 %v1583, %v1590
  %v1593 = vmul.f32 %v1591, 1.442695
  %v1594 = vpow.pop %v1593
  %v1595 = vmul.f32 %v1592, 1.442695
  %v1596 = vpow.pop %v1595
  %v1597 = vsel %vm387, %v1594, 0.0
  %1598 = vadd.xlane.f32.xlu0 %v1597
  %v1599 = vpop.xlane.xlu0 %1598
  %v1600 = vsel %vm387, %v1596, 0.0
  %1601 = vadd.xlane.f32.xlu0 %v1600
  %v1602 = vpop.xlane.xlu0 %1601
  %v1603 = vrcp.pop %v1599
  %v1604 = vrcp.pop %v1602
  %v1605 = vmul.f32 %v1594, %v1603
  %v1606 = vmul.f32 %v1596, %v1604
  %v1608 = vsel %vm387, %v1605, 0
  %1610 = vmatpush.msra.mxu0 0.0
  %1611 = vmatpush.msra.mxu0 0.0
  %1612 = vmatpush.msra.mxu0 0.0
  %1613 = vmatpush.msra.mxu0 0.0
  %1614 = vmatpush.msra.mxu0 0.0
  %1615 = vmatpush.msra.mxu0 0.0
  %1616 = vmatpush.msra.mxu0 0.0
  %1617 = vmatpush.msra.mxu0 0.0
  %1618 = vmatpush.msra.mxu0 0.0
  %1619 = vmatpush.msra.mxu0 0.0
  %1620 = vmatpush.msra.mxu0 0.0
  %1621 = vmatpush.msra.mxu0 0.0
  %1622 = vmatpush.msra.mxu0 0.0
  %1623 = vmatpush.msra.mxu0 0.0
  %1624 = vmatpush.msra.mxu0 0.0
  %1625 = vmatpush.msra.mxu0 %v1529
  %1626 = vmatmul.f32.gmra.mxu0 %v1608
  %v1627 = vpop.f32.mrf.mxu0
  %v1628 = vadd.f32 0.0, %v1627
  %1629 = vdwg.mxu0
  %v1631 = vsel %vm387, %v1606, 0
  %1633 = vmatpush.msra.mxu0 0.0
  %1634 = vmatpush.msra.mxu0 0.0
  %1635 = vmatpush.msra.mxu0 0.0
  %1636 = vmatpush.msra.mxu0 0.0
  %1637 = vmatpush.msra.mxu0 0.0
  %1638 = vmatpush.msra.mxu0 0.0
  %1639 = vmatpush.msra.mxu0 0.0
  %1640 = vmatpush.msra.mxu0 0.0
  %1641 = vmatpush.msra.mxu0 0.0
  %1642 = vmatpush.msra.mxu0 0.0
  %1643 = vmatpush.msra.mxu0 0.0
  %1644 = vmatpush.msra.mxu0 0.0
  %1645 = vmatpush.msra.mxu0 0.0
  %1646 = vmatpush.msra.mxu0 0.0
  %1647 = vmatpush.msra.mxu0 0.0
  %1648 = vmatpush.msra.mxu0 %v1531
  %1649 = vmatmul.f32.gmra.mxu0 %v1631
  %v1650 = vpop.f32.mrf.mxu0
  %v1651 = vadd.f32 0.0, %v1650
  %1652 = vdwg.mxu0
  %v1653 = vpack.c.bf16 %v1651, %v1628
  %s1654 = scalar_lea.vmem %s7, 48
  %v1655 = vld [vmem:[%s1654] sm:$0xf]
  %v1656 = vld [vmem:[%s1654 + $0x4] sm:$0xf]
  %v1657 = vld [vmem:[%s1654 + $0x8] sm:$0xf]
  %v1658 = vld [vmem:[%s1654 + $0xc] sm:$0xf]
  %v1663 = vunpack.c.l.b16 %v1655
  %v1664 = vunpack.c.l.b16 %v1656
  %v1665 = vunpack.c.l.b16 %v1657
  %v1666 = vunpack.c.l.b16 %v1658
  %v1667 = vpack.c.b16 %v1664, %v1663
  %v1668 = vpack.c.b16 %v1666, %v1665
  %v1672 = vsel %vm334, %v1653, 0
  %1674 = vmatpush.bf16.msra.mxu0 0
  %1675 = vmatpush.bf16.msra.mxu0 0
  %1676 = vmatpush.bf16.msra.mxu0 0
  %1677 = vmatpush.bf16.msra.mxu0 0
  %1678 = vmatpush.bf16.msra.mxu0 0
  %1679 = vmatpush.bf16.msra.mxu0 0
  %1680 = vmatpush.bf16.msra.mxu0 %v1668
  %1681 = vmatpush.bf16.msra.mxu0 %v1667
  %1682 = vmatmul.bf16.gmra.mxu0 %v1672
  %v1683 = vpop.f32.mrf.mxu0
  %v1684 = vadd.f32 0.0, %v1683
  %v1685 = vpop.f32.mrf.mxu0
  %v1686 = vadd.f32 0.0, %v1685
  %1687 = vdwg.mxu0
  %v1692 = vunpack.c.l.b16 %v457
  %v1693 = vunpack.c.l.b16 %v458
  %v1694 = vunpack.c.l.b16 %v459
  %v1695 = vunpack.c.l.b16 %v460
  %v1696 = vpack.c.b16 %v1693, %v1692
  %v1697 = vpack.c.b16 %v1695, %v1694
  %v1701 = vsel %vm334, %v456, 0
  %1703 = vmatpush.bf16.msra.mxu0 0
  %1704 = vmatpush.bf16.msra.mxu0 0
  %1705 = vmatpush.bf16.msra.mxu0 0
  %1706 = vmatpush.bf16.msra.mxu0 0
  %1707 = vmatpush.bf16.msra.mxu0 0
  %1708 = vmatpush.bf16.msra.mxu0 0
  %1709 = vmatpush.bf16.msra.mxu0 %v1697
  %1710 = vmatpush.bf16.msra.mxu0 %v1696
  %1711 = vmatmul.bf16.gmra.mxu0 %v1701
  %v1712 = vpop.f32.mrf.mxu0
  %v1713 = vadd.f32 %v866, %v1712
  %v1714 = vpop.f32.mrf.mxu0
  %v1715 = vadd.f32 %v868, %v1714
  %1716 = vdwg.mxu0
  %v1717 = vadd.f32 %v1713, %v1275
  %v1718 = vadd.f32 %v1715, %v1277
  %v1719 = vadd.f32 %v1717, %v1684
  %v1720 = vadd.f32 %v1718, %v1686
  %v1721 = vld [vmem:[%s8] sm:$0x1]
  %v1723 = vperm.slane %v1721, 0
  %v1725 = vadd.f32 %v1719, %v1723
  %v1726 = vadd.f32 %v1720, %v1723
  %v1727 = vadd.f32 %v83, %v1725
  %v1728 = vadd.f32 %v84, %v1726
  %v1729 = vld [vmem:[%s9] sm:$0x1]
  %v1730 = vld [vmem:[%s10] sm:$0x1]
  %1731 = vadd.xlane.f32.xlu0 %v1727
  %v1732 = vpop.xlane.xlu0 %1731
  %1733 = vadd.xlane.f32.xlu0 %v1728
  %v1734 = vpop.xlane.xlu0 %1733
  %v1735 = vrcp.pop 128.0
  %v1736 = vmul.f32 128.0, %v1735
  %v1737 = vsub.f32 1.0, %v1736
  %v1738 = vmul.f32 %v1735, %v1737
  %v1739 = vadd.f32 %v1735, %v1738
  %vm1740 = vweird.f32 %v1735
  %v1741 = vsel %vm1740, %v1735, %v1739
  %v1742 = vmul.f32 %v1732, %v1741
  %v1743 = vmul.f32 %v1734, %v1741
  %v1744 = vsub.f32 %v1727, %v1742
  %v1745 = vsub.f32 %v1728, %v1743
  %v1746 = vmul.f32 %v1744, %v1744
  %v1747 = vmul.f32 %v1745, %v1745
  %1748 = vadd.xlane.f32.xlu0 %v1746
  %v1749 = vpop.xlane.xlu0 %1748
  %1750 = vadd.xlane.f32.xlu0 %v1747
  %v1751 = vpop.xlane.xlu0 %1750
  %v1752 = vmul.f32 %v1749, %v1741
  %v1753 = vmul.f32 %v1751, %v1741
  %v1754 = vadd.f32 %v1752, 1e-05
  %v1755 = vadd.f32 %v1753, 1e-05
  %v1756 = vrsqrt.pop %v1754
  %v1757 = vmul.f32 %v1756, %v1754
  %v1758 = vmul.f32 %v1757, %v1756
  %v1759 = vmul.f32 0.5, %v1758
  %v1760 = vsub.f32 1.5, %v1759
  %v1761 = vmul.f32 %v1756, %v1760
  %vm1762 = vweird.f32 %v1754
  %vm1763 = vweird.f32 %v1756
  %vm1764 = vmor %vm1762, %vm1763
  %v1765 = vsel %vm1764, %v1756, %v1761
  %v1766 = vrsqrt.pop %v1755
  %v1767 = vmul.f32 %v1766, %v1755
  %v1768 = vmul.f32 %v1767, %v1766
  %v1769 = vmul.f32 0.5, %v1768
  %v1770 = vsub.f32 1.5, %v1769
  %v1771 = vmul.f32 %v1766, %v1770
  %vm1772 = vweird.f32 %v1755
  %vm1773 = vweird.f32 %v1766
  %vm1774 = vmor %vm1772, %vm1773
  %v1775 = vsel %vm1774, %v1766, %v1771
  %v1776 = vmul.f32 %v1744, %v1765
  %v1777 = vmul.f32 %v1745, %v1775
  %v1779 = vperm.slane %v1729, 0
  %v1781 = vmul.f32 %v1776, %v1779
  %v1782 = vmul.f32 %v1777, %v1779
  %v1784 = vperm.slane %v1730, 0
  %v1786 = vadd.f32 %v1781, %v1784
  %v1787 = vadd.f32 %v1782, %v1784
  %v1788 = vpack.c.bf16 %v1787, %v1786
  %v1789 = vld [vmem:[%s11] sm:$0xf]
  %v1790 = vld [vmem:[%s11 + $0x4] sm:$0xf]
  %v1791 = vld [vmem:[%s11 + $0x8] sm:$0xf]
  %v1792 = vld [vmem:[%s11 + $0xc] sm:$0xf]
  %v1793 = vld [vmem:[%s11 + $0x10] sm:$0xf]
  %v1794 = vld [vmem:[%s11 + $0x14] sm:$0xf]
  %v1795 = vld [vmem:[%s11 + $0x18] sm:$0xf]
  %v1796 = vld [vmem:[%s11 + $0x1c] sm:$0xf]
  %v1797 = vld [vmem:[%s11 + $0x20] sm:$0xf]
  %v1798 = vld [vmem:[%s11 + $0x24] sm:$0xf]
  %v1799 = vld [vmem:[%s11 + $0x28] sm:$0xf]
  %v1800 = vld [vmem:[%s11 + $0x2c] sm:$0xf]
  %v1801 = vld [vmem:[%s11 + $0x30] sm:$0xf]
  %v1802 = vld [vmem:[%s11 + $0x34] sm:$0xf]
  %v1803 = vld [vmem:[%s11 + $0x38] sm:$0xf]
  %v1804 = vld [vmem:[%s11 + $0x3c] sm:$0xf]
  %v1805 = vld [vmem:[%s12] sm:$0x1]
  %v1807 = vperm.slane %v1805, 0
  %v1825 = vunpack.c.l.b16 %v1789
  %v1826 = vunpack.c.l.b16 %v1790
  %v1827 = vunpack.c.l.b16 %v1791
  %v1828 = vunpack.c.l.b16 %v1792
  %v1829 = vunpack.c.l.b16 %v1793
  %v1830 = vunpack.c.l.b16 %v1794
  %v1831 = vunpack.c.l.b16 %v1795
  %v1832 = vunpack.c.l.b16 %v1796
  %v1833 = vunpack.c.l.b16 %v1797
  %v1834 = vunpack.c.l.b16 %v1798
  %v1835 = vunpack.c.l.b16 %v1799
  %v1836 = vunpack.c.l.b16 %v1800
  %v1837 = vunpack.c.l.b16 %v1801
  %v1838 = vunpack.c.l.b16 %v1802
  %v1839 = vunpack.c.l.b16 %v1803
  %v1840 = vunpack.c.l.b16 %v1804
  %v1841 = vpack.c.b16 %v1826, %v1825
  %v1842 = vpack.c.b16 %v1828, %v1827
  %v1843 = vpack.c.b16 %v1830, %v1829
  %v1844 = vpack.c.b16 %v1832, %v1831
  %v1845 = vpack.c.b16 %v1834, %v1833
  %v1846 = vpack.c.b16 %v1836, %v1835
  %v1847 = vpack.c.b16 %v1838, %v1837
  %v1848 = vpack.c.b16 %v1840, %v1839
  %1857 = vmatpush.bf16.msra.mxu0 %v1848
  %1858 = vmatpush.bf16.msra.mxu0 %v1847
  %1859 = vmatpush.bf16.msra.mxu0 %v1846
  %1860 = vmatpush.bf16.msra.mxu0 %v1845
  %1861 = vmatpush.bf16.msra.mxu0 %v1844
  %1862 = vmatpush.bf16.msra.mxu0 %v1843
  %1863 = vmatpush.bf16.msra.mxu0 %v1842
  %1864 = vmatpush.bf16.msra.mxu0 %v1841
  %1865 = vmatmul.bf16.gmra.mxu0 %v1788
  %v1866 = vpop.f32.mrf.mxu0
  %v1867 = vadd.f32 %v1807, %v1866
  %v1868 = vpop.f32.mrf.mxu0
  %v1869 = vadd.f32 %v1807, %v1868
  %1870 = vdwg.mxu0
  %v1871 = vmax.f32 %v1867, 0.0
  %v1872 = vmax.f32 %v1869, 0.0
  %v1873 = vpack.c.bf16 %v1872, %v1871
  %v1874 = vld [vmem:[%s13] sm:$0xf]
  %v1875 = vld [vmem:[%s13 + $0x4] sm:$0xf]
  %v1876 = vld [vmem:[%s13 + $0x8] sm:$0xf]
  %v1877 = vld [vmem:[%s13 + $0xc] sm:$0xf]
  %v1878 = vld [vmem:[%s13 + $0x10] sm:$0xf]
  %v1879 = vld [vmem:[%s13 + $0x14] sm:$0xf]
  %v1880 = vld [vmem:[%s13 + $0x18] sm:$0xf]
  %v1881 = vld [vmem:[%s13 + $0x1c] sm:$0xf]
  %v1882 = vld [vmem:[%s14] sm:$0x1]
  %v1884 = vperm.slane %v1882, 0
  %v1894 = vunpack.c.l.b16 %v1874
  %v1895 = vunpack.c.l.b16 %v1875
  %v1896 = vunpack.c.l.b16 %v1876
  %v1897 = vunpack.c.l.b16 %v1877
  %v1898 = vunpack.c.l.b16 %v1878
  %v1899 = vunpack.c.l.b16 %v1879
  %v1900 = vunpack.c.l.b16 %v1880
  %v1901 = vunpack.c.l.b16 %v1881
  %v1902 = vpack.c.b16 %v1895, %v1894
  %v1903 = vpack.c.b16 %v1897, %v1896
  %v1904 = vpack.c.b16 %v1899, %v1898
  %v1905 = vpack.c.b16 %v1901, %v1900
  %vm1910 = vcmask 523264
  %v1912 = vsel %vm1910, %v1873, 0
  %1914 = vmatpush.bf16.msra.mxu0 0
  %1915 = vmatpush.bf16.msra.mxu0 0
  %1916 = vmatpush.bf16.msra.mxu0 0
  %1917 = vmatpush.bf16.msra.mxu0 0
  %1918 = vmatpush.bf16.msra.mxu0 %v1905
  %1919 = vmatpush.bf16.msra.mxu0 %v1904
  %1920 = vmatpush.bf16.msra.mxu0 %v1903
  %1921 = vmatpush.bf16.msra.mxu0 %v1902
  %1922 = vmatmul.bf16.gmra.mxu0 %v1912
  %v1923 = vpop.f32.mrf.mxu0
  %v1924 = vadd.f32 %v1884, %v1923
  %v1925 = vpop.f32.mrf.mxu0
  %v1926 = vadd.f32 %v1884, %v1925
  %1927 = vdwg.mxu0
  %v1928 = vadd.f32 %v1786, %v1924
  %v1929 = vadd.f32 %v1787, %v1926
  %v1930 = vld [vmem:[%s15] sm:$0x1]
  %v1931 = vld [vmem:[%s16] sm:$0x1]
  %1932 = vadd.xlane.f32.xlu0 %v1928
  %v1933 = vpop.xlane.xlu0 %1932
  %1934 = vadd.xlane.f32.xlu0 %v1929
  %v1935 = vpop.xlane.xlu0 %1934
  %v1936 = vmul.f32 %v1933, %v1741
  %v1937 = vmul.f32 %v1935, %v1741
  %v1938 = vsub.f32 %v1928, %v1936
  %v1939 = vsub.f32 %v1929, %v1937
  %v1940 = vmul.f32 %v1938, %v1938
  %v1941 = vmul.f32 %v1939, %v1939
  %1942 = vadd.xlane.f32.xlu0 %v1940
  %v1943 = vpop.xlane.xlu0 %1942
  %1944 = vadd.xlane.f32.xlu0 %v1941
  %v1945 = vpop.xlane.xlu0 %1944
  %v1946 = vmul.f32 %v1943, %v1741
  %v1947 = vmul.f32 %v1945, %v1741
  %v1948 = vadd.f32 %v1946, 1e-05
  %v1949 = vadd.f32 %v1947, 1e-05
  %v1950 = vrsqrt.pop %v1948
  %v1951 = vmul.f32 %v1950, %v1948
  %v1952 = vmul.f32 %v1951, %v1950
  %v1953 = vmul.f32 0.5, %v1952
  %v1954 = vsub.f32 1.5, %v1953
  %v1955 = vmul.f32 %v1950, %v1954
  %vm1956 = vweird.f32 %v1948
  %vm1957 = vweird.f32 %v1950
  %vm1958 = vmor %vm1956, %vm1957
  %v1959 = vsel %vm1958, %v1950, %v1955
  %v1960 = vrsqrt.pop %v1949
  %v1961 = vmul.f32 %v1960, %v1949
  %v1962 = vmul.f32 %v1961, %v1960
  %v1963 = vmul.f32 0.5, %v1962
  %v1964 = vsub.f32 1.5, %v1963
  %v1965 = vmul.f32 %v1960, %v1964
  %vm1966 = vweird.f32 %v1949
  %vm1967 = vweird.f32 %v1960
  %vm1968 = vmor %vm1966, %vm1967
  %v1969 = vsel %vm1968, %v1960, %v1965
  %v1970 = vmul.f32 %v1938, %v1959
  %v1971 = vmul.f32 %v1939, %v1969
  %v1973 = vperm.slane %v1930, 0
  %v1975 = vmul.f32 %v1970, %v1973
  %v1976 = vmul.f32 %v1971, %v1973
  %v1978 = vperm.slane %v1931, 0
  %v1980 = vadd.f32 %v1975, %v1978
  %v1981 = vadd.f32 %v1976, %v1978
  %v1982 = vpack.c.bf16 %v1981, %v1980
  %s1983 = scalar_lea.vmem %s1, 256
  %v1984 = vld [vmem:[%s1983] sm:$0xf]
  %v1985 = vld [vmem:[%s1983 + $0x4] sm:$0xf]
  %v1986 = vld [vmem:[%s1983 + $0x8] sm:$0xf]
  %v1987 = vld [vmem:[%s1983 + $0xc] sm:$0xf]
  %v1988 = vld [vmem:[%s1983 + $0x10] sm:$0xf]
  %v1989 = vld [vmem:[%s1983 + $0x14] sm:$0xf]
  %v1990 = vld [vmem:[%s1983 + $0x18] sm:$0xf]
  %v1991 = vld [vmem:[%s1983 + $0x1c] sm:$0xf]
  %v1992 = vld [vmem:[%s1983 + $0x20] sm:$0xf]
  %v1993 = vld [vmem:[%s1983 + $0x24] sm:$0xf]
  %v1994 = vld [vmem:[%s1983 + $0x28] sm:$0xf]
  %v1995 = vld [vmem:[%s1983 + $0x2c] sm:$0xf]
  %v1996 = vld [vmem:[%s1983 + $0x30] sm:$0xf]
  %v1997 = vld [vmem:[%s1983 + $0x34] sm:$0xf]
  %v1998 = vld [vmem:[%s1983 + $0x38] sm:$0xf]
  %v1999 = vld [vmem:[%s1983 + $0x3c] sm:$0xf]
  %s2000 = scalar_lea.vmem %s4, 4
  %v2001 = vld [vmem:[%s2000] sm:$0x1]
  %v2003 = vperm.slane %v2001, 0
  %v2021 = vunpack.c.l.b16 %v1984
  %v2022 = vunpack.c.l.b16 %v1985
  %v2023 = vunpack.c.l.b16 %v1986
  %v2024 = vunpack.c.l.b16 %v1987
  %v2025 = vunpack.c.l.b16 %v1988
  %v2026 = vunpack.c.l.b16 %v1989
  %v2027 = vunpack.c.l.b16 %v1990
  %v2028 = vunpack.c.l.b16 %v1991
  %v2029 = vunpack.c.l.b16 %v1992
  %v2030 = vunpack.c.l.b16 %v1993
  %v2031 = vunpack.c.l.b16 %v1994
  %v2032 = vunpack.c.l.b16 %v1995
  %v2033 = vunpack.c.l.b16 %v1996
  %v2034 = vunpack.c.l.b16 %v1997
  %v2035 = vunpack.c.l.b16 %v1998
  %v2036 = vunpack.c.l.b16 %v1999
  %v2037 = vpack.c.b16 %v2022, %v2021
  %v2038 = vpack.c.b16 %v2024, %v2023
  %v2039 = vpack.c.b16 %v2026, %v2025
  %v2040 = vpack.c.b16 %v2028, %v2027
  %v2041 = vpack.c.b16 %v2030, %v2029
  %v2042 = vpack.c.b16 %v2032, %v2031
  %v2043 = vpack.c.b16 %v2034, %v2033
  %v2044 = vpack.c.b16 %v2036, %v2035
  %2053 = vmatpush.bf16.msra.mxu0 %v2044
  %2054 = vmatpush.bf16.msra.mxu0 %v2043
  %2055 = vmatpush.bf16.msra.mxu0 %v2042
  %2056 = vmatpush.bf16.msra.mxu0 %v2041
  %2057 = vmatpush.bf16.msra.mxu0 %v2040
  %2058 = vmatpush.bf16.msra.mxu0 %v2039
  %2059 = vmatpush.bf16.msra.mxu0 %v2038
  %2060 = vmatpush.bf16.msra.mxu0 %v2037
  %2061 = vmatmul.bf16.gmra.mxu0 %v1982
  %v2062 = vpop.f32.mrf.mxu0
  %v2063 = vadd.f32 %v2003, %v2062
  %v2064 = vpop.f32.mrf.mxu0
  %v2065 = vadd.f32 %v2003, %v2064
  %2066 = vdwg.mxu0
  %v2067 = vmul.f32 %v2063, 0.17677669
  %v2068 = vmul.f32 %v2065, 0.17677669
  %s2069 = scalar_lea.vmem %s2, 256
  %v2070 = vld [vmem:[%s2069] sm:$0xf]
  %v2071 = vld [vmem:[%s2069 + $0x4] sm:$0xf]
  %v2072 = vld [vmem:[%s2069 + $0x8] sm:$0xf]
  %v2073 = vld [vmem:[%s2069 + $0xc] sm:$0xf]
  %v2074 = vld [vmem:[%s2069 + $0x10] sm:$0xf]
  %v2075 = vld [vmem:[%s2069 + $0x14] sm:$0xf]
  %v2076 = vld [vmem:[%s2069 + $0x18] sm:$0xf]
  %v2077 = vld [vmem:[%s2069 + $0x1c] sm:$0xf]
  %v2078 = vld [vmem:[%s2069 + $0x20] sm:$0xf]
  %v2079 = vld [vmem:[%s2069 + $0x24] sm:$0xf]
  %v2080 = vld [vmem:[%s2069 + $0x28] sm:$0xf]
  %v2081 = vld [vmem:[%s2069 + $0x2c] sm:$0xf]
  %v2082 = vld [vmem:[%s2069 + $0x30] sm:$0xf]
  %v2083 = vld [vmem:[%s2069 + $0x34] sm:$0xf]
  %v2084 = vld [vmem:[%s2069 + $0x38] sm:$0xf]
  %v2085 = vld [vmem:[%s2069 + $0x3c] sm:$0xf]
  %s2086 = scalar_lea.vmem %s5, 4
  %v2087 = vld [vmem:[%s2086] sm:$0x1]
  %v2089 = vperm.slane %v2087, 0
  %v2107 = vunpack.c.l.b16 %v2070
  %v2108 = vunpack.c.l.b16 %v2071
  %v2109 = vunpack.c.l.b16 %v2072
  %v2110 = vunpack.c.l.b16 %v2073
  %v2111 = vunpack.c.l.b16 %v2074
  %v2112 = vunpack.c.l.b16 %v2075
  %v2113 = vunpack.c.l.b16 %v2076
  %v2114 = vunpack.c.l.b16 %v2077
  %v2115 = vunpack.c.l.b16 %v2078
  %v2116 = vunpack.c.l.b16 %v2079
  %v2117 = vunpack.c.l.b16 %v2080
  %v2118 = vunpack.c.l.b16 %v2081
  %v2119 = vunpack.c.l.b16 %v2082
  %v2120 = vunpack.c.l.b16 %v2083
  %v2121 = vunpack.c.l.b16 %v2084
  %v2122 = vunpack.c.l.b16 %v2085
  %v2123 = vpack.c.b16 %v2108, %v2107
  %v2124 = vpack.c.b16 %v2110, %v2109
  %v2125 = vpack.c.b16 %v2112, %v2111
  %v2126 = vpack.c.b16 %v2114, %v2113
  %v2127 = vpack.c.b16 %v2116, %v2115
  %v2128 = vpack.c.b16 %v2118, %v2117
  %v2129 = vpack.c.b16 %v2120, %v2119
  %v2130 = vpack.c.b16 %v2122, %v2121
  %2139 = vmatpush.bf16.msra.mxu0 %v2130
  %2140 = vmatpush.bf16.msra.mxu0 %v2129
  %2141 = vmatpush.bf16.msra.mxu0 %v2128
  %2142 = vmatpush.bf16.msra.mxu0 %v2127
  %2143 = vmatpush.bf16.msra.mxu0 %v2126
  %2144 = vmatpush.bf16.msra.mxu0 %v2125
  %2145 = vmatpush.bf16.msra.mxu0 %v2124
  %2146 = vmatpush.bf16.msra.mxu0 %v2123
  %2147 = vmatmul.bf16.gmra.mxu0 %v1982
  %v2148 = vpop.f32.mrf.mxu0
  %v2149 = vadd.f32 %v2089, %v2148
  %v2150 = vpop.f32.mrf.mxu0
  %v2151 = vadd.f32 %v2089, %v2150
  %2152 = vdwg.mxu0
  %s2153 = scalar_lea.vmem %s3, 256
  %v2154 = vld [vmem:[%s2153] sm:$0xf]
  %v2155 = vld [vmem:[%s2153 + $0x4] sm:$0xf]
  %v2156 = vld [vmem:[%s2153 + $0x8] sm:$0xf]
  %v2157 = vld [vmem:[%s2153 + $0xc] sm:$0xf]
  %v2158 = vld [vmem:[%s2153 + $0x10] sm:$0xf]
  %v2159 = vld [vmem:[%s2153 + $0x14] sm:$0xf]
  %v2160 = vld [vmem:[%s2153 + $0x18] sm:$0xf]
  %v2161 = vld [vmem:[%s2153 + $0x1c] sm:$0xf]
  %v2162 = vld [vmem:[%s2153 + $0x20] sm:$0xf]
  %v2163 = vld [vmem:[%s2153 + $0x24] sm:$0xf]
  %v2164 = vld [vmem:[%s2153 + $0x28] sm:$0xf]
  %v2165 = vld [vmem:[%s2153 + $0x2c] sm:$0xf]
  %v2166 = vld [vmem:[%s2153 + $0x30] sm:$0xf]
  %v2167 = vld [vmem:[%s2153 + $0x34] sm:$0xf]
  %v2168 = vld [vmem:[%s2153 + $0x38] sm:$0xf]
  %v2169 = vld [vmem:[%s2153 + $0x3c] sm:$0xf]
  %s2170 = scalar_lea.vmem %s6, 4
  %v2171 = vld [vmem:[%s2170] sm:$0x1]
  %v2173 = vperm.slane %v2171, 0
  %v2191 = vunpack.c.l.b16 %v2154
  %v2192 = vunpack.c.l.b16 %v2155
  %v2193 = vunpack.c.l.b16 %v2156
  %v2194 = vunpack.c.l.b16 %v2157
  %v2195 = vunpack.c.l.b16 %v2158
  %v2196 = vunpack.c.l.b16 %v2159
  %v2197 = vunpack.c.l.b16 %v2160
  %v2198 = vunpack.c.l.b16 %v2161
  %v2199 = vunpack.c.l.b16 %v2162
  %v2200 = vunpack.c.l.b16 %v2163
  %v2201 = vunpack.c.l.b16 %v2164
  %v2202 = vunpack.c.l.b16 %v2165
  %v2203 = vunpack.c.l.b16 %v2166
  %v2204 = vunpack.c.l.b16 %v2167
  %v2205 = vunpack.c.l.b16 %v2168
  %v2206 = vunpack.c.l.b16 %v2169
  %v2207 = vpack.c.b16 %v2192, %v2191
  %v2208 = vpack.c.b16 %v2194, %v2193
  %v2209 = vpack.c.b16 %v2196, %v2195
  %v2210 = vpack.c.b16 %v2198, %v2197
  %v2211 = vpack.c.b16 %v2200, %v2199
  %v2212 = vpack.c.b16 %v2202, %v2201
  %v2213 = vpack.c.b16 %v2204, %v2203
  %v2214 = vpack.c.b16 %v2206, %v2205
  %2223 = vmatpush.bf16.msra.mxu0 %v2214
  %2224 = vmatpush.bf16.msra.mxu0 %v2213
  %2225 = vmatpush.bf16.msra.mxu0 %v2212
  %2226 = vmatpush.bf16.msra.mxu0 %v2211
  %2227 = vmatpush.bf16.msra.mxu0 %v2210
  %2228 = vmatpush.bf16.msra.mxu0 %v2209
  %2229 = vmatpush.bf16.msra.mxu0 %v2208
  %2230 = vmatpush.bf16.msra.mxu0 %v2207
  %2231 = vmatmul.bf16.gmra.mxu0 %v1982
  %v2232 = vpop.f32.mrf.mxu0
  %v2233 = vadd.f32 %v2173, %v2232
  %v2234 = vpop.f32.mrf.mxu0
  %v2235 = vadd.f32 %v2173, %v2234
  %2236 = vdwg.mxu0
  %v2238 = vsel %vm334, %v2067, 0
  %v2241 = vsel %vm334, %v2149, 0
  %2243 = vmatpush.xpose.msra.mxu0 0.0
  %2244 = vmatpush.xpose.msra.mxu0 0.0
  %2245 = vmatpush.xpose.msra.mxu0 0.0
  %2246 = vmatpush.xpose.msra.mxu0 0.0
  %2247 = vmatpush.xpose.msra.mxu0 0.0
  %2248 = vmatpush.xpose.msra.mxu0 0.0
  %2249 = vmatpush.xpose.msra.mxu0 0.0
  %2250 = vmatpush.xpose.msra.mxu0 0.0
  %2251 = vmatpush.xpose.msra.mxu0 0.0
  %2252 = vmatpush.xpose.msra.mxu0 0.0
  %2253 = vmatpush.xpose.msra.mxu0 0.0
  %2254 = vmatpush.xpose.msra.mxu0 0.0
  %2255 = vmatpush.xpose.msra.mxu0 0.0
  %2256 = vmatpush.xpose.msra.mxu0 0.0
  %2257 = vmatpush.xpose.msra.mxu0 0.0
  %2258 = vmatpush.xpose.msra.mxu0 %v2241
  %2259 = vmatmul.f32.gmra.mxu0 %v2238
  %v2260 = vpop.f32.mrf.mxu0
  %v2261 = vadd.f32 0.0, %v2260
  %2262 = vdwg.mxu0
  %v2264 = vsel %vm334, %v2068, 0
  %v2267 = vsel %vm334, %v2151, 0
  %2269 = vmatpush.xpose.msra.mxu0 0.0
  %2270 = vmatpush.xpose.msra.mxu0 0.0
  %2271 = vmatpush.xpose.msra.mxu0 0.0
  %2272 = vmatpush.xpose.msra.mxu0 0.0
  %2273 = vmatpush.xpose.msra.mxu0 0.0
  %2274 = vmatpush.xpose.msra.mxu0 0.0
  %2275 = vmatpush.xpose.msra.mxu0 0.0
  %2276 = vmatpush.xpose.msra.mxu0 0.0
  %2277 = vmatpush.xpose.msra.mxu0 0.0
  %2278 = vmatpush.xpose.msra.mxu0 0.0
  %2279 = vmatpush.xpose.msra.mxu0 0.0
  %2280 = vmatpush.xpose.msra.mxu0 0.0
  %2281 = vmatpush.xpose.msra.mxu0 0.0
  %2282 = vmatpush.xpose.msra.mxu0 0.0
  %2283 = vmatpush.xpose.msra.mxu0 0.0
  %2284 = vmatpush.xpose.msra.mxu0 %v2267
  %2285 = vmatmul.f32.gmra.mxu0 %v2264
  %v2286 = vpop.f32.mrf.mxu0
  %v2287 = vadd.f32 0.0, %v2286
  %2288 = vdwg.mxu0
  %v2289 = vsel %vm387, %v2261, -inf
  %2290 = vmax.xlane.f32.xlu0 %v2289
  %v2291 = vpop.xlane.xlu0 %2290
  %v2292 = vsel %vm387, %v2287, -inf
  %2293 = vmax.xlane.f32.xlu0 %v2292
  %v2294 = vpop.xlane.xlu0 %2293
  %v2295 = vsub.f32 %v2261, %v2291
  %v2296 = vsub.f32 %v2287, %v2294
  %v2297 = vmul.f32 %v2295, 1.442695
  %v2298 = vpow.pop %v2297
  %v2299 = vmul.f32 %v2296, 1.442695
  %v2300 = vpow.pop %v2299
  %v2301 = vsel %vm387, %v2298, 0.0
  %2302 = vadd.xlane.f32.xlu0 %v2301
  %v2303 = vpop.xlane.xlu0 %2302
  %v2304 = vsel %vm387, %v2300, 0.0
  %2305 = vadd.xlane.f32.xlu0 %v2304
  %v2306 = vpop.xlane.xlu0 %2305
  %v2307 = vrcp.pop %v2303
  %v2308 = vrcp.pop %v2306
  %v2309 = vmul.f32 %v2298, %v2307
  %v2310 = vmul.f32 %v2300, %v2308
  %v2312 = vsel %vm387, %v2309, 0
  %2314 = vmatpush.msra.mxu0 0.0
  %2315 = vmatpush.msra.mxu0 0.0
  %2316 = vmatpush.msra.mxu0 0.0
  %2317 = vmatpush.msra.mxu0 0.0
  %2318 = vmatpush.msra.mxu0 0.0
  %2319 = vmatpush.msra.mxu0 0.0
  %2320 = vmatpush.msra.mxu0 0.0
  %2321 = vmatpush.msra.mxu0 0.0
  %2322 = vmatpush.msra.mxu0 0.0
  %2323 = vmatpush.msra.mxu0 0.0
  %2324 = vmatpush.msra.mxu0 0.0
  %2325 = vmatpush.msra.mxu0 0.0
  %2326 = vmatpush.msra.mxu0 0.0
  %2327 = vmatpush.msra.mxu0 0.0
  %2328 = vmatpush.msra.mxu0 0.0
  %2329 = vmatpush.msra.mxu0 %v2233
  %2330 = vmatmul.f32.gmra.mxu0 %v2312
  %v2331 = vpop.f32.mrf.mxu0
  %v2332 = vadd.f32 0.0, %v2331
  %2333 = vdwg.mxu0
  %v2335 = vsel %vm387, %v2310, 0
  %2337 = vmatpush.msra.mxu0 0.0
  %2338 = vmatpush.msra.mxu0 0.0
  %2339 = vmatpush.msra.mxu0 0.0
  %2340 = vmatpush.msra.mxu0 0.0
  %2341 = vmatpush.msra.mxu0 0.0
  %2342 = vmatpush.msra.mxu0 0.0
  %2343 = vmatpush.msra.mxu0 0.0
  %2344 = vmatpush.msra.mxu0 0.0
  %2345 = vmatpush.msra.mxu0 0.0
  %2346 = vmatpush.msra.mxu0 0.0
  %2347 = vmatpush.msra.mxu0 0.0
  %2348 = vmatpush.msra.mxu0 0.0
  %2349 = vmatpush.msra.mxu0 0.0
  %2350 = vmatpush.msra.mxu0 0.0
  %2351 = vmatpush.msra.mxu0 0.0
  %2352 = vmatpush.msra.mxu0 %v2235
  %2353 = vmatmul.f32.gmra.mxu0 %v2335
  %v2354 = vpop.f32.mrf.mxu0
  %v2355 = vadd.f32 0.0, %v2354
  %2356 = vdwg.mxu0
  %v2357 = vpack.c.bf16 %v2355, %v2332
  %s2358 = scalar_lea.vmem %s7, 64
  %v2359 = vld [vmem:[%s2358] sm:$0xf]
  %v2360 = vld [vmem:[%s2358 + $0x4] sm:$0xf]
  %v2361 = vld [vmem:[%s2358 + $0x8] sm:$0xf]
  %v2362 = vld [vmem:[%s2358 + $0xc] sm:$0xf]
  %s2363 = scalar_lea.vmem %s1, 320
  %v2364 = vld [vmem:[%s2363] sm:$0xf]
  %v2365 = vld [vmem:[%s2363 + $0x4] sm:$0xf]
  %v2366 = vld [vmem:[%s2363 + $0x8] sm:$0xf]
  %v2367 = vld [vmem:[%s2363 + $0xc] sm:$0xf]
  %v2368 = vld [vmem:[%s2363 + $0x10] sm:$0xf]
  %v2369 = vld [vmem:[%s2363 + $0x14] sm:$0xf]
  %v2370 = vld [vmem:[%s2363 + $0x18] sm:$0xf]
  %v2371 = vld [vmem:[%s2363 + $0x1c] sm:$0xf]
  %v2372 = vld [vmem:[%s2363 + $0x20] sm:$0xf]
  %v2373 = vld [vmem:[%s2363 + $0x24] sm:$0xf]
  %v2374 = vld [vmem:[%s2363 + $0x28] sm:$0xf]
  %v2375 = vld [vmem:[%s2363 + $0x2c] sm:$0xf]
  %v2376 = vld [vmem:[%s2363 + $0x30] sm:$0xf]
  %v2377 = vld [vmem:[%s2363 + $0x34] sm:$0xf]
  %v2378 = vld [vmem:[%s2363 + $0x38] sm:$0xf]
  %v2379 = vld [vmem:[%s2363 + $0x3c] sm:$0xf]
  %s2380 = scalar_lea.vmem %s4, 5
  %v2381 = vld [vmem:[%s2380] sm:$0x1]
  %v2383 = vperm.slane %v2381, 0
  %v2401 = vunpack.c.l.b16 %v2364
  %v2402 = vunpack.c.l.b16 %v2365
  %v2403 = vunpack.c.l.b16 %v2366
  %v2404 = vunpack.c.l.b16 %v2367
  %v2405 = vunpack.c.l.b16 %v2368
  %v2406 = vunpack.c.l.b16 %v2369
  %v2407 = vunpack.c.l.b16 %v2370
  %v2408 = vunpack.c.l.b16 %v2371
  %v2409 = vunpack.c.l.b16 %v2372
  %v2410 = vunpack.c.l.b16 %v2373
  %v2411 = vunpack.c.l.b16 %v2374
  %v2412 = vunpack.c.l.b16 %v2375
  %v2413 = vunpack.c.l.b16 %v2376
  %v2414 = vunpack.c.l.b16 %v2377
  %v2415 = vunpack.c.l.b16 %v2378
  %v2416 = vunpack.c.l.b16 %v2379
  %v2417 = vpack.c.b16 %v2402, %v2401
  %v2418 = vpack.c.b16 %v2404, %v2403
  %v2419 = vpack.c.b16 %v2406, %v2405
  %v2420 = vpack.c.b16 %v2408, %v2407
  %v2421 = vpack.c.b16 %v2410, %v2409
  %v2422 = vpack.c.b16 %v2412, %v2411
  %v2423 = vpack.c.b16 %v2414, %v2413
  %v2424 = vpack.c.b16 %v2416, %v2415
  %2433 = vmatpush.bf16.msra.mxu0 %v2424
  %2434 = vmatpush.bf16.msra.mxu0 %v2423
  %2435 = vmatpush.bf16.msra.mxu0 %v2422
  %2436 = vmatpush.bf16.msra.mxu0 %v2421
  %2437 = vmatpush.bf16.msra.mxu0 %v2420
  %2438 = vmatpush.bf16.msra.mxu0 %v2419
  %2439 = vmatpush.bf16.msra.mxu0 %v2418
  %2440 = vmatpush.bf16.msra.mxu0 %v2417
  %2441 = vmatmul.bf16.gmra.mxu0 %v1982
  %v2442 = vpop.f32.mrf.mxu0
  %v2443 = vadd.f32 %v2383, %v2442
  %v2444 = vpop.f32.mrf.mxu0
  %v2445 = vadd.f32 %v2383, %v2444
  %2446 = vdwg.mxu0
  %v2447 = vmul.f32 %v2443, 0.17677669
  %v2448 = vmul.f32 %v2445, 0.17677669
  %s2449 = scalar_lea.vmem %s2, 320
  %v2450 = vld [vmem:[%s2449] sm:$0xf]
  %v2451 = vld [vmem:[%s2449 + $0x4] sm:$0xf]
  %v2452 = vld [vmem:[%s2449 + $0x8] sm:$0xf]
  %v2453 = vld [vmem:[%s2449 + $0xc] sm:$0xf]
  %v2454 = vld [vmem:[%s2449 + $0x10] sm:$0xf]
  %v2455 = vld [vmem:[%s2449 + $0x14] sm:$0xf]
  %v2456 = vld [vmem:[%s2449 + $0x18] sm:$0xf]
  %v2457 = vld [vmem:[%s2449 + $0x1c] sm:$0xf]
  %v2458 = vld [vmem:[%s2449 + $0x20] sm:$0xf]
  %v2459 = vld [vmem:[%s2449 + $0x24] sm:$0xf]
  %v2460 = vld [vmem:[%s2449 + $0x28] sm:$0xf]
  %v2461 = vld [vmem:[%s2449 + $0x2c] sm:$0xf]
  %v2462 = vld [vmem:[%s2449 + $0x30] sm:$0xf]
  %v2463 = vld [vmem:[%s2449 + $0x34] sm:$0xf]
  %v2464 = vld [vmem:[%s2449 + $0x38] sm:$0xf]
  %v2465 = vld [vmem:[%s2449 + $0x3c] sm:$0xf]
  %s2466 = scalar_lea.vmem %s5, 5
  %v2467 = vld [vmem:[%s2466] sm:$0x1]
  %v2469 = vperm.slane %v2467, 0
  %v2487 = vunpack.c.l.b16 %v2450
  %v2488 = vunpack.c.l.b16 %v2451
  %v2489 = vunpack.c.l.b16 %v2452
  %v2490 = vunpack.c.l.b16 %v2453
  %v2491 = vunpack.c.l.b16 %v2454
  %v2492 = vunpack.c.l.b16 %v2455
  %v2493 = vunpack.c.l.b16 %v2456
  %v2494 = vunpack.c.l.b16 %v2457
  %v2495 = vunpack.c.l.b16 %v2458
  %v2496 = vunpack.c.l.b16 %v2459
  %v2497 = vunpack.c.l.b16 %v2460
  %v2498 = vunpack.c.l.b16 %v2461
  %v2499 = vunpack.c.l.b16 %v2462
  %v2500 = vunpack.c.l.b16 %v2463
  %v2501 = vunpack.c.l.b16 %v2464
  %v2502 = vunpack.c.l.b16 %v2465
  %v2503 = vpack.c.b16 %v2488, %v2487
  %v2504 = vpack.c.b16 %v2490, %v2489
  %v2505 = vpack.c.b16 %v2492, %v2491
  %v2506 = vpack.c.b16 %v2494, %v2493
  %v2507 = vpack.c.b16 %v2496, %v2495
  %v2508 = vpack.c.b16 %v2498, %v2497
  %v2509 = vpack.c.b16 %v2500, %v2499
  %v2510 = vpack.c.b16 %v2502, %v2501
  %2519 = vmatpush.bf16.msra.mxu0 %v2510
  %2520 = vmatpush.bf16.msra.mxu0 %v2509
  %2521 = vmatpush.bf16.msra.mxu0 %v2508
  %2522 = vmatpush.bf16.msra.mxu0 %v2507
  %2523 = vmatpush.bf16.msra.mxu0 %v2506
  %2524 = vmatpush.bf16.msra.mxu0 %v2505
  %2525 = vmatpush.bf16.msra.mxu0 %v2504
  %2526 = vmatpush.bf16.msra.mxu0 %v2503
  %2527 = vmatmul.bf16.gmra.mxu0 %v1982
  %v2528 = vpop.f32.mrf.mxu0
  %v2529 = vadd.f32 %v2469, %v2528
  %v2530 = vpop.f32.mrf.mxu0
  %v2531 = vadd.f32 %v2469, %v2530
  %2532 = vdwg.mxu0
  %s2533 = scalar_lea.vmem %s3, 320
  %v2534 = vld [vmem:[%s2533] sm:$0xf]
  %v2535 = vld [vmem:[%s2533 + $0x4] sm:$0xf]
  %v2536 = vld [vmem:[%s2533 + $0x8] sm:$0xf]
  %v2537 = vld [vmem:[%s2533 + $0xc] sm:$0xf]
  %v2538 = vld [vmem:[%s2533 + $0x10] sm:$0xf]
  %v2539 = vld [vmem:[%s2533 + $0x14] sm:$0xf]
  %v2540 = vld [vmem:[%s2533 + $0x18] sm:$0xf]
  %v2541 = vld [vmem:[%s2533 + $0x1c] sm:$0xf]
  %v2542 = vld [vmem:[%s2533 + $0x20] sm:$0xf]
  %v2543 = vld [vmem:[%s2533 + $0x24] sm:$0xf]
  %v2544 = vld [vmem:[%s2533 + $0x28] sm:$0xf]
  %v2545 = vld [vmem:[%s2533 + $0x2c] sm:$0xf]
  %v2546 = vld [vmem:[%s2533 + $0x30] sm:$0xf]
  %v2547 = vld [vmem:[%s2533 + $0x34] sm:$0xf]
  %v2548 = vld [vmem:[%s2533 + $0x38] sm:$0xf]
  %v2549 = vld [vmem:[%s2533 + $0x3c] sm:$0xf]
  %s2550 = scalar_lea.vmem %s6, 5
  %v2551 = vld [vmem:[%s2550] sm:$0x1]
  %v2553 = vperm.slane %v2551, 0
  %v2571 = vunpack.c.l.b16 %v2534
  %v2572 = vunpack.c.l.b16 %v2535
  %v2573 = vunpack.c.l.b16 %v2536
  %v2574 = vunpack.c.l.b16 %v2537
  %v2575 = vunpack.c.l.b16 %v2538
  %v2576 = vunpack.c.l.b16 %v2539
  %v2577 = vunpack.c.l.b16 %v2540
  %v2578 = vunpack.c.l.b16 %v2541
  %v2579 = vunpack.c.l.b16 %v2542
  %v2580 = vunpack.c.l.b16 %v2543
  %v2581 = vunpack.c.l.b16 %v2544
  %v2582 = vunpack.c.l.b16 %v2545
  %v2583 = vunpack.c.l.b16 %v2546
  %v2584 = vunpack.c.l.b16 %v2547
  %v2585 = vunpack.c.l.b16 %v2548
  %v2586 = vunpack.c.l.b16 %v2549
  %v2587 = vpack.c.b16 %v2572, %v2571
  %v2588 = vpack.c.b16 %v2574, %v2573
  %v2589 = vpack.c.b16 %v2576, %v2575
  %v2590 = vpack.c.b16 %v2578, %v2577
  %v2591 = vpack.c.b16 %v2580, %v2579
  %v2592 = vpack.c.b16 %v2582, %v2581
  %v2593 = vpack.c.b16 %v2584, %v2583
  %v2594 = vpack.c.b16 %v2586, %v2585
  %2603 = vmatpush.bf16.msra.mxu0 %v2594
  %2604 = vmatpush.bf16.msra.mxu0 %v2593
  %2605 = vmatpush.bf16.msra.mxu0 %v2592
  %2606 = vmatpush.bf16.msra.mxu0 %v2591
  %2607 = vmatpush.bf16.msra.mxu0 %v2590
  %2608 = vmatpush.bf16.msra.mxu0 %v2589
  %2609 = vmatpush.bf16.msra.mxu0 %v2588
  %2610 = vmatpush.bf16.msra.mxu0 %v2587
  %2611 = vmatmul.bf16.gmra.mxu0 %v1982
  %v2612 = vpop.f32.mrf.mxu0
  %v2613 = vadd.f32 %v2553, %v2612
  %v2614 = vpop.f32.mrf.mxu0
  %v2615 = vadd.f32 %v2553, %v2614
  %2616 = vdwg.mxu0
  %v2618 = vsel %vm334, %v2447, 0
  %v2621 = vsel %vm334, %v2529, 0
  %2623 = vmatpush.xpose.msra.mxu0 0.0
  %2624 = vmatpush.xpose.msra.mxu0 0.0
  %2625 = vmatpush.xpose.msra.mxu0 0.0
  %2626 = vmatpush.xpose.msra.mxu0 0.0
  %2627 = vmatpush.xpose.msra.mxu0 0.0
  %2628 = vmatpush.xpose.msra.mxu0 0.0
  %2629 = vmatpush.xpose.msra.mxu0 0.0
  %2630 = vmatpush.xpose.msra.mxu0 0.0
  %2631 = vmatpush.xpose.msra.mxu0 0.0
  %2632 = vmatpush.xpose.msra.mxu0 0.0
  %2633 = vmatpush.xpose.msra.mxu0 0.0
  %2634 = vmatpush.xpose.msra.mxu0 0.0
  %2635 = vmatpush.xpose.msra.mxu0 0.0
  %2636 = vmatpush.xpose.msra.mxu0 0.0
  %2637 = vmatpush.xpose.msra.mxu0 0.0
  %2638 = vmatpush.xpose.msra.mxu0 %v2621
  %2639 = vmatmul.f32.gmra.mxu0 %v2618
  %v2640 = vpop.f32.mrf.mxu0
  %v2641 = vadd.f32 0.0, %v2640
  %2642 = vdwg.mxu0
  %v2644 = vsel %vm334, %v2448, 0
  %v2647 = vsel %vm334, %v2531, 0
  %2649 = vmatpush.xpose.msra.mxu0 0.0
  %2650 = vmatpush.xpose.msra.mxu0 0.0
  %2651 = vmatpush.xpose.msra.mxu0 0.0
  %2652 = vmatpush.xpose.msra.mxu0 0.0
  %2653 = vmatpush.xpose.msra.mxu0 0.0
  %2654 = vmatpush.xpose.msra.mxu0 0.0
  %2655 = vmatpush.xpose.msra.mxu0 0.0
  %2656 = vmatpush.xpose.msra.mxu0 0.0
  %2657 = vmatpush.xpose.msra.mxu0 0.0
  %2658 = vmatpush.xpose.msra.mxu0 0.0
  %2659 = vmatpush.xpose.msra.mxu0 0.0
  %2660 = vmatpush.xpose.msra.mxu0 0.0
  %2661 = vmatpush.xpose.msra.mxu0 0.0
  %2662 = vmatpush.xpose.msra.mxu0 0.0
  %2663 = vmatpush.xpose.msra.mxu0 0.0
  %2664 = vmatpush.xpose.msra.mxu0 %v2647
  %2665 = vmatmul.f32.gmra.mxu0 %v2644
  %v2666 = vpop.f32.mrf.mxu0
  %v2667 = vadd.f32 0.0, %v2666
  %2668 = vdwg.mxu0
  %v2669 = vsel %vm387, %v2641, -inf
  %2670 = vmax.xlane.f32.xlu0 %v2669
  %v2671 = vpop.xlane.xlu0 %2670
  %v2672 = vsel %vm387, %v2667, -inf
  %2673 = vmax.xlane.f32.xlu0 %v2672
  %v2674 = vpop.xlane.xlu0 %2673
  %v2675 = vsub.f32 %v2641, %v2671
  %v2676 = vsub.f32 %v2667, %v2674
  %v2677 = vmul.f32 %v2675, 1.442695
  %v2678 = vpow.pop %v2677
  %v2679 = vmul.f32 %v2676, 1.442695
  %v2680 = vpow.pop %v2679
  %v2681 = vsel %vm387, %v2678, 0.0
  %2682 = vadd.xlane.f32.xlu0 %v2681
  %v2683 = vpop.xlane.xlu0 %2682
  %v2684 = vsel %vm387, %v2680, 0.0
  %2685 = vadd.xlane.f32.xlu0 %v2684
  %v2686 = vpop.xlane.xlu0 %2685
  %v2687 = vrcp.pop %v2683
  %v2688 = vrcp.pop %v2686
  %v2689 = vmul.f32 %v2678, %v2687
  %v2690 = vmul.f32 %v2680, %v2688
  %v2692 = vsel %vm387, %v2689, 0
  %2694 = vmatpush.msra.mxu0 0.0
  %2695 = vmatpush.msra.mxu0 0.0
  %2696 = vmatpush.msra.mxu0 0.0
  %2697 = vmatpush.msra.mxu0 0.0
  %2698 = vmatpush.msra.mxu0 0.0
  %2699 = vmatpush.msra.mxu0 0.0
  %2700 = vmatpush.msra.mxu0 0.0
  %2701 = vmatpush.msra.mxu0 0.0
  %2702 = vmatpush.msra.mxu0 0.0
  %2703 = vmatpush.msra.mxu0 0.0
  %2704 = vmatpush.msra.mxu0 0.0
  %2705 = vmatpush.msra.mxu0 0.0
  %2706 = vmatpush.msra.mxu0 0.0
  %2707 = vmatpush.msra.mxu0 0.0
  %2708 = vmatpush.msra.mxu0 0.0
  %2709 = vmatpush.msra.mxu0 %v2613
  %2710 = vmatmul.f32.gmra.mxu0 %v2692
  %v2711 = vpop.f32.mrf.mxu0
  %v2712 = vadd.f32 0.0, %v2711
  %2713 = vdwg.mxu0
  %v2715 = vsel %vm387, %v2690, 0
  %2717 = vmatpush.msra.mxu0 0.0
  %2718 = vmatpush.msra.mxu0 0.0
  %2719 = vmatpush.msra.mxu0 0.0
  %2720 = vmatpush.msra.mxu0 0.0
  %2721 = vmatpush.msra.mxu0 0.0
  %2722 = vmatpush.msra.mxu0 0.0
  %2723 = vmatpush.msra.mxu0 0.0
  %2724 = vmatpush.msra.mxu0 0.0
  %2725 = vmatpush.msra.mxu0 0.0
  %2726 = vmatpush.msra.mxu0 0.0
  %2727 = vmatpush.msra.mxu0 0.0
  %2728 = vmatpush.msra.mxu0 0.0
  %2729 = vmatpush.msra.mxu0 0.0
  %2730 = vmatpush.msra.mxu0 0.0
  %2731 = vmatpush.msra.mxu0 0.0
  %2732 = vmatpush.msra.mxu0 %v2615
  %2733 = vmatmul.f32.gmra.mxu0 %v2715
  %v2734 = vpop.f32.mrf.mxu0
  %v2735 = vadd.f32 0.0, %v2734
  %2736 = vdwg.mxu0
  %v2737 = vpack.c.bf16 %v2735, %v2712
  %s2738 = scalar_lea.vmem %s7, 80
  %v2739 = vld [vmem:[%s2738] sm:$0xf]
  %v2740 = vld [vmem:[%s2738 + $0x4] sm:$0xf]
  %v2741 = vld [vmem:[%s2738 + $0x8] sm:$0xf]
  %v2742 = vld [vmem:[%s2738 + $0xc] sm:$0xf]
  %v2747 = vunpack.c.l.b16 %v2739
  %v2748 = vunpack.c.l.b16 %v2740
  %v2749 = vunpack.c.l.b16 %v2741
  %v2750 = vunpack.c.l.b16 %v2742
  %v2751 = vpack.c.b16 %v2748, %v2747
  %v2752 = vpack.c.b16 %v2750, %v2749
  %v2756 = vsel %vm334, %v2737, 0
  %2758 = vmatpush.bf16.msra.mxu0 0
  %2759 = vmatpush.bf16.msra.mxu0 0
  %2760 = vmatpush.bf16.msra.mxu0 0
  %2761 = vmatpush.bf16.msra.mxu0 0
  %2762 = vmatpush.bf16.msra.mxu0 0
  %2763 = vmatpush.bf16.msra.mxu0 0
  %2764 = vmatpush.bf16.msra.mxu0 %v2752
  %2765 = vmatpush.bf16.msra.mxu0 %v2751
  %2766 = vmatmul.bf16.gmra.mxu0 %v2756
  %v2767 = vpop.f32.mrf.mxu0
  %v2768 = vadd.f32 0.0, %v2767
  %v2769 = vpop.f32.mrf.mxu0
  %v2770 = vadd.f32 0.0, %v2769
  %2771 = vdwg.mxu0
  %s2772 = scalar_lea.vmem %s1, 384
  %v2773 = vld [vmem:[%s2772] sm:$0xf]
  %v2774 = vld [vmem:[%s2772 + $0x4] sm:$0xf]
  %v2775 = vld [vmem:[%s2772 + $0x8] sm:$0xf]
  %v2776 = vld [vmem:[%s2772 + $0xc] sm:$0xf]
  %v2777 = vld [vmem:[%s2772 + $0x10] sm:$0xf]
  %v2778 = vld [vmem:[%s2772 + $0x14] sm:$0xf]
  %v2779 = vld [vmem:[%s2772 + $0x18] sm:$0xf]
  %v2780 = vld [vmem:[%s2772 + $0x1c] sm:$0xf]
  %v2781 = vld [vmem:[%s2772 + $0x20] sm:$0xf]
  %v2782 = vld [vmem:[%s2772 + $0x24] sm:$0xf]
  %v2783 = vld [vmem:[%s2772 + $0x28] sm:$0xf]
  %v2784 = vld [vmem:[%s2772 + $0x2c] sm:$0xf]
  %v2785 = vld [vmem:[%s2772 + $0x30] sm:$0xf]
  %v2786 = vld [vmem:[%s2772 + $0x34] sm:$0xf]
  %v2787 = vld [vmem:[%s2772 + $0x38] sm:$0xf]
  %v2788 = vld [vmem:[%s2772 + $0x3c] sm:$0xf]
  %s2789 = scalar_lea.vmem %s4, 6
  %v2790 = vld [vmem:[%s2789] sm:$0x1]
  %v2792 = vperm.slane %v2790, 0
  %v2810 = vunpack.c.l.b16 %v2773
  %v2811 = vunpack.c.l.b16 %v2774
  %v2812 = vunpack.c.l.b16 %v2775
  %v2813 = vunpack.c.l.b16 %v2776
  %v2814 = vunpack.c.l.b16 %v2777
  %v2815 = vunpack.c.l.b16 %v2778
  %v2816 = vunpack.c.l.b16 %v2779
  %v2817 = vunpack.c.l.b16 %v2780
  %v2818 = vunpack.c.l.b16 %v2781
  %v2819 = vunpack.c.l.b16 %v2782
  %v2820 = vunpack.c.l.b16 %v2783
  %v2821 = vunpack.c.l.b16 %v2784
  %v2822 = vunpack.c.l.b16 %v2785
  %v2823 = vunpack.c.l.b16 %v2786
  %v2824 = vunpack.c.l.b16 %v2787
  %v2825 = vunpack.c.l.b16 %v2788
  %v2826 = vpack.c.b16 %v2811, %v2810
  %v2827 = vpack.c.b16 %v2813, %v2812
  %v2828 = vpack.c.b16 %v2815, %v2814
  %v2829 = vpack.c.b16 %v2817, %v2816
  %v2830 = vpack.c.b16 %v2819, %v2818
  %v2831 = vpack.c.b16 %v2821, %v2820
  %v2832 = vpack.c.b16 %v2823, %v2822
  %v2833 = vpack.c.b16 %v2825, %v2824
  %2842 = vmatpush.bf16.msra.mxu0 %v2833
  %2843 = vmatpush.bf16.msra.mxu0 %v2832
  %2844 = vmatpush.bf16.msra.mxu0 %v2831
  %2845 = vmatpush.bf16.msra.mxu0 %v2830
  %2846 = vmatpush.bf16.msra.mxu0 %v2829
  %2847 = vmatpush.bf16.msra.mxu0 %v2828
  %2848 = vmatpush.bf16.msra.mxu0 %v2827
  %2849 = vmatpush.bf16.msra.mxu0 %v2826
  %2850 = vmatmul.bf16.gmra.mxu0 %v1982
  %v2851 = vpop.f32.mrf.mxu0
  %v2852 = vadd.f32 %v2792, %v2851
  %v2853 = vpop.f32.mrf.mxu0
  %v2854 = vadd.f32 %v2792, %v2853
  %2855 = vdwg.mxu0
  %v2856 = vmul.f32 %v2852, 0.17677669
  %v2857 = vmul.f32 %v2854, 0.17677669
  %s2858 = scalar_lea.vmem %s2, 384
  %v2859 = vld [vmem:[%s2858] sm:$0xf]
  %v2860 = vld [vmem:[%s2858 + $0x4] sm:$0xf]
  %v2861 = vld [vmem:[%s2858 + $0x8] sm:$0xf]
  %v2862 = vld [vmem:[%s2858 + $0xc] sm:$0xf]
  %v2863 = vld [vmem:[%s2858 + $0x10] sm:$0xf]
  %v2864 = vld [vmem:[%s2858 + $0x14] sm:$0xf]
  %v2865 = vld [vmem:[%s2858 + $0x18] sm:$0xf]
  %v2866 = vld [vmem:[%s2858 + $0x1c] sm:$0xf]
  %v2867 = vld [vmem:[%s2858 + $0x20] sm:$0xf]
  %v2868 = vld [vmem:[%s2858 + $0x24] sm:$0xf]
  %v2869 = vld [vmem:[%s2858 + $0x28] sm:$0xf]
  %v2870 = vld [vmem:[%s2858 + $0x2c] sm:$0xf]
  %v2871 = vld [vmem:[%s2858 + $0x30] sm:$0xf]
  %v2872 = vld [vmem:[%s2858 + $0x34] sm:$0xf]
  %v2873 = vld [vmem:[%s2858 + $0x38] sm:$0xf]
  %v2874 = vld [vmem:[%s2858 + $0x3c] sm:$0xf]
  %s2875 = scalar_lea.vmem %s5, 6
  %v2876 = vld [vmem:[%s2875] sm:$0x1]
  %v2878 = vperm.slane %v2876, 0
  %v2896 = vunpack.c.l.b16 %v2859
  %v2897 = vunpack.c.l.b16 %v2860
  %v2898 = vunpack.c.l.b16 %v2861
  %v2899 = vunpack.c.l.b16 %v2862
  %v2900 = vunpack.c.l.b16 %v2863
  %v2901 = vunpack.c.l.b16 %v2864
  %v2902 = vunpack.c.l.b16 %v2865
  %v2903 = vunpack.c.l.b16 %v2866
  %v2904 = vunpack.c.l.b16 %v2867
  %v2905 = vunpack.c.l.b16 %v2868
  %v2906 = vunpack.c.l.b16 %v2869
  %v2907 = vunpack.c.l.b16 %v2870
  %v2908 = vunpack.c.l.b16 %v2871
  %v2909 = vunpack.c.l.b16 %v2872
  %v2910 = vunpack.c.l.b16 %v2873
  %v2911 = vunpack.c.l.b16 %v2874
  %v2912 = vpack.c.b16 %v2897, %v2896
  %v2913 = vpack.c.b16 %v2899, %v2898
  %v2914 = vpack.c.b16 %v2901, %v2900
  %v2915 = vpack.c.b16 %v2903, %v2902
  %v2916 = vpack.c.b16 %v2905, %v2904
  %v2917 = vpack.c.b16 %v2907, %v2906
  %v2918 = vpack.c.b16 %v2909, %v2908
  %v2919 = vpack.c.b16 %v2911, %v2910
  %2928 = vmatpush.bf16.msra.mxu0 %v2919
  %2929 = vmatpush.bf16.msra.mxu0 %v2918
  %2930 = vmatpush.bf16.msra.mxu0 %v2917
  %2931 = vmatpush.bf16.msra.mxu0 %v2916
  %2932 = vmatpush.bf16.msra.mxu0 %v2915
  %2933 = vmatpush.bf16.msra.mxu0 %v2914
  %2934 = vmatpush.bf16.msra.mxu0 %v2913
  %2935 = vmatpush.bf16.msra.mxu0 %v2912
  %2936 = vmatmul.bf16.gmra.mxu0 %v1982
  %v2937 = vpop.f32.mrf.mxu0
  %v2938 = vadd.f32 %v2878, %v2937
  %v2939 = vpop.f32.mrf.mxu0
  %v2940 = vadd.f32 %v2878, %v2939
  %2941 = vdwg.mxu0
  %s2942 = scalar_lea.vmem %s3, 384
  %v2943 = vld [vmem:[%s2942] sm:$0xf]
  %v2944 = vld [vmem:[%s2942 + $0x4] sm:$0xf]
  %v2945 = vld [vmem:[%s2942 + $0x8] sm:$0xf]
  %v2946 = vld [vmem:[%s2942 + $0xc] sm:$0xf]
  %v2947 = vld [vmem:[%s2942 + $0x10] sm:$0xf]
  %v2948 = vld [vmem:[%s2942 + $0x14] sm:$0xf]
  %v2949 = vld [vmem:[%s2942 + $0x18] sm:$0xf]
  %v2950 = vld [vmem:[%s2942 + $0x1c] sm:$0xf]
  %v2951 = vld [vmem:[%s2942 + $0x20] sm:$0xf]
  %v2952 = vld [vmem:[%s2942 + $0x24] sm:$0xf]
  %v2953 = vld [vmem:[%s2942 + $0x28] sm:$0xf]
  %v2954 = vld [vmem:[%s2942 + $0x2c] sm:$0xf]
  %v2955 = vld [vmem:[%s2942 + $0x30] sm:$0xf]
  %v2956 = vld [vmem:[%s2942 + $0x34] sm:$0xf]
  %v2957 = vld [vmem:[%s2942 + $0x38] sm:$0xf]
  %v2958 = vld [vmem:[%s2942 + $0x3c] sm:$0xf]
  %s2959 = scalar_lea.vmem %s6, 6
  %v2960 = vld [vmem:[%s2959] sm:$0x1]
  %v2962 = vperm.slane %v2960, 0
  %v2980 = vunpack.c.l.b16 %v2943
  %v2981 = vunpack.c.l.b16 %v2944
  %v2982 = vunpack.c.l.b16 %v2945
  %v2983 = vunpack.c.l.b16 %v2946
  %v2984 = vunpack.c.l.b16 %v2947
  %v2985 = vunpack.c.l.b16 %v2948
  %v2986 = vunpack.c.l.b16 %v2949
  %v2987 = vunpack.c.l.b16 %v2950
  %v2988 = vunpack.c.l.b16 %v2951
  %v2989 = vunpack.c.l.b16 %v2952
  %v2990 = vunpack.c.l.b16 %v2953
  %v2991 = vunpack.c.l.b16 %v2954
  %v2992 = vunpack.c.l.b16 %v2955
  %v2993 = vunpack.c.l.b16 %v2956
  %v2994 = vunpack.c.l.b16 %v2957
  %v2995 = vunpack.c.l.b16 %v2958
  %v2996 = vpack.c.b16 %v2981, %v2980
  %v2997 = vpack.c.b16 %v2983, %v2982
  %v2998 = vpack.c.b16 %v2985, %v2984
  %v2999 = vpack.c.b16 %v2987, %v2986
  %v3000 = vpack.c.b16 %v2989, %v2988
  %v3001 = vpack.c.b16 %v2991, %v2990
  %v3002 = vpack.c.b16 %v2993, %v2992
  %v3003 = vpack.c.b16 %v2995, %v2994
  %3012 = vmatpush.bf16.msra.mxu0 %v3003
  %3013 = vmatpush.bf16.msra.mxu0 %v3002
  %3014 = vmatpush.bf16.msra.mxu0 %v3001
  %3015 = vmatpush.bf16.msra.mxu0 %v3000
  %3016 = vmatpush.bf16.msra.mxu0 %v2999
  %3017 = vmatpush.bf16.msra.mxu0 %v2998
  %3018 = vmatpush.bf16.msra.mxu0 %v2997
  %3019 = vmatpush.bf16.msra.mxu0 %v2996
  %3020 = vmatmul.bf16.gmra.mxu0 %v1982
  %v3021 = vpop.f32.mrf.mxu0
  %v3022 = vadd.f32 %v2962, %v3021
  %v3023 = vpop.f32.mrf.mxu0
  %v3024 = vadd.f32 %v2962, %v3023
  %3025 = vdwg.mxu0
  %v3027 = vsel %vm334, %v2856, 0
  %v3030 = vsel %vm334, %v2938, 0
  %3032 = vmatpush.xpose.msra.mxu0 0.0
  %3033 = vmatpush.xpose.msra.mxu0 0.0
  %3034 = vmatpush.xpose.msra.mxu0 0.0
  %3035 = vmatpush.xpose.msra.mxu0 0.0
  %3036 = vmatpush.xpose.msra.mxu0 0.0
  %3037 = vmatpush.xpose.msra.mxu0 0.0
  %3038 = vmatpush.xpose.msra.mxu0 0.0
  %3039 = vmatpush.xpose.msra.mxu0 0.0
  %3040 = vmatpush.xpose.msra.mxu0 0.0
  %3041 = vmatpush.xpose.msra.mxu0 0.0
  %3042 = vmatpush.xpose.msra.mxu0 0.0
  %3043 = vmatpush.xpose.msra.mxu0 0.0
  %3044 = vmatpush.xpose.msra.mxu0 0.0
  %3045 = vmatpush.xpose.msra.mxu0 0.0
  %3046 = vmatpush.xpose.msra.mxu0 0.0
  %3047 = vmatpush.xpose.msra.mxu0 %v3030
  %3048 = vmatmul.f32.gmra.mxu0 %v3027
  %v3049 = vpop.f32.mrf.mxu0
  %v3050 = vadd.f32 0.0, %v3049
  %3051 = vdwg.mxu0
  %v3053 = vsel %vm334, %v2857, 0
  %v3056 = vsel %vm334, %v2940, 0
  %3058 = vmatpush.xpose.msra.mxu0 0.0
  %3059 = vmatpush.xpose.msra.mxu0 0.0
  %3060 = vmatpush.xpose.msra.mxu0 0.0
  %3061 = vmatpush.xpose.msra.mxu0 0.0
  %3062 = vmatpush.xpose.msra.mxu0 0.0
  %3063 = vmatpush.xpose.msra.mxu0 0.0
  %3064 = vmatpush.xpose.msra.mxu0 0.0
  %3065 = vmatpush.xpose.msra.mxu0 0.0
  %3066 = vmatpush.xpose.msra.mxu0 0.0
  %3067 = vmatpush.xpose.msra.mxu0 0.0
  %3068 = vmatpush.xpose.msra.mxu0 0.0
  %3069 = vmatpush.xpose.msra.mxu0 0.0
  %3070 = vmatpush.xpose.msra.mxu0 0.0
  %3071 = vmatpush.xpose.msra.mxu0 0.0
  %3072 = vmatpush.xpose.msra.mxu0 0.0
  %3073 = vmatpush.xpose.msra.mxu0 %v3056
  %3074 = vmatmul.f32.gmra.mxu0 %v3053
  %v3075 = vpop.f32.mrf.mxu0
  %v3076 = vadd.f32 0.0, %v3075
  %3077 = vdwg.mxu0
  %v3078 = vsel %vm387, %v3050, -inf
  %3079 = vmax.xlane.f32.xlu0 %v3078
  %v3080 = vpop.xlane.xlu0 %3079
  %v3081 = vsel %vm387, %v3076, -inf
  %3082 = vmax.xlane.f32.xlu0 %v3081
  %v3083 = vpop.xlane.xlu0 %3082
  %v3084 = vsub.f32 %v3050, %v3080
  %v3085 = vsub.f32 %v3076, %v3083
  %v3086 = vmul.f32 %v3084, 1.442695
  %v3087 = vpow.pop %v3086
  %v3088 = vmul.f32 %v3085, 1.442695
  %v3089 = vpow.pop %v3088
  %v3090 = vsel %vm387, %v3087, 0.0
  %3091 = vadd.xlane.f32.xlu0 %v3090
  %v3092 = vpop.xlane.xlu0 %3091
  %v3093 = vsel %vm387, %v3089, 0.0
  %3094 = vadd.xlane.f32.xlu0 %v3093
  %v3095 = vpop.xlane.xlu0 %3094
  %v3096 = vrcp.pop %v3092
  %v3097 = vrcp.pop %v3095
  %v3098 = vmul.f32 %v3087, %v3096
  %v3099 = vmul.f32 %v3089, %v3097
  %v3101 = vsel %vm387, %v3098, 0
  %3103 = vmatpush.msra.mxu0 0.0
  %3104 = vmatpush.msra.mxu0 0.0
  %3105 = vmatpush.msra.mxu0 0.0
  %3106 = vmatpush.msra.mxu0 0.0
  %3107 = vmatpush.msra.mxu0 0.0
  %3108 = vmatpush.msra.mxu0 0.0
  %3109 = vmatpush.msra.mxu0 0.0
  %3110 = vmatpush.msra.mxu0 0.0
  %3111 = vmatpush.msra.mxu0 0.0
  %3112 = vmatpush.msra.mxu0 0.0
  %3113 = vmatpush.msra.mxu0 0.0
  %3114 = vmatpush.msra.mxu0 0.0
  %3115 = vmatpush.msra.mxu0 0.0
  %3116 = vmatpush.msra.mxu0 0.0
  %3117 = vmatpush.msra.mxu0 0.0
  %3118 = vmatpush.msra.mxu0 %v3022
  %3119 = vmatmul.f32.gmra.mxu0 %v3101
  %v3120 = vpop.f32.mrf.mxu0
  %v3121 = vadd.f32 0.0, %v3120
  %3122 = vdwg.mxu0
  %v3124 = vsel %vm387, %v3099, 0
  %3126 = vmatpush.msra.mxu0 0.0
  %3127 = vmatpush.msra.mxu0 0.0
  %3128 = vmatpush.msra.mxu0 0.0
  %3129 = vmatpush.msra.mxu0 0.0
  %3130 = vmatpush.msra.mxu0 0.0
  %3131 = vmatpush.msra.mxu0 0.0
  %3132 = vmatpush.msra.mxu0 0.0
  %3133 = vmatpush.msra.mxu0 0.0
  %3134 = vmatpush.msra.mxu0 0.0
  %3135 = vmatpush.msra.mxu0 0.0
  %3136 = vmatpush.msra.mxu0 0.0
  %3137 = vmatpush.msra.mxu0 0.0
  %3138 = vmatpush.msra.mxu0 0.0
  %3139 = vmatpush.msra.mxu0 0.0
  %3140 = vmatpush.msra.mxu0 0.0
  %3141 = vmatpush.msra.mxu0 %v3024
  %3142 = vmatmul.f32.gmra.mxu0 %v3124
  %v3143 = vpop.f32.mrf.mxu0
  %v3144 = vadd.f32 0.0, %v3143
  %3145 = vdwg.mxu0
  %v3146 = vpack.c.bf16 %v3144, %v3121
  %s3147 = scalar_lea.vmem %s7, 96
  %v3148 = vld [vmem:[%s3147] sm:$0xf]
  %v3149 = vld [vmem:[%s3147 + $0x4] sm:$0xf]
  %v3150 = vld [vmem:[%s3147 + $0x8] sm:$0xf]
  %v3151 = vld [vmem:[%s3147 + $0xc] sm:$0xf]
  %v3156 = vunpack.c.l.b16 %v3148
  %v3157 = vunpack.c.l.b16 %v3149
  %v3158 = vunpack.c.l.b16 %v3150
  %v3159 = vunpack.c.l.b16 %v3151
  %v3160 = vpack.c.b16 %v3157, %v3156
  %v3161 = vpack.c.b16 %v3159, %v3158
  %v3165 = vsel %vm334, %v3146, 0
  %3167 = vmatpush.bf16.msra.mxu0 0
  %3168 = vmatpush.bf16.msra.mxu0 0
  %3169 = vmatpush.bf16.msra.mxu0 0
  %3170 = vmatpush.bf16.msra.mxu0 0
  %3171 = vmatpush.bf16.msra.mxu0 0
  %3172 = vmatpush.bf16.msra.mxu0 0
  %3173 = vmatpush.bf16.msra.mxu0 %v3161
  %3174 = vmatpush.bf16.msra.mxu0 %v3160
  %3175 = vmatmul.bf16.gmra.mxu0 %v3165
  %v3176 = vpop.f32.mrf.mxu0
  %v3177 = vadd.f32 0.0, %v3176
  %v3178 = vpop.f32.mrf.mxu0
  %v3179 = vadd.f32 0.0, %v3178
  %3180 = vdwg.mxu0
  %s3181 = scalar_lea.vmem %s1, 448
  %v3182 = vld [vmem:[%s3181] sm:$0xf]
  %v3183 = vld [vmem:[%s3181 + $0x4] sm:$0xf]
  %v3184 = vld [vmem:[%s3181 + $0x8] sm:$0xf]
  %v3185 = vld [vmem:[%s3181 + $0xc] sm:$0xf]
  %v3186 = vld [vmem:[%s3181 + $0x10] sm:$0xf]
  %v3187 = vld [vmem:[%s3181 + $0x14] sm:$0xf]
  %v3188 = vld [vmem:[%s3181 + $0x18] sm:$0xf]
  %v3189 = vld [vmem:[%s3181 + $0x1c] sm:$0xf]
  %v3190 = vld [vmem:[%s3181 + $0x20] sm:$0xf]
  %v3191 = vld [vmem:[%s3181 + $0x24] sm:$0xf]
  %v3192 = vld [vmem:[%s3181 + $0x28] sm:$0xf]
  %v3193 = vld [vmem:[%s3181 + $0x2c] sm:$0xf]
  %v3194 = vld [vmem:[%s3181 + $0x30] sm:$0xf]
  %v3195 = vld [vmem:[%s3181 + $0x34] sm:$0xf]
  %v3196 = vld [vmem:[%s3181 + $0x38] sm:$0xf]
  %v3197 = vld [vmem:[%s3181 + $0x3c] sm:$0xf]
  %s3198 = scalar_lea.vmem %s4, 7
  %v3199 = vld [vmem:[%s3198] sm:$0x1]
  %v3201 = vperm.slane %v3199, 0
  %v3219 = vunpack.c.l.b16 %v3182
  %v3220 = vunpack.c.l.b16 %v3183
  %v3221 = vunpack.c.l.b16 %v3184
  %v3222 = vunpack.c.l.b16 %v3185
  %v3223 = vunpack.c.l.b16 %v3186
  %v3224 = vunpack.c.l.b16 %v3187
  %v3225 = vunpack.c.l.b16 %v3188
  %v3226 = vunpack.c.l.b16 %v3189
  %v3227 = vunpack.c.l.b16 %v3190
  %v3228 = vunpack.c.l.b16 %v3191
  %v3229 = vunpack.c.l.b16 %v3192
  %v3230 = vunpack.c.l.b16 %v3193
  %v3231 = vunpack.c.l.b16 %v3194
  %v3232 = vunpack.c.l.b16 %v3195
  %v3233 = vunpack.c.l.b16 %v3196
  %v3234 = vunpack.c.l.b16 %v3197
  %v3235 = vpack.c.b16 %v3220, %v3219
  %v3236 = vpack.c.b16 %v3222, %v3221
  %v3237 = vpack.c.b16 %v3224, %v3223
  %v3238 = vpack.c.b16 %v3226, %v3225
  %v3239 = vpack.c.b16 %v3228, %v3227
  %v3240 = vpack.c.b16 %v3230, %v3229
  %v3241 = vpack.c.b16 %v3232, %v3231
  %v3242 = vpack.c.b16 %v3234, %v3233
  %3251 = vmatpush.bf16.msra.mxu0 %v3242
  %3252 = vmatpush.bf16.msra.mxu0 %v3241
  %3253 = vmatpush.bf16.msra.mxu0 %v3240
  %3254 = vmatpush.bf16.msra.mxu0 %v3239
  %3255 = vmatpush.bf16.msra.mxu0 %v3238
  %3256 = vmatpush.bf16.msra.mxu0 %v3237
  %3257 = vmatpush.bf16.msra.mxu0 %v3236
  %3258 = vmatpush.bf16.msra.mxu0 %v3235
  %3259 = vmatmul.bf16.gmra.mxu0 %v1982
  %v3260 = vpop.f32.mrf.mxu0
  %v3261 = vadd.f32 %v3201, %v3260
  %v3262 = vpop.f32.mrf.mxu0
  %v3263 = vadd.f32 %v3201, %v3262
  %3264 = vdwg.mxu0
  %v3265 = vmul.f32 %v3261, 0.17677669
  %v3266 = vmul.f32 %v3263, 0.17677669
  %s3267 = scalar_lea.vmem %s2, 448
  %v3268 = vld [vmem:[%s3267] sm:$0xf]
  %v3269 = vld [vmem:[%s3267 + $0x4] sm:$0xf]
  %v3270 = vld [vmem:[%s3267 + $0x8] sm:$0xf]
  %v3271 = vld [vmem:[%s3267 + $0xc] sm:$0xf]
  %v3272 = vld [vmem:[%s3267 + $0x10] sm:$0xf]
  %v3273 = vld [vmem:[%s3267 + $0x14] sm:$0xf]
  %v3274 = vld [vmem:[%s3267 + $0x18] sm:$0xf]
  %v3275 = vld [vmem:[%s3267 + $0x1c] sm:$0xf]
  %v3276 = vld [vmem:[%s3267 + $0x20] sm:$0xf]
  %v3277 = vld [vmem:[%s3267 + $0x24] sm:$0xf]
  %v3278 = vld [vmem:[%s3267 + $0x28] sm:$0xf]
  %v3279 = vld [vmem:[%s3267 + $0x2c] sm:$0xf]
  %v3280 = vld [vmem:[%s3267 + $0x30] sm:$0xf]
  %v3281 = vld [vmem:[%s3267 + $0x34] sm:$0xf]
  %v3282 = vld [vmem:[%s3267 + $0x38] sm:$0xf]
  %v3283 = vld [vmem:[%s3267 + $0x3c] sm:$0xf]
  %s3284 = scalar_lea.vmem %s5, 7
  %v3285 = vld [vmem:[%s3284] sm:$0x1]
  %v3287 = vperm.slane %v3285, 0
  %v3305 = vunpack.c.l.b16 %v3268
  %v3306 = vunpack.c.l.b16 %v3269
  %v3307 = vunpack.c.l.b16 %v3270
  %v3308 = vunpack.c.l.b16 %v3271
  %v3309 = vunpack.c.l.b16 %v3272
  %v3310 = vunpack.c.l.b16 %v3273
  %v3311 = vunpack.c.l.b16 %v3274
  %v3312 = vunpack.c.l.b16 %v3275
  %v3313 = vunpack.c.l.b16 %v3276
  %v3314 = vunpack.c.l.b16 %v3277
  %v3315 = vunpack.c.l.b16 %v3278
  %v3316 = vunpack.c.l.b16 %v3279
  %v3317 = vunpack.c.l.b16 %v3280
  %v3318 = vunpack.c.l.b16 %v3281
  %v3319 = vunpack.c.l.b16 %v3282
  %v3320 = vunpack.c.l.b16 %v3283
  %v3321 = vpack.c.b16 %v3306, %v3305
  %v3322 = vpack.c.b16 %v3308, %v3307
  %v3323 = vpack.c.b16 %v3310, %v3309
  %v3324 = vpack.c.b16 %v3312, %v3311
  %v3325 = vpack.c.b16 %v3314, %v3313
  %v3326 = vpack.c.b16 %v3316, %v3315
  %v3327 = vpack.c.b16 %v3318, %v3317
  %v3328 = vpack.c.b16 %v3320, %v3319
  %3337 = vmatpush.bf16.msra.mxu0 %v3328
  %3338 = vmatpush.bf16.msra.mxu0 %v3327
  %3339 = vmatpush.bf16.msra.mxu0 %v3326
  %3340 = vmatpush.bf16.msra.mxu0 %v3325
  %3341 = vmatpush.bf16.msra.mxu0 %v3324
  %3342 = vmatpush.bf16.msra.mxu0 %v3323
  %3343 = vmatpush.bf16.msra.mxu0 %v3322
  %3344 = vmatpush.bf16.msra.mxu0 %v3321
  %3345 = vmatmul.bf16.gmra.mxu0 %v1982
  %v3346 = vpop.f32.mrf.mxu0
  %v3347 = vadd.f32 %v3287, %v3346
  %v3348 = vpop.f32.mrf.mxu0
  %v3349 = vadd.f32 %v3287, %v3348
  %3350 = vdwg.mxu0
  %s3351 = scalar_lea.vmem %s3, 448
  %v3352 = vld [vmem:[%s3351] sm:$0xf]
  %v3353 = vld [vmem:[%s3351 + $0x4] sm:$0xf]
  %v3354 = vld [vmem:[%s3351 + $0x8] sm:$0xf]
  %v3355 = vld [vmem:[%s3351 + $0xc] sm:$0xf]
  %v3356 = vld [vmem:[%s3351 + $0x10] sm:$0xf]
  %v3357 = vld [vmem:[%s3351 + $0x14] sm:$0xf]
  %v3358 = vld [vmem:[%s3351 + $0x18] sm:$0xf]
  %v3359 = vld [vmem:[%s3351 + $0x1c] sm:$0xf]
  %v3360 = vld [vmem:[%s3351 + $0x20] sm:$0xf]
  %v3361 = vld [vmem:[%s3351 + $0x24] sm:$0xf]
  %v3362 = vld [vmem:[%s3351 + $0x28] sm:$0xf]
  %v3363 = vld [vmem:[%s3351 + $0x2c] sm:$0xf]
  %v3364 = vld [vmem:[%s3351 + $0x30] sm:$0xf]
  %v3365 = vld [vmem:[%s3351 + $0x34] sm:$0xf]
  %v3366 = vld [vmem:[%s3351 + $0x38] sm:$0xf]
  %v3367 = vld [vmem:[%s3351 + $0x3c] sm:$0xf]
  %s3368 = scalar_lea.vmem %s6, 7
  %v3369 = vld [vmem:[%s3368] sm:$0x1]
  %v3371 = vperm.slane %v3369, 0
  %v3389 = vunpack.c.l.b16 %v3352
  %v3390 = vunpack.c.l.b16 %v3353
  %v3391 = vunpack.c.l.b16 %v3354
  %v3392 = vunpack.c.l.b16 %v3355
  %v3393 = vunpack.c.l.b16 %v3356
  %v3394 = vunpack.c.l.b16 %v3357
  %v3395 = vunpack.c.l.b16 %v3358
  %v3396 = vunpack.c.l.b16 %v3359
  %v3397 = vunpack.c.l.b16 %v3360
  %v3398 = vunpack.c.l.b16 %v3361
  %v3399 = vunpack.c.l.b16 %v3362
  %v3400 = vunpack.c.l.b16 %v3363
  %v3401 = vunpack.c.l.b16 %v3364
  %v3402 = vunpack.c.l.b16 %v3365
  %v3403 = vunpack.c.l.b16 %v3366
  %v3404 = vunpack.c.l.b16 %v3367
  %v3405 = vpack.c.b16 %v3390, %v3389
  %v3406 = vpack.c.b16 %v3392, %v3391
  %v3407 = vpack.c.b16 %v3394, %v3393
  %v3408 = vpack.c.b16 %v3396, %v3395
  %v3409 = vpack.c.b16 %v3398, %v3397
  %v3410 = vpack.c.b16 %v3400, %v3399
  %v3411 = vpack.c.b16 %v3402, %v3401
  %v3412 = vpack.c.b16 %v3404, %v3403
  %3421 = vmatpush.bf16.msra.mxu0 %v3412
  %3422 = vmatpush.bf16.msra.mxu0 %v3411
  %3423 = vmatpush.bf16.msra.mxu0 %v3410
  %3424 = vmatpush.bf16.msra.mxu0 %v3409
  %3425 = vmatpush.bf16.msra.mxu0 %v3408
  %3426 = vmatpush.bf16.msra.mxu0 %v3407
  %3427 = vmatpush.bf16.msra.mxu0 %v3406
  %3428 = vmatpush.bf16.msra.mxu0 %v3405
  %3429 = vmatmul.bf16.gmra.mxu0 %v1982
  %v3430 = vpop.f32.mrf.mxu0
  %v3431 = vadd.f32 %v3371, %v3430
  %v3432 = vpop.f32.mrf.mxu0
  %v3433 = vadd.f32 %v3371, %v3432
  %3434 = vdwg.mxu0
  %v3436 = vsel %vm334, %v3265, 0
  %v3439 = vsel %vm334, %v3347, 0
  %3441 = vmatpush.xpose.msra.mxu0 0.0
  %3442 = vmatpush.xpose.msra.mxu0 0.0
  %3443 = vmatpush.xpose.msra.mxu0 0.0
  %3444 = vmatpush.xpose.msra.mxu0 0.0
  %3445 = vmatpush.xpose.msra.mxu0 0.0
  %3446 = vmatpush.xpose.msra.mxu0 0.0
  %3447 = vmatpush.xpose.msra.mxu0 0.0
  %3448 = vmatpush.xpose.msra.mxu0 0.0
  %3449 = vmatpush.xpose.msra.mxu0 0.0
  %3450 = vmatpush.xpose.msra.mxu0 0.0
  %3451 = vmatpush.xpose.msra.mxu0 0.0
  %3452 = vmatpush.xpose.msra.mxu0 0.0
  %3453 = vmatpush.xpose.msra.mxu0 0.0
  %3454 = vmatpush.xpose.msra.mxu0 0.0
  %3455 = vmatpush.xpose.msra.mxu0 0.0
  %3456 = vmatpush.xpose.msra.mxu0 %v3439
  %3457 = vmatmul.f32.gmra.mxu0 %v3436
  %v3458 = vpop.f32.mrf.mxu0
  %v3459 = vadd.f32 0.0, %v3458
  %3460 = vdwg.mxu0
  %v3462 = vsel %vm334, %v3266, 0
  %v3465 = vsel %vm334, %v3349, 0
  %3467 = vmatpush.xpose.msra.mxu0 0.0
  %3468 = vmatpush.xpose.msra.mxu0 0.0
  %3469 = vmatpush.xpose.msra.mxu0 0.0
  %3470 = vmatpush.xpose.msra.mxu0 0.0
  %3471 = vmatpush.xpose.msra.mxu0 0.0
  %3472 = vmatpush.xpose.msra.mxu0 0.0
  %3473 = vmatpush.xpose.msra.mxu0 0.0
  %3474 = vmatpush.xpose.msra.mxu0 0.0
  %3475 = vmatpush.xpose.msra.mxu0 0.0
  %3476 = vmatpush.xpose.msra.mxu0 0.0
  %3477 = vmatpush.xpose.msra.mxu0 0.0
  %3478 = vmatpush.xpose.msra.mxu0 0.0
  %3479 = vmatpush.xpose.msra.mxu0 0.0
  %3480 = vmatpush.xpose.msra.mxu0 0.0
  %3481 = vmatpush.xpose.msra.mxu0 0.0
  %3482 = vmatpush.xpose.msra.mxu0 %v3465
  %3483 = vmatmul.f32.gmra.mxu0 %v3462
  %v3484 = vpop.f32.mrf.mxu0
  %v3485 = vadd.f32 0.0, %v3484
  %3486 = vdwg.mxu0
  %v3487 = vsel %vm387, %v3459, -inf
  %3488 = vmax.xlane.f32.xlu0 %v3487
  %v3489 = vpop.xlane.xlu0 %3488
  %v3490 = vsel %vm387, %v3485, -inf
  %3491 = vmax.xlane.f32.xlu0 %v3490
  %v3492 = vpop.xlane.xlu0 %3491
  %v3493 = vsub.f32 %v3459, %v3489
  %v3494 = vsub.f32 %v3485, %v3492
  %v3495 = vmul.f32 %v3493, 1.442695
  %v3496 = vpow.pop %v3495
  %v3497 = vmul.f32 %v3494, 1.442695
  %v3498 = vpow.pop %v3497
  %v3499 = vsel %vm387, %v3496, 0.0
  %3500 = vadd.xlane.f32.xlu0 %v3499
  %v3501 = vpop.xlane.xlu0 %3500
  %v3502 = vsel %vm387, %v3498, 0.0
  %3503 = vadd.xlane.f32.xlu0 %v3502
  %v3504 = vpop.xlane.xlu0 %3503
  %v3505 = vrcp.pop %v3501
  %v3506 = vrcp.pop %v3504
  %v3507 = vmul.f32 %v3496, %v3505
  %v3508 = vmul.f32 %v3498, %v3506
  %v3510 = vsel %vm387, %v3507, 0
  %3512 = vmatpush.msra.mxu0 0.0
  %3513 = vmatpush.msra.mxu0 0.0
  %3514 = vmatpush.msra.mxu0 0.0
  %3515 = vmatpush.msra.mxu0 0.0
  %3516 = vmatpush.msra.mxu0 0.0
  %3517 = vmatpush.msra.mxu0 0.0
  %3518 = vmatpush.msra.mxu0 0.0
  %3519 = vmatpush.msra.mxu0 0.0
  %3520 = vmatpush.msra.mxu0 0.0
  %3521 = vmatpush.msra.mxu0 0.0
  %3522 = vmatpush.msra.mxu0 0.0
  %3523 = vmatpush.msra.mxu0 0.0
  %3524 = vmatpush.msra.mxu0 0.0
  %3525 = vmatpush.msra.mxu0 0.0
  %3526 = vmatpush.msra.mxu0 0.0
  %3527 = vmatpush.msra.mxu0 %v3431
  %3528 = vmatmul.f32.gmra.mxu0 %v3510
  %v3529 = vpop.f32.mrf.mxu0
  %v3530 = vadd.f32 0.0, %v3529
  %3531 = vdwg.mxu0
  %v3533 = vsel %vm387, %v3508, 0
  %3535 = vmatpush.msra.mxu0 0.0
  %3536 = vmatpush.msra.mxu0 0.0
  %3537 = vmatpush.msra.mxu0 0.0
  %3538 = vmatpush.msra.mxu0 0.0
  %3539 = vmatpush.msra.mxu0 0.0
  %3540 = vmatpush.msra.mxu0 0.0
  %3541 = vmatpush.msra.mxu0 0.0
  %3542 = vmatpush.msra.mxu0 0.0
  %3543 = vmatpush.msra.mxu0 0.0
  %3544 = vmatpush.msra.mxu0 0.0
  %3545 = vmatpush.msra.mxu0 0.0
  %3546 = vmatpush.msra.mxu0 0.0
  %3547 = vmatpush.msra.mxu0 0.0
  %3548 = vmatpush.msra.mxu0 0.0
  %3549 = vmatpush.msra.mxu0 0.0
  %3550 = vmatpush.msra.mxu0 %v3433
  %3551 = vmatmul.f32.gmra.mxu0 %v3533
  %v3552 = vpop.f32.mrf.mxu0
  %v3553 = vadd.f32 0.0, %v3552
  %3554 = vdwg.mxu0
  %v3555 = vpack.c.bf16 %v3553, %v3530
  %s3556 = scalar_lea.vmem %s7, 112
  %v3557 = vld [vmem:[%s3556] sm:$0xf]
  %v3558 = vld [vmem:[%s3556 + $0x4] sm:$0xf]
  %v3559 = vld [vmem:[%s3556 + $0x8] sm:$0xf]
  %v3560 = vld [vmem:[%s3556 + $0xc] sm:$0xf]
  %v3565 = vunpack.c.l.b16 %v3557
  %v3566 = vunpack.c.l.b16 %v3558
  %v3567 = vunpack.c.l.b16 %v3559
  %v3568 = vunpack.c.l.b16 %v3560
  %v3569 = vpack.c.b16 %v3566, %v3565
  %v3570 = vpack.c.b16 %v3568, %v3567
  %v3574 = vsel %vm334, %v3555, 0
  %3576 = vmatpush.bf16.msra.mxu0 0
  %3577 = vmatpush.bf16.msra.mxu0 0
  %3578 = vmatpush.bf16.msra.mxu0 0
  %3579 = vmatpush.bf16.msra.mxu0 0
  %3580 = vmatpush.bf16.msra.mxu0 0
  %3581 = vmatpush.bf16.msra.mxu0 0
  %3582 = vmatpush.bf16.msra.mxu0 %v3570
  %3583 = vmatpush.bf16.msra.mxu0 %v3569
  %3584 = vmatmul.bf16.gmra.mxu0 %v3574
  %v3585 = vpop.f32.mrf.mxu0
  %v3586 = vadd.f32 0.0, %v3585
  %v3587 = vpop.f32.mrf.mxu0
  %v3588 = vadd.f32 0.0, %v3587
  %3589 = vdwg.mxu0
  %v3594 = vunpack.c.l.b16 %v2359
  %v3595 = vunpack.c.l.b16 %v2360
  %v3596 = vunpack.c.l.b16 %v2361
  %v3597 = vunpack.c.l.b16 %v2362
  %v3598 = vpack.c.b16 %v3595, %v3594
  %v3599 = vpack.c.b16 %v3597, %v3596
  %v3603 = vsel %vm334, %v2357, 0
  %3605 = vmatpush.bf16.msra.mxu0 0
  %3606 = vmatpush.bf16.msra.mxu0 0
  %3607 = vmatpush.bf16.msra.mxu0 0
  %3608 = vmatpush.bf16.msra.mxu0 0
  %3609 = vmatpush.bf16.msra.mxu0 0
  %3610 = vmatpush.bf16.msra.mxu0 0
  %3611 = vmatpush.bf16.msra.mxu0 %v3599
  %3612 = vmatpush.bf16.msra.mxu0 %v3598
  %3613 = vmatmul.bf16.gmra.mxu0 %v3603
  %v3614 = vpop.f32.mrf.mxu0
  %v3615 = vadd.f32 %v2768, %v3614
  %v3616 = vpop.f32.mrf.mxu0
  %v3617 = vadd.f32 %v2770, %v3616
  %3618 = vdwg.mxu0
  %v3619 = vadd.f32 %v3615, %v3177
  %v3620 = vadd.f32 %v3617, %v3179
  %v3621 = vadd.f32 %v3619, %v3586
  %v3622 = vadd.f32 %v3620, %v3588
  %s3623 = scalar_lea.vmem %s8, 1
  %v3624 = vld [vmem:[%s3623] sm:$0x1]
  %v3626 = vperm.slane %v3624, 0
  %v3628 = vadd.f32 %v3621, %v3626
  %v3629 = vadd.f32 %v3622, %v3626
  %v3630 = vadd.f32 %v1980, %v3628
  %v3631 = vadd.f32 %v1981, %v3629
  %s3632 = scalar_lea.vmem %s9, 1
  %v3633 = vld [vmem:[%s3632] sm:$0x1]
  %s3634 = scalar_lea.vmem %s10, 1
  %v3635 = vld [vmem:[%s3634] sm:$0x1]
  %3636 = vadd.xlane.f32.xlu0 %v3630
  %v3637 = vpop.xlane.xlu0 %3636
  %3638 = vadd.xlane.f32.xlu0 %v3631
  %v3639 = vpop.xlane.xlu0 %3638
  %v3640 = vmul.f32 %v3637, %v1741
  %v3641 = vmul.f32 %v3639, %v1741
  %v3642 = vsub.f32 %v3630, %v3640
  %v3643 = vsub.f32 %v3631, %v3641
  %v3644 = vmul.f32 %v3642, %v3642
  %v3645 = vmul.f32 %v3643, %v3643
  %3646 = vadd.xlane.f32.xlu0 %v3644
  %v3647 = vpop.xlane.xlu0 %3646
  %3648 = vadd.xlane.f32.xlu0 %v3645
  %v3649 = vpop.xlane.xlu0 %3648
  %v3650 = vmul.f32 %v3647, %v1741
  %v3651 = vmul.f32 %v3649, %v1741
  %v3652 = vadd.f32 %v3650, 1e-05
  %v3653 = vadd.f32 %v3651, 1e-05
  %v3654 = vrsqrt.pop %v3652
  %v3655 = vmul.f32 %v3654, %v3652
  %v3656 = vmul.f32 %v3655, %v3654
  %v3657 = vmul.f32 0.5, %v3656
  %v3658 = vsub.f32 1.5, %v3657
  %v3659 = vmul.f32 %v3654, %v3658
  %vm3660 = vweird.f32 %v3652
  %vm3661 = vweird.f32 %v3654
  %vm3662 = vmor %vm3660, %vm3661
  %v3663 = vsel %vm3662, %v3654, %v3659
  %v3664 = vrsqrt.pop %v3653
  %v3665 = vmul.f32 %v3664, %v3653
  %v3666 = vmul.f32 %v3665, %v3664
  %v3667 = vmul.f32 0.5, %v3666
  %v3668 = vsub.f32 1.5, %v3667
  %v3669 = vmul.f32 %v3664, %v3668
  %vm3670 = vweird.f32 %v3653
  %vm3671 = vweird.f32 %v3664
  %vm3672 = vmor %vm3670, %vm3671
  %v3673 = vsel %vm3672, %v3664, %v3669
  %v3674 = vmul.f32 %v3642, %v3663
  %v3675 = vmul.f32 %v3643, %v3673
  %v3677 = vperm.slane %v3633, 0
  %v3679 = vmul.f32 %v3674, %v3677
  %v3680 = vmul.f32 %v3675, %v3677
  %v3682 = vperm.slane %v3635, 0
  %v3684 = vadd.f32 %v3679, %v3682
  %v3685 = vadd.f32 %v3680, %v3682
  %v3686 = vpack.c.bf16 %v3685, %v3684
  %s3687 = scalar_lea.vmem %s11, 64
  %v3688 = vld [vmem:[%s3687] sm:$0xf]
  %v3689 = vld [vmem:[%s3687 + $0x4] sm:$0xf]
  %v3690 = vld [vmem:[%s3687 + $0x8] sm:$0xf]
  %v3691 = vld [vmem:[%s3687 + $0xc] sm:$0xf]
  %v3692 = vld [vmem:[%s3687 + $0x10] sm:$0xf]
  %v3693 = vld [vmem:[%s3687 + $0x14] sm:$0xf]
  %v3694 = vld [vmem:[%s3687 + $0x18] sm:$0xf]
  %v3695 = vld [vmem:[%s3687 + $0x1c] sm:$0xf]
  %v3696 = vld [vmem:[%s3687 + $0x20] sm:$0xf]
  %v3697 = vld [vmem:[%s3687 + $0x24] sm:$0xf]
  %v3698 = vld [vmem:[%s3687 + $0x28] sm:$0xf]
  %v3699 = vld [vmem:[%s3687 + $0x2c] sm:$0xf]
  %v3700 = vld [vmem:[%s3687 + $0x30] sm:$0xf]
  %v3701 = vld [vmem:[%s3687 + $0x34] sm:$0xf]
  %v3702 = vld [vmem:[%s3687 + $0x38] sm:$0xf]
  %v3703 = vld [vmem:[%s3687 + $0x3c] sm:$0xf]
  %s3704 = scalar_lea.vmem %s12, 1
  %v3705 = vld [vmem:[%s3704] sm:$0x1]
  %v3707 = vperm.slane %v3705, 0
  %v3725 = vunpack.c.l.b16 %v3688
  %v3726 = vunpack.c.l.b16 %v3689
  %v3727 = vunpack.c.l.b16 %v3690
  %v3728 = vunpack.c.l.b16 %v3691
  %v3729 = vunpack.c.l.b16 %v3692
  %v3730 = vunpack.c.l.b16 %v3693
  %v3731 = vunpack.c.l.b16 %v3694
  %v3732 = vunpack.c.l.b16 %v3695
  %v3733 = vunpack.c.l.b16 %v3696
  %v3734 = vunpack.c.l.b16 %v3697
  %v3735 = vunpack.c.l.b16 %v3698
  %v3736 = vunpack.c.l.b16 %v3699
  %v3737 = vunpack.c.l.b16 %v3700
  %v3738 = vunpack.c.l.b16 %v3701
  %v3739 = vunpack.c.l.b16 %v3702
  %v3740 = vunpack.c.l.b16 %v3703
  %v3741 = vpack.c.b16 %v3726, %v3725
  %v3742 = vpack.c.b16 %v3728, %v3727
  %v3743 = vpack.c.b16 %v3730, %v3729
  %v3744 = vpack.c.b16 %v3732, %v3731
  %v3745 = vpack.c.b16 %v3734, %v3733
  %v3746 = vpack.c.b16 %v3736, %v3735
  %v3747 = vpack.c.b16 %v3738, %v3737
  %v3748 = vpack.c.b16 %v3740, %v3739
  %3757 = vmatpush.bf16.msra.mxu0 %v3748
  %3758 = vmatpush.bf16.msra.mxu0 %v3747
  %3759 = vmatpush.bf16.msra.mxu0 %v3746
  %3760 = vmatpush.bf16.msra.mxu0 %v3745
  %3761 = vmatpush.bf16.msra.mxu0 %v3744
  %3762 = vmatpush.bf16.msra.mxu0 %v3743
  %3763 = vmatpush.bf16.msra.mxu0 %v3742
  %3764 = vmatpush.bf16.msra.mxu0 %v3741
  %3765 = vmatmul.bf16.gmra.mxu0 %v3686
  %v3766 = vpop.f32.mrf.mxu0
  %v3767 = vadd.f32 %v3707, %v3766
  %v3768 = vpop.f32.mrf.mxu0
  %v3769 = vadd.f32 %v3707, %v3768
  %3770 = vdwg.mxu0
  %v3771 = vmax.f32 %v3767, 0.0
  %v3772 = vmax.f32 %v3769, 0.0
  %v3773 = vpack.c.bf16 %v3772, %v3771
  %s3774 = scalar_lea.vmem %s13, 32
  %v3775 = vld [vmem:[%s3774] sm:$0xf]
  %v3776 = vld [vmem:[%s3774 + $0x4] sm:$0xf]
  %v3777 = vld [vmem:[%s3774 + $0x8] sm:$0xf]
  %v3778 = vld [vmem:[%s3774 + $0xc] sm:$0xf]
  %v3779 = vld [vmem:[%s3774 + $0x10] sm:$0xf]
  %v3780 = vld [vmem:[%s3774 + $0x14] sm:$0xf]
  %v3781 = vld [vmem:[%s3774 + $0x18] sm:$0xf]
  %v3782 = vld [vmem:[%s3774 + $0x1c] sm:$0xf]
  %s3783 = scalar_lea.vmem %s14, 1
  %v3784 = vld [vmem:[%s3783] sm:$0x1]
  %v3786 = vperm.slane %v3784, 0
  %v3796 = vunpack.c.l.b16 %v3775
  %v3797 = vunpack.c.l.b16 %v3776
  %v3798 = vunpack.c.l.b16 %v3777
  %v3799 = vunpack.c.l.b16 %v3778
  %v3800 = vunpack.c.l.b16 %v3779
  %v3801 = vunpack.c.l.b16 %v3780
  %v3802 = vunpack.c.l.b16 %v3781
  %v3803 = vunpack.c.l.b16 %v3782
  %v3804 = vpack.c.b16 %v3797, %v3796
  %v3805 = vpack.c.b16 %v3799, %v3798
  %v3806 = vpack.c.b16 %v3801, %v3800
  %v3807 = vpack.c.b16 %v3803, %v3802
  %v3813 = vsel %vm1910, %v3773, 0
  %3815 = vmatpush.bf16.msra.mxu0 0
  %3816 = vmatpush.bf16.msra.mxu0 0
  %3817 = vmatpush.bf16.msra.mxu0 0
  %3818 = vmatpush.bf16.msra.mxu0 0
  %3819 = vmatpush.bf16.msra.mxu0 %v3807
  %3820 = vmatpush.bf16.msra.mxu0 %v3806
  %3821 = vmatpush.bf16.msra.mxu0 %v3805
  %3822 = vmatpush.bf16.msra.mxu0 %v3804
  %3823 = vmatmul.bf16.gmra.mxu0 %v3813
  %v3824 = vpop.f32.mrf.mxu0
  %v3825 = vadd.f32 %v3786, %v3824
  %v3826 = vpop.f32.mrf.mxu0
  %v3827 = vadd.f32 %v3786, %v3826
  %3828 = vdwg.mxu0
  %v3829 = vadd.f32 %v3684, %v3825
  %v3830 = vadd.f32 %v3685, %v3827
  %s3831 = scalar_lea.vmem %s15, 1
  %v3832 = vld [vmem:[%s3831] sm:$0x1]
  %s3833 = scalar_lea.vmem %s16, 1
  %v3834 = vld [vmem:[%s3833] sm:$0x1]
  %3835 = vadd.xlane.f32.xlu0 %v3829
  %v3836 = vpop.xlane.xlu0 %3835
  %3837 = vadd.xlane.f32.xlu0 %v3830
  %v3838 = vpop.xlane.xlu0 %3837
  %v3839 = vmul.f32 %v3836, %v1741
  %v3840 = vmul.f32 %v3838, %v1741
  %v3841 = vsub.f32 %v3829, %v3839
  %v3842 = vsub.f32 %v3830, %v3840
  %v3843 = vmul.f32 %v3841, %v3841
  %v3844 = vmul.f32 %v3842, %v3842
  %3845 = vadd.xlane.f32.xlu0 %v3843
  %v3846 = vpop.xlane.xlu0 %3845
  %3847 = vadd.xlane.f32.xlu0 %v3844
  %v3848 = vpop.xlane.xlu0 %3847
  %v3849 = vmul.f32 %v3846, %v1741
  %v3850 = vmul.f32 %v3848, %v1741
  %v3851 = vadd.f32 %v3849, 1e-05
  %v3852 = vadd.f32 %v3850, 1e-05
  %v3853 = vrsqrt.pop %v3851
  %v3854 = vmul.f32 %v3853, %v3851
  %v3855 = vmul.f32 %v3854, %v3853
  %v3856 = vmul.f32 0.5, %v3855
  %v3857 = vsub.f32 1.5, %v3856
  %v3858 = vmul.f32 %v3853, %v3857
  %vm3859 = vweird.f32 %v3851
  %vm3860 = vweird.f32 %v3853
  %vm3861 = vmor %vm3859, %vm3860
  %v3862 = vsel %vm3861, %v3853, %v3858
  %v3863 = vrsqrt.pop %v3852
  %v3864 = vmul.f32 %v3863, %v3852
  %v3865 = vmul.f32 %v3864, %v3863
  %v3866 = vmul.f32 0.5, %v3865
  %v3867 = vsub.f32 1.5, %v3866
  %v3868 = vmul.f32 %v3863, %v3867
  %vm3869 = vweird.f32 %v3852
  %vm3870 = vweird.f32 %v3863
  %vm3871 = vmor %vm3869, %vm3870
  %v3872 = vsel %vm3871, %v3863, %v3868
  %v3873 = vmul.f32 %v3841, %v3862
  %v3874 = vmul.f32 %v3842, %v3872
  %v3876 = vperm.slane %v3832, 0
  %v3878 = vmul.f32 %v3873, %v3876
  %v3879 = vmul.f32 %v3874, %v3876
  %v3881 = vperm.slane %v3834, 0
  %v3883 = vadd.f32 %v3878, %v3881
  %v3884 = vadd.f32 %v3879, %v3881
  %v3885 = vrot.slane %v3883, 4
  %v3886 = vadd.f32 %v3883, %v3885
  %v3887 = vrot.slane %v3886, 2
  %v3888 = vadd.f32 %v3886, %v3887
  %v3889 = vrot.slane %v3888, 1
  %v3890 = vadd.f32 %v3888, %v3889
  %v3891 = vrot.slane %v3884, 4
  %v3892 = vadd.f32 %v3884, %v3891
  %v3893 = vrot.slane %v3892, 2
  %v3894 = vadd.f32 %v3892, %v3893
  %v3895 = vrot.slane %v3894, 1
  %v3896 = vadd.f32 %v3894, %v3895
  %v3897 = vrcp.pop 8.0
  %v3898 = vmul.f32 8.0, %v3897
  %v3899 = vsub.f32 1.0, %v3898
  %v3900 = vmul.f32 %v3897, %v3899
  %v3901 = vadd.f32 %v3897, %v3900
  %vm3902 = vweird.f32 %v3897
  %v3903 = vsel %vm3902, %v3897, %v3901
  %v3904 = vmul.f32 %v3890, %v3903
  %v3905 = vmul.f32 %v3896, %v3903
  %v3906 = vrot.slane %v3883, 4
  %v3907 = vmax.f32 %v3883, %v3906
  %v3908 = vrot.slane %v3907, 2
  %v3909 = vmax.f32 %v3907, %v3908
  %v3910 = vrot.slane %v3909, 1
  %v3911 = vmax.f32 %v3909, %v3910
  %v3912 = vrot.slane %v3884, 4
  %v3913 = vmax.f32 %v3884, %v3912
  %v3914 = vrot.slane %v3913, 2
  %v3915 = vmax.f32 %v3913, %v3914
  %v3916 = vrot.slane %v3915, 1
  %v3917 = vmax.f32 %v3915, %v3916
  %vm3920 = vcmask 1041409
  %v3921 = vsel %vm3920, %v3905, %v3904
  %v3925 = vsel %vm3920, %v3917, %v3911
  %v3927 = vpack.c.bf16 %v3921, %v3921
  %v3928 = vpack.c.bf16 %v3925, %v3925
  %v3929 = vld [vmem:[%s17] sm:$0xf]
  %v3930 = vld [vmem:[%s17 + $0x4] sm:$0xf]
  %v3931 = vld [vmem:[%s17 + $0x8] sm:$0xf]
  %v3932 = vld [vmem:[%s17 + $0xc] sm:$0xf]
  %v3933 = vld [vmem:[%s17 + $0x10] sm:$0xf]
  %v3934 = vld [vmem:[%s17 + $0x14] sm:$0xf]
  %v3935 = vld [vmem:[%s17 + $0x18] sm:$0xf]
  %v3936 = vld [vmem:[%s17 + $0x1c] sm:$0xf]
  %v3937 = vld [vmem:[%s17 + $0x20] sm:$0xf]
  %v3938 = vld [vmem:[%s17 + $0x24] sm:$0xf]
  %v3939 = vld [vmem:[%s17 + $0x28] sm:$0xf]
  %v3940 = vld [vmem:[%s17 + $0x2c] sm:$0xf]
  %v3941 = vld [vmem:[%s17 + $0x30] sm:$0xf]
  %v3942 = vld [vmem:[%s17 + $0x34] sm:$0xf]
  %v3943 = vld [vmem:[%s17 + $0x38] sm:$0xf]
  %v3944 = vld [vmem:[%s17 + $0x3c] sm:$0xf]
  %v3945 = vld [vmem:[%s17 + $0x40] sm:$0xf]
  %v3946 = vld [vmem:[%s17 + $0x44] sm:$0xf]
  %v3947 = vld [vmem:[%s17 + $0x48] sm:$0xf]
  %v3948 = vld [vmem:[%s17 + $0x4c] sm:$0xf]
  %v3949 = vld [vmem:[%s17 + $0x50] sm:$0xf]
  %v3950 = vld [vmem:[%s17 + $0x54] sm:$0xf]
  %v3951 = vld [vmem:[%s17 + $0x58] sm:$0xf]
  %v3952 = vld [vmem:[%s17 + $0x5c] sm:$0xf]
  %v3953 = vld [vmem:[%s17 + $0x60] sm:$0xf]
  %v3954 = vld [vmem:[%s17 + $0x64] sm:$0xf]
  %v3955 = vld [vmem:[%s17 + $0x68] sm:$0xf]
  %v3956 = vld [vmem:[%s17 + $0x6c] sm:$0xf]
  %v3957 = vld [vmem:[%s17 + $0x70] sm:$0xf]
  %v3958 = vld [vmem:[%s17 + $0x74] sm:$0xf]
  %v3959 = vld [vmem:[%s17 + $0x78] sm:$0xf]
  %v3960 = vld [vmem:[%s17 + $0x7c] sm:$0xf]
  %v3961 = vld [vmem:[%s18] sm:$0x1]
  %v3963 = vperm.slane %v3961, 0
  %v3997 = vunpack.c.l.b16 %v3929
  %v3998 = vunpack.c.l.b16 %v3930
  %v3999 = vunpack.c.l.b16 %v3931
  %v4000 = vunpack.c.l.b16 %v3932
  %v4001 = vunpack.c.l.b16 %v3933
  %v4002 = vunpack.c.l.b16 %v3934
  %v4003 = vunpack.c.l.b16 %v3935
  %v4004 = vunpack.c.l.b16 %v3936
  %v4005 = vunpack.c.l.b16 %v3937
  %v4006 = vunpack.c.l.b16 %v3938
  %v4007 = vunpack.c.l.b16 %v3939
  %v4008 = vunpack.c.l.b16 %v3940
  %v4009 = vunpack.c.l.b16 %v3941
  %v4010 = vunpack.c.l.b16 %v3942
  %v4011 = vunpack.c.l.b16 %v3943
  %v4012 = vunpack.c.l.b16 %v3944
  %v4013 = vunpack.c.l.b16 %v3945
  %v4014 = vunpack.c.l.b16 %v3946
  %v4015 = vunpack.c.l.b16 %v3947
  %v4016 = vunpack.c.l.b16 %v3948
  %v4017 = vunpack.c.l.b16 %v3949
  %v4018 = vunpack.c.l.b16 %v3950
  %v4019 = vunpack.c.l.b16 %v3951
  %v4020 = vunpack.c.l.b16 %v3952
  %v4021 = vunpack.c.l.b16 %v3953
  %v4022 = vunpack.c.l.b16 %v3954
  %v4023 = vunpack.c.l.b16 %v3955
  %v4024 = vunpack.c.l.b16 %v3956
  %v4025 = vunpack.c.l.b16 %v3957
  %v4026 = vunpack.c.l.b16 %v3958
  %v4027 = vunpack.c.l.b16 %v3959
  %v4028 = vunpack.c.l.b16 %v3960
  %v4029 = vpack.c.b16 %v3998, %v3997
  %v4030 = vpack.c.b16 %v4000, %v3999
  %v4031 = vpack.c.b16 %v4002, %v4001
  %v4032 = vpack.c.b16 %v4004, %v4003
  %v4033 = vpack.c.b16 %v4006, %v4005
  %v4034 = vpack.c.b16 %v4008, %v4007
  %v4035 = vpack.c.b16 %v4010, %v4009
  %v4036 = vpack.c.b16 %v4012, %v4011
  %v4037 = vpack.c.b16 %v4014, %v4013
  %v4038 = vpack.c.b16 %v4016, %v4015
  %v4039 = vpack.c.b16 %v4018, %v4017
  %v4040 = vpack.c.b16 %v4020, %v4019
  %v4041 = vpack.c.b16 %v4022, %v4021
  %v4042 = vpack.c.b16 %v4024, %v4023
  %v4043 = vpack.c.b16 %v4026, %v4025
  %v4044 = vpack.c.b16 %v4028, %v4027
  %4061 = vmatpush.bf16.msra.mxu0 %v4036
  %4062 = vmatpush.bf16.msra.mxu0 %v4035
  %4063 = vmatpush.bf16.msra.mxu0 %v4034
  %4064 = vmatpush.bf16.msra.mxu0 %v4033
  %4065 = vmatpush.bf16.msra.mxu0 %v4032
  %4066 = vmatpush.bf16.msra.mxu0 %v4031
  %4067 = vmatpush.bf16.msra.mxu0 %v4030
  %4068 = vmatpush.bf16.msra.mxu0 %v4029
  %4069 = vmatmul.bf16.gmra.mxu0 %v3927
  %v4070 = vpop.f32.mrf.mxu0
  %v4071 = vadd.f32 %v3963, %v4070
  %v4072 = vpop.f32.mrf.mxu0
  %4073 = vdwg.mxu0
  %4074 = vmatpush.bf16.msra.mxu0 %v4044
  %4075 = vmatpush.bf16.msra.mxu0 %v4043
  %4076 = vmatpush.bf16.msra.mxu0 %v4042
  %4077 = vmatpush.bf16.msra.mxu0 %v4041
  %4078 = vmatpush.bf16.msra.mxu0 %v4040
  %4079 = vmatpush.bf16.msra.mxu0 %v4039
  %4080 = vmatpush.bf16.msra.mxu0 %v4038
  %4081 = vmatpush.bf16.msra.mxu0 %v4037
  %4082 = vmatmul.bf16.gmra.mxu0 %v3928
  %v4083 = vpop.f32.mrf.mxu0
  %v4084 = vadd.f32 %v4071, %v4083
  %v4085 = vpop.f32.mrf.mxu0
  %4086 = vdwg.mxu0
  %v4087 = vmax.f32 %v4084, 0.0
  %v4088 = vpack.c.bf16 %v4087, %v4087
  %v4089 = vld [vmem:[%s19] sm:$0xf]
  %v4090 = vld [vmem:[%s19 + $0x4] sm:$0xf]
  %v4091 = vld [vmem:[%s19 + $0x8] sm:$0xf]
  %v4092 = vld [vmem:[%s19 + $0xc] sm:$0xf]
  %v4093 = vld [vmem:[%s19 + $0x10] sm:$0xf]
  %v4094 = vld [vmem:[%s19 + $0x14] sm:$0xf]
  %v4095 = vld [vmem:[%s19 + $0x18] sm:$0xf]
  %v4096 = vld [vmem:[%s19 + $0x1c] sm:$0xf]
  %v4097 = vld [vmem:[%s19 + $0x20] sm:$0xf]
  %v4098 = vld [vmem:[%s19 + $0x24] sm:$0xf]
  %v4099 = vld [vmem:[%s19 + $0x28] sm:$0xf]
  %v4100 = vld [vmem:[%s19 + $0x2c] sm:$0xf]
  %v4101 = vld [vmem:[%s19 + $0x30] sm:$0xf]
  %v4102 = vld [vmem:[%s19 + $0x34] sm:$0xf]
  %v4103 = vld [vmem:[%s19 + $0x38] sm:$0xf]
  %v4104 = vld [vmem:[%s19 + $0x3c] sm:$0xf]
  %v4105 = vld [vmem:[%s20] sm:$0x1]
  %v4107 = vperm.slane %v4105, 0
  %v4125 = vunpack.c.l.b16 %v4089
  %v4126 = vunpack.c.l.b16 %v4090
  %v4127 = vunpack.c.l.b16 %v4091
  %v4128 = vunpack.c.l.b16 %v4092
  %v4129 = vunpack.c.l.b16 %v4093
  %v4130 = vunpack.c.l.b16 %v4094
  %v4131 = vunpack.c.l.b16 %v4095
  %v4132 = vunpack.c.l.b16 %v4096
  %v4133 = vunpack.c.l.b16 %v4097
  %v4134 = vunpack.c.l.b16 %v4098
  %v4135 = vunpack.c.l.b16 %v4099
  %v4136 = vunpack.c.l.b16 %v4100
  %v4137 = vunpack.c.l.b16 %v4101
  %v4138 = vunpack.c.l.b16 %v4102
  %v4139 = vunpack.c.l.b16 %v4103
  %v4140 = vunpack.c.l.b16 %v4104
  %v4141 = vpack.c.b16 %v4126, %v4125
  %v4142 = vpack.c.b16 %v4128, %v4127
  %v4143 = vpack.c.b16 %v4130, %v4129
  %v4144 = vpack.c.b16 %v4132, %v4131
  %v4145 = vpack.c.b16 %v4134, %v4133
  %v4146 = vpack.c.b16 %v4136, %v4135
  %v4147 = vpack.c.b16 %v4138, %v4137
  %v4148 = vpack.c.b16 %v4140, %v4139
  %4157 = vmatpush.bf16.msra.mxu0 %v4148
  %4158 = vmatpush.bf16.msra.mxu0 %v4147
  %4159 = vmatpush.bf16.msra.mxu0 %v4146
  %4160 = vmatpush.bf16.msra.mxu0 %v4145
  %4161 = vmatpush.bf16.msra.mxu0 %v4144
  %4162 = vmatpush.bf16.msra.mxu0 %v4143
  %4163 = vmatpush.bf16.msra.mxu0 %v4142
  %4164 = vmatpush.bf16.msra.mxu0 %v4141
  %4165 = vmatmul.bf16.gmra.mxu0 %v4088
  %v4166 = vpop.f32.mrf.mxu0
  %v4167 = vadd.f32 %v4107, %v4166
  %v4168 = vpop.f32.mrf.mxu0
  %4169 = vdwg.mxu0
  %v4170 = vmax.f32 %v4167, 0.0
  %v4171 = vpack.c.bf16 %v4170, %v4170
  %v4172 = vld [vmem:[%s21] sm:$0xf]
  %v4173 = vld [vmem:[%s21 + $0x4] sm:$0xf]
  %v4174 = vld [vmem:[%s21 + $0x8] sm:$0xf]
  %v4175 = vld [vmem:[%s21 + $0xc] sm:$0xf]
  %v4176 = vld [vmem:[%s21 + $0x10] sm:$0xf]
  %v4177 = vld [vmem:[%s21 + $0x14] sm:$0xf]
  %v4178 = vld [vmem:[%s21 + $0x18] sm:$0xf]
  %v4179 = vld [vmem:[%s21 + $0x1c] sm:$0xf]
  %v4180 = vld [vmem:[%s22] sm:$0x1]
  %v4182 = vperm.slane %v4180, 0
  %v4192 = vunpack.c.l.b16 %v4172
  %v4193 = vunpack.c.l.b16 %v4173
  %v4194 = vunpack.c.l.b16 %v4174
  %v4195 = vunpack.c.l.b16 %v4175
  %v4196 = vunpack.c.l.b16 %v4176
  %v4197 = vunpack.c.l.b16 %v4177
  %v4198 = vunpack.c.l.b16 %v4178
  %v4199 = vunpack.c.l.b16 %v4179
  %v4200 = vpack.c.b16 %v4193, %v4192
  %v4201 = vpack.c.b16 %v4195, %v4194
  %v4202 = vpack.c.b16 %v4197, %v4196
  %v4203 = vpack.c.b16 %v4199, %v4198
  %v4209 = vsel %vm1910, %v4171, 0
  %4211 = vmatpush.bf16.msra.mxu0 0
  %4212 = vmatpush.bf16.msra.mxu0 0
  %4213 = vmatpush.bf16.msra.mxu0 0
  %4214 = vmatpush.bf16.msra.mxu0 0
  %4215 = vmatpush.bf16.msra.mxu0 %v4203
  %4216 = vmatpush.bf16.msra.mxu0 %v4202
  %4217 = vmatpush.bf16.msra.mxu0 %v4201
  %4218 = vmatpush.bf16.msra.mxu0 %v4200
  %4219 = vmatmul.bf16.gmra.mxu0 %v4209
  %v4220 = vpop.f32.mrf.mxu0
  %v4221 = vadd.f32 %v4182, %v4220
  %v4222 = vpop.f32.mrf.mxu0
  %4223 = vdwg.mxu0
  %v4224 = vmax.f32 %v4221, 0.0
  %v4225 = vld [vmem:[%s23] sm:$0xff]
  %v4226 = vld [vmem:[%s23 + $0x8] sm:$0xff]
  %v4227 = vld [vmem:[%s23 + $0x10] sm:$0xff]
  %v4228 = vld [vmem:[%s23 + $0x18] sm:$0xff]
  %v4229 = vld [vmem:[#allocation2] sm:$0x1]
  %v4231 = vperm.slane %v4229, 0
  %v4234 = vsel %vm334, %v4224, 0
  %4236 = vmatpush.msra.mxu0 0.0
  %4237 = vmatpush.msra.mxu0 0.0
  %4238 = vmatpush.msra.mxu0 0.0
  %4239 = vmatpush.msra.mxu0 0.0
  %4240 = vmatpush.msra.mxu0 0.0
  %4241 = vmatpush.msra.mxu0 0.0
  %4242 = vmatpush.msra.mxu0 0.0
  %4243 = vmatpush.msra.mxu0 0.0
  %4244 = vmatpush.msra.mxu0 0.0
  %4245 = vmatpush.msra.mxu0 0.0
  %4246 = vmatpush.msra.mxu0 0.0
  %4247 = vmatpush.msra.mxu0 0.0
  %4248 = vmatpush.msra.mxu0 %v4228
  %4249 = vmatpush.msra.mxu0 %v4227
  %4250 = vmatpush.msra.mxu0 %v4226
  %4251 = vmatpush.msra.mxu0 %v4225
  %4252 = vmatmul.f32.gmra.mxu0 %v4234
  %v4253 = vpop.f32.mrf.mxu0
  %v4254 = vadd.f32 %v4231, %v4253
  %4255 = vdwg.mxu0
  %vm4256 = vcmask 1024
  %4257 = vst.msk [vmem:[%s25] sm:$0x3] %vm4256, %v4254
  // Predicated region
  $region102: #{tpu_custom_call.1} parent=0 // pred_check
    _
  $region103: #{tpu_custom_call.1} parent=0 // pred_check_branch
    %4259 = sbr.rel (0) target = $region105
  $region104: #{tpu_custom_call.1} parent=0 // pred_region
    _
  $region105: #{tpu_custom_call.1} parent=0 // pred_fallthru
    _
  // Predicated region
  $region106: #{tpu_custom_call.1} parent=0 // pred_check
    _
  $region107: #{tpu_custom_call.1} parent=0 // pred_check_branch
    %4261 = sbr.rel (0) target = $region109
  $region108: #{tpu_custom_call.1} parent=0 // pred_region
    _
  $region109: #{tpu_custom_call.1} parent=0 // pred_fallthru
    _

</llo_original>
